<compile_context>
chip_gen: v6e
topology: v6e:2x2x1
jax: 0.10.0
libtpu: 0.0.40
codegen_flags: <defaults>
</compile_context>

<pallas_src>
import functools

import jax
import jax.numpy as jnp
from jax.experimental import pallas as pl
from jax.experimental.pallas import tpu as pltpu

BN_EPS = 1e-5
LANE = 128        # every feature dim (D=32, H1=64, H2=48, d=16) is padded to one full lane tile
N_STAGES = 6      # one stage per BN boundary in the Lin/BN chain


# ----------------------------------------------------------------------------- kernel
def _make_vae_kernel(inv_n):
    """Staged kernel. Refs:
      x_ref      (TILE_N,128) f32   input tile (features zero-padded to 128 lanes)
      w_ref      (6,128,128)  bf16  [w1..w6], each (in,out), zero-padded, VMEM-resident
      v_ref      (16,128)     f32   bias/gamma/beta rows (layout below), VMEM-resident
      mu_x_ref   (TILE_N,128) f32   output tile
      mu_z_ref   (TILE_N,128) f32   output tile
      act_ref    (T,TILE_N,128) f32 whole-batch pre-BN activation of the current stage
      muz_ref    (T,TILE_N,128) f32 whole-batch mu_z (kept so the final writeback is correct)
      acc_ref    (2,128) f32        [sum; sumsq] accumulator for the NEXT stage's BN
      cur_ref    (2,128) f32        [mean; rstd] of the BN applied in THIS stage

    Vector-slab rows:
      0:b1 1:g1 2:be1 | 3:b2 4:g2 5:be2 | 6:b3 | 7:b4 8:g4 9:be4 | 10:b5 11:g5 12:be5 | 13:b6 14:g6 15:be6
    """

    def kernel(x_ref, w_ref, v_ref, mu_x_ref, mu_z_ref,
               act_ref, muz_ref, acc_ref, cur_ref):
        s = pl.program_id(0)          # stage (outer, sequential)
        t = pl.program_id(1)          # batch tile (inner, sequential: stats accumulate)

        V = v_ref[...]                # (16,128) f32, single load

        def row(i):                   # static (1,128) slice; broadcast happens at the consuming op
            return V[i:i + 1, :]

        def lin(h, layer, bias_row):  # bf16 operands, f32 accumulation on the MXU
            return jnp.dot(h.astype(jnp.bfloat16), w_ref[layer],
                           preferred_element_type=jnp.float32) + row(bias_row)

        def accumulate(a):            # per-lane sum / sumsq (zero-padded lanes stay exactly zero)
            sr = jnp.sum(a, axis=0, keepdims=True)
            ssr = jnp.sum(a * a, axis=0, keepdims=True)
            acc_ref[...] = acc_ref[...] + jnp.concatenate([sr, ssr], axis=0)

        def bn_apply(a, gamma_row, beta_row):
            cur = cur_ref[...]
            return (a - cur[0:1, :]) * cur[1:2, :] * row(gamma_row) + row(beta_row)

        # ---- stage prologue (tile 0): finalize previous stage's full-batch stats, reset accumulator
        @pl.when(t == 0)
        def _():
            @pl.when(s > 0)
            def _():
                acc = acc_ref[...]
                mean = acc[0:1, :] * inv_n
                var = acc[1:2, :] * inv_n - mean * mean
                cur_ref[...] = jnp.concatenate(
                    [mean, jax.lax.rsqrt(var + BN_EPS)], axis=0)
            acc_ref[...] = jnp.zeros_like(acc_ref)

        # ---- stage 0: a1 = Lin1(x); accumulate BN1 stats
        @pl.when(s == 0)
        def _():
            a1 = lin(x_ref[...], 0, 0)
            act_ref[t] = a1
            accumulate(a1)
            # deterministic content for the revisited output buffers (overwritten at stage 5)
            mu_x_ref[...] = jnp.zeros_like(mu_x_ref)
            mu_z_ref[...] = jnp.zeros_like(mu_z_ref)

        # ---- stage 1: BN1 + ReLU; a2 = Lin2; accumulate BN2 stats
        @pl.when(s == 1)
        def _():
            h1 = jnp.maximum(bn_apply(act_ref[t], 1, 2), 0.0)
            a2 = lin(h1, 1, 3)
            act_ref[t] = a2
            accumulate(a2)

        # ---- stage 2: BN2 + ReLU; mu_z = Lin3; a4 = Lin4(mu_z); accumulate BN4 stats
        @pl.when(s == 2)
        def _():
            h2 = jnp.maximum(bn_apply(act_ref[t], 4, 5), 0.0)
            mz = lin(h2, 2, 6)
            muz_ref[t] = mz
            a4 = lin(mz, 3, 7)
            act_ref[t] = a4
            accumulate(a4)

        # ---- stage 3: BN4 + ReLU; a5 = Lin5; accumulate BN5 stats
        @pl.when(s == 3)
        def _():
            h4 = jnp.maximum(bn_apply(act_ref[t], 8, 9), 0.0)
            a5 = lin(h4, 4, 10)
            act_ref[t] = a5
            accumulate(a5)

        # ---- stage 4: BN5 + ReLU; a6 = Lin6; accumulate BN6 stats
        @pl.when(s == 4)
        def _():
            h5 = jnp.maximum(bn_apply(act_ref[t], 11, 12), 0.0)
            a6 = lin(h5, 5, 13)
            act_ref[t] = a6
            accumulate(a6)

        # ---- stage 5: BN6 + sigmoid -> mu_x; re-emit mu_z so the LAST writeback of each output
        #               tile (which happens at this stage) carries the correct data.
        @pl.when(s == 5)
        def _():
            o = bn_apply(act_ref[t], 14, 15)
            mu_x_ref[...] = jax.nn.sigmoid(o)
            mu_z_ref[...] = muz_ref[t]

    return kernel


# ----------------------------------------------------------------------------- params
def init_params(key, d, D, H1, H2):
    """Deterministic synthetic parameters (unpadded f32). NOTE: Linear weights stored
    (in_features, out_features); real PyTorch nn.Linear weights (out,in) must be transposed."""
    ks = jax.random.split(key, 12)

    def lin(kw, kb, fin, fout):
        w = jax.random.normal(kw, (fin, fout), jnp.float32) * (1.0 / jnp.sqrt(fin))
        b = jax.random.normal(kb, (1, fout), jnp.float32) * 0.01
        return w, b

    def bn(kg, kb, f):
        gamma = 1.0 + 0.05 * jax.random.normal(kg, (1, f), jnp.float32)
        beta = 0.05 * jax.random.normal(kb, (1, f), jnp.float32)
        return gamma, beta

    p = {}
    p["w1"], p["b1"] = lin(ks[0], ks[1], D, H1)
    p["g1"], p["be1"] = bn(ks[0], ks[1], H1)
    p["w2"], p["b2"] = lin(ks[2], ks[3], H1, H2)
    p["g2"], p["be2"] = bn(ks[2], ks[3], H2)
    p["w3"], p["b3"] = lin(ks[4], ks[5], H2, d)
    p["w4"], p["b4"] = lin(ks[6], ks[7], d, H2)
    p["g4"], p["be4"] = bn(ks[6], ks[7], H2)
    p["w5"], p["b5"] = lin(ks[8], ks[9], H2, H1)
    p["g5"], p["be5"] = bn(ks[8], ks[9], H1)
    p["w6"], p["b6"] = lin(ks[10], ks[11], H1, D)
    p["g6"], p["be6"] = bn(ks[10], ks[11], D)
    return p


def pack_params(p):
    """Pack parameters into two lane-dense slabs: w_slab (6,128,128) bf16, v_slab (16,128) f32."""
    def pad_w(w):
        out = jnp.zeros((LANE, LANE), jnp.float32)
        return out.at[: w.shape[0], : w.shape[1]].set(w)

    def pad_v(v):
        out = jnp.zeros((LANE,), jnp.float32)
        return out.at[: v.shape[-1]].set(v.reshape(-1))

    w_slab = jnp.stack([pad_w(p[k]) for k in ("w1", "w2", "w3", "w4", "w5", "w6")]
                       ).astype(jnp.bfloat16)
    vec_order = ["b1", "g1", "be1", "b2", "g2", "be2", "b3",
                 "b4", "g4", "be4", "b5", "g5", "be5", "b6", "g6", "be6"]
    v_slab = jnp.stack([pad_v(p[k]) for k in vec_order])
    return w_slab, v_slab


# ----------------------------------------------------------------------------- wrapper
def vae_forward(x, w_slab, v_slab, d, tile_n=256):
    """Returns (mu_x, z_rep, mu_z) exactly like VAE_model.forward (z_rep == mu_z, no sampling)."""
    N, D = x.shape
    tile_n = int(min(tile_n, N))
    if N % tile_n != 0:
        tile_n = N                      # TODO(synk): masked stats for a ragged last tile
    num_tiles = N // tile_n

    # pad input features to 128 lanes (batch rows are NOT padded: BN stats need the true batch)
    x_pad = jnp.zeros((N, LANE), jnp.float32).at[:, :D].set(x)

    flops = 2 * N * LANE * LANE * 6 + 60 * N * LANE
    transcendentals = N * LANE + 5 * LANE
    bytes_accessed = (N_STAGES * N * LANE * 4 + int(w_slab.size) * 2
                      + int(v_slab.size) * 4 + 2 * N_STAGES * N * LANE * 4)

    # VMEM budget: whole-batch activation + mu_z scratch, double-buffered x/mu_x/mu_z tiles,
    # resident parameter slabs, stat buffers — sized explicitly so v7x (64 MiB VMEM) stays safe.
    scratch_bytes = 2 * N * LANE * 4 + 2 * 2 * LANE * 4
    buffer_bytes = 3 * (2 * tile_n * LANE * 4) + int(w_slab.size) * 2 + int(v_slab.size) * 4
    vmem_limit = max(int(1.5 * (scratch_bytes + buffer_bytes)), 16 << 20)

    grid_spec = pltpu.PrefetchScalarGridSpec(
        num_scalar_prefetch=0,
        grid=(N_STAGES, num_tiles),
        in_specs=[
            pl.BlockSpec((tile_n, LANE), lambda s, t: (t, 0)),       # x: per batch tile
            pl.BlockSpec((6, LANE, LANE), lambda s, t: (0, 0, 0)),   # weights: DMA'd once, resident
            pl.BlockSpec((16, LANE), lambda s, t: (0, 0)),           # vectors: DMA'd once, resident
        ],
        out_specs=(
            pl.BlockSpec((tile_n, LANE), lambda s, t: (t, 0)),       # mu_x (128-lane dense store)
            pl.BlockSpec((tile_n, LANE), lambda s, t: (t, 0)),       # mu_z (128-lane dense store)
        ),
        scratch_shapes=[
            pltpu.VMEM((num_tiles, tile_n, LANE), jnp.float32),      # pre-BN activations (whole batch)
            pltpu.VMEM((num_tiles, tile_n, LANE), jnp.float32),      # mu_z keep (whole batch)
            pltpu.VMEM((2, LANE), jnp.float32),                      # [sum; sumsq] accumulator
            pltpu.VMEM((2, LANE), jnp.float32),                      # [mean; rstd] current BN
        ],
    )

    mu_x_pad, mu_z_pad = pl.pallas_call(
        _make_vae_kernel(1.0 / N),
        out_shape=(jax.ShapeDtypeStruct((N, LANE), jnp.float32),
                   jax.ShapeDtypeStruct((N, LANE), jnp.float32)),
        grid_spec=grid_spec,
        compiler_params=pltpu.CompilerParams(
            # Both axes are sequential: tiles accumulate full-batch BN stats, stages consume them.
            # TODO(synk): v7x megacore needs a CMEM stat reduction + core_barrier to parallelize tiles.
            dimension_semantics=("arbitrary", "arbitrary"),
            vmem_limit_bytes=vmem_limit),
        cost_estimate=pl.CostEstimate(flops=flops,
                                      transcendentals=transcendentals,
                                      bytes_accessed=bytes_accessed),
    )(x_pad, w_slab, v_slab)

    mu_x = mu_x_pad[:, :D]
    mu_z = mu_z_pad[:, :d]
    z_rep = mu_z                        # forward() does not sample; z_rep == mu_z
    return mu_x, z_rep, mu_z


# ----------------------------------------------------------------------------- reference
def _reference_forward(x, p):
    """Pure-JAX reference with the same bf16-matmul / f32-accumulate precision policy."""
    def mm(a, w):
        return jnp.dot(a.astype(jnp.bfloat16), w.astype(jnp.bfloat16),
                       preferred_element_type=jnp.float32)

    def bn(h, g, b):
        m = jnp.mean(h, axis=0, keepdims=True)
        v = jnp.mean((h - m) ** 2, axis=0, keepdims=True)
        return (h - m) * jax.lax.rsqrt(v + BN_EPS) * g + b

    h = jnp.maximum(bn(mm(x, p["w1"]) + p["b1"], p["g1"], p["be1"]), 0.0)
    h = jnp.maximum(bn(mm(h, p["w2"]) + p["b2"], p["g2"], p["be2"]), 0.0)
    mu_z = mm(h, p["w3"]) + p["b3"]
    g = jnp.maximum(bn(mm(mu_z, p["w4"]) + p["b4"], p["g4"], p["be4"]), 0.0)
    g = jnp.maximum(bn(mm(g, p["w5"]) + p["b5"], p["g5"], p["be5"]), 0.0)
    mu_x = jax.nn.sigmoid(bn(mm(g, p["w6"]) + p["b6"], p["g6"], p["be6"]))
    return mu_x, mu_z, mu_z


if __name__ == "__main__":
    # Module shapes (D, H1, H2, d) kept small; batch chosen so the grid actually tiles (2 tiles
    # of 256 rows) and every MXU push has M = 256.
    N, D, H1, H2, d = 512, 32, 64, 48, 16
    TILE_N = 256

    key = jax.random.PRNGKey(0)
    kx, kp = jax.random.split(key)
    x = jax.random.normal(kx, (N, D), jnp.float32)
    params = init_params(kp, d, D, H1, H2)
    w_slab, v_slab = pack_params(params)

    # jit the wrapper so the 128-lane pad and the output slices fuse with the pallas_call program.
    fwd = jax.jit(functools.partial(vae_forward, d=d, tile_n=TILE_N))
    mu_x, z_rep, mu_z = fwd(x, w_slab, v_slab)
    jax.block_until_ready((mu_x, z_rep, mu_z))

    # correctness check (multi-tile batch exercises the two-pass cross-tile BatchNorm)
    ref_mu_x, ref_z, ref_mu_z = _reference_forward(x, params)
    assert mu_x.shape == (N, D) and mu_z.shape == (N, d) and z_rep.shape == (N, d)
    assert jnp.allclose(mu_x, ref_mu_x, atol=1e-2, rtol=1e-2)
    assert jnp.allclose(mu_z, ref_mu_z, atol=2e-2, rtol=2e-2)
    assert jnp.allclose(z_rep, mu_z)

    print("KERNEL_OK")
</pallas_src>

<mosaic_0001>
module attributes {stable_mosaic.version = 11 : i64} {
  func.func @kernel(%arg0: i32, %arg1: i32, %arg2: memref<256x128xf32, #tpu.memory_space<vmem>>, %arg3: memref<6x128x128xbf16, #tpu.memory_space<vmem>>, %arg4: memref<16x128xf32, #tpu.memory_space<vmem>>, %arg5: memref<256x128xf32, #tpu.memory_space<vmem>>, %arg6: memref<256x128xf32, #tpu.memory_space<vmem>>, %arg7: memref<2x256x128xf32, #tpu.memory_space<vmem>>, %arg8: memref<2x256x128xf32, #tpu.memory_space<vmem>>, %arg9: memref<2x128xf32, #tpu.memory_space<vmem>>, %arg10: memref<2x128xf32, #tpu.memory_space<vmem>>) attributes {dimension_semantics = [#tpu.dimension_semantics<arbitrary>, #tpu.dimension_semantics<arbitrary>], iteration_bounds = array<i64: 6, 2>, scalar_prefetch = 0 : i64, scratch_operands = 4 : i64, tpu.core_type = #tpu.core_type<tc>, window_params = [{transform_indices = @transform_0, window_bounds = array<i64: 256, 128>}, {pipeline_mode = #tpu.pipeline_mode<synchronous>, transform_indices = @transform_1, window_bounds = array<i64: 6, 128, 128>}, {pipeline_mode = #tpu.pipeline_mode<synchronous>, transform_indices = @transform_2, window_bounds = array<i64: 16, 128>}, {transform_indices = @transform_3, window_bounds = array<i64: 256, 128>}, {transform_indices = @transform_4, window_bounds = array<i64: 256, 128>}]} {
    %c0 = arith.constant 0 : index
    %c0_0 = arith.constant 0 : index
    %0 = vector.load %arg4[%c0, %c0_0] : memref<16x128xf32, #tpu.memory_space<vmem>>, vector<16x128xf32>
    %c0_i32 = arith.constant 0 : i32
    %1 = arith.cmpi eq, %arg1, %c0_i32 : i32
    %2 = arith.extui %1 : i1 to i32
    %c0_i32_1 = arith.constant 0 : i32
    %3 = arith.cmpi ne, %2, %c0_i32_1 : i32
    scf.if %3 {
      %c0_i32_9 = arith.constant 0 : i32
      %22 = arith.cmpi sgt, %arg0, %c0_i32_9 : i32
      %23 = arith.extui %22 : i1 to i32
      %c0_i32_10 = arith.constant 0 : i32
      %24 = arith.cmpi ne, %23, %c0_i32_10 : i32
      scf.if %24 {
        %c0_13 = arith.constant 0 : index
        %c0_14 = arith.constant 0 : index
        %27 = vector.load %arg9[%c0_13, %c0_14] : memref<2x128xf32, #tpu.memory_space<vmem>>, vector<2x128xf32>
        %28 = vector.extract_strided_slice %27 {offsets = [0, 0], sizes = [1, 128], strides = [1, 1]} : vector<2x128xf32> to vector<1x128xf32>
        %cst_15 = arith.constant 0.001953125 : f32
        %29 = vector.broadcast %cst_15 : f32 to vector<1x128xf32>
        %30 = arith.mulf %28, %29 : vector<1x128xf32>
        %31 = vector.extract_strided_slice %27 {offsets = [1, 0], sizes = [1, 128], strides = [1, 1]} : vector<2x128xf32> to vector<1x128xf32>
        %cst_16 = arith.constant 0.001953125 : f32
        %32 = vector.broadcast %cst_16 : f32 to vector<1x128xf32>
        %33 = arith.mulf %31, %32 : vector<1x128xf32>
        %34 = arith.mulf %30, %30 : vector<1x128xf32>
        %35 = arith.subf %33, %34 : vector<1x128xf32>
        %cst_17 = arith.constant 9.99999974E-6 : f32
        %36 = vector.broadcast %cst_17 : f32 to vector<1x128xf32>
        %37 = arith.addf %35, %36 : vector<1x128xf32>
        %38 = math.rsqrt %37 : vector<1x128xf32>
        %39 = tpu.concatenate %30, %38 in 0 : vector<1x128xf32>, vector<1x128xf32> -> vector<2x128xf32>
        %c0_18 = arith.constant 0 : index
        %c0_19 = arith.constant 0 : index
        %40 = vector.load %arg10[%c0_18, %c0_19] : memref<2x128xf32, #tpu.memory_space<vmem>>, vector<2x128xf32>
        tpu.vector_store %arg10[%c0_18, %c0_19], %39 {strides = array<i32>} : memref<2x128xf32, #tpu.memory_space<vmem>>, vector<2x128xf32>,
      } else {
      }
      %cst = arith.constant 0.000000e+00 : f32
      %25 = vector.broadcast %cst : f32 to vector<2x128xf32>
      %c0_11 = arith.constant 0 : index
      %c0_12 = arith.constant 0 : index
      %26 = vector.load %arg9[%c0_11, %c0_12] : memref<2x128xf32, #tpu.memory_space<vmem>>, vector<2x128xf32>
      tpu.vector_store %arg9[%c0_11, %c0_12], %25 {strides = array<i32>} : memref<2x128xf32, #tpu.memory_space<vmem>>, vector<2x128xf32>,
    } else {
    }
    %c0_i32_2 = arith.constant 0 : i32
    %4 = arith.cmpi eq, %arg0, %c0_i32_2 : i32
    %5 = arith.extui %4 : i1 to i32
    %c0_i32_3 = arith.constant 0 : i32
    %6 = arith.cmpi ne, %5, %c0_i32_3 : i32
    scf.if %6 {
      %c0_9 = arith.constant 0 : index
      %c0_10 = arith.constant 0 : index
      %22 = vector.load %arg2[%c0_9, %c0_10] : memref<256x128xf32, #tpu.memory_space<vmem>>, vector<256x128xf32>
      %23 = arith.truncf %22 : vector<256x128xf32> to vector<256x128xbf16>
      %c0_11 = arith.constant 0 : index
      %c0_12 = arith.constant 0 : index
      %c0_13 = arith.constant 0 : index
      %24 = vector.load %arg3[%c0_11, %c0_12, %c0_13] : memref<6x128x128xbf16, #tpu.memory_space<vmem>>, vector<1x128x128xbf16>
      %25 = vector.shape_cast %24 : vector<1x128x128xbf16> to vector<128x128xbf16>
      %cst = arith.constant dense<0.000000e+00> : vector<256x128xf32>
      %26 = tpu.matmul %23, %25, %cst {dimension_numbers = #tpu.dot_dimension_numbers<[1], [0], [0], [1], [0, 0, 1, 1], [], []>} : vector<256x128xbf16>, vector<128x128xbf16>, vector<256x128xf32> -> vector<256x128xf32>
      %27 = vector.extract_strided_slice %0 {offsets = [0, 0], sizes = [1, 128], strides = [1, 1]} : vector<16x128xf32> to vector<1x128xf32>
      %28 = vector.broadcast %27 : vector<1x128xf32> to vector<256x128xf32>
      %29 = arith.addf %26, %28 : vector<256x128xf32>
      %30 = arith.index_cast %arg1 : i32 to index
      %c0_14 = arith.constant 0 : index
      %c0_15 = arith.constant 0 : index
      %31 = vector.load %arg7[%30, %c0_14, %c0_15] : memref<2x256x128xf32, #tpu.memory_space<vmem>>, vector<1x256x128xf32>
      %32 = vector.shape_cast %31 : vector<1x256x128xf32> to vector<256x128xf32>
      %33 = vector.shape_cast %29 : vector<256x128xf32> to vector<1x256x128xf32>
      tpu.vector_store %arg7[%30, %c0_14, %c0_15], %33 {strides = array<i32>} : memref<2x256x128xf32, #tpu.memory_space<vmem>>, vector<1x256x128xf32>,
      %cst_16 = arith.constant dense<0.000000e+00> : vector<128xf32>
      %34 = vector.multi_reduction <add>, %29, %cst_16 [0] : vector<256x128xf32> to vector<128xf32>
      %35 = vector.shape_cast %34 : vector<128xf32> to vector<1x128xf32>
      %36 = arith.mulf %29, %29 : vector<256x128xf32>
      %cst_17 = arith.constant dense<0.000000e+00> : vector<128xf32>
      %37 = vector.multi_reduction <add>, %36, %cst_17 [0] : vector<256x128xf32> to vector<128xf32>
      %38 = vector.shape_cast %37 : vector<128xf32> to vector<1x128xf32>
      %c0_18 = arith.constant 0 : index
      %c0_19 = arith.constant 0 : index
      %39 = vector.load %arg9[%c0_18, %c0_19] : memref<2x128xf32, #tpu.memory_space<vmem>>, vector<2x128xf32>
      %40 = tpu.concatenate %35, %38 in 0 : vector<1x128xf32>, vector<1x128xf32> -> vector<2x128xf32>
      %41 = arith.addf %39, %40 : vector<2x128xf32>
      %c0_20 = arith.constant 0 : index
      %c0_21 = arith.constant 0 : index
      %42 = vector.load %arg9[%c0_20, %c0_21] : memref<2x128xf32, #tpu.memory_space<vmem>>, vector<2x128xf32>
      tpu.vector_store %arg9[%c0_20, %c0_21], %41 {strides = array<i32>} : memref<2x128xf32, #tpu.memory_space<vmem>>, vector<2x128xf32>,
      %cst_22 = arith.constant 0.000000e+00 : f32
      %43 = vector.broadcast %cst_22 : f32 to vector<256x128xf32>
      %c0_23 = arith.constant 0 : index
      %c0_24 = arith.constant 0 : index
      %44 = vector.load %arg5[%c0_23, %c0_24] : memref<256x128xf32, #tpu.memory_space<vmem>>, vector<256x128xf32>
      tpu.vector_store %arg5[%c0_23, %c0_24], %43 {strides = array<i32>} : memref<256x128xf32, #tpu.memory_space<vmem>>, vector<256x128xf32>,
      %cst_25 = arith.constant 0.000000e+00 : f32
      %45 = vector.broadcast %cst_25 : f32 to vector<256x128xf32>
      %c0_26 = arith.constant 0 : index
      %c0_27 = arith.constant 0 : index
      %46 = vector.load %arg6[%c0_26, %c0_27] : memref<256x128xf32, #tpu.memory_space<vmem>>, vector<256x128xf32>
      tpu.vector_store %arg6[%c0_26, %c0_27], %45 {strides = array<i32>} : memref<256x128xf32, #tpu.memory_space<vmem>>, vector<256x128xf32>,
    } else {
    }
    %c1_i32 = arith.constant 1 : i32
    %7 = arith.cmpi eq, %arg0, %c1_i32 : i32
    %8 = arith.extui %7 : i1 to i32
    %c0_i32_4 = arith.constant 0 : i32
    %9 = arith.cmpi ne, %8, %c0_i32_4 : i32
    scf.if %9 {
      %22 = arith.index_cast %arg1 : i32 to index
      %c0_9 = arith.constant 0 : index
      %c0_10 = arith.constant 0 : index
      %23 = vector.load %arg7[%22, %c0_9, %c0_10] : memref<2x256x128xf32, #tpu.memory_space<vmem>>, vector<1x256x128xf32>
      %24 = vector.shape_cast %23 : vector<1x256x128xf32> to vector<256x128xf32>
      %c0_11 = arith.constant 0 : index
      %c0_12 = arith.constant 0 : index
      %25 = vector.load %arg10[%c0_11, %c0_12] : memref<2x128xf32, #tpu.memory_space<vmem>>, vector<2x128xf32>
      %26 = vector.extract_strided_slice %25 {offsets = [0, 0], sizes = [1, 128], strides = [1, 1]} : vector<2x128xf32> to vector<1x128xf32>
      %27 = vector.broadcast %26 : vector<1x128xf32> to vector<256x128xf32>
      %28 = arith.subf %24, %27 : vector<256x128xf32>
      %29 = vector.extract_strided_slice %25 {offsets = [1, 0], sizes = [1, 128], strides = [1, 1]} : vector<2x128xf32> to vector<1x128xf32>
      %30 = vector.broadcast %29 : vector<1x128xf32> to vector<256x128xf32>
      %31 = arith.mulf %28, %30 : vector<256x128xf32>
      %32 = vector.extract_strided_slice %0 {offsets = [1, 0], sizes = [1, 128], strides = [1, 1]} : vector<16x128xf32> to vector<1x128xf32>
      %33 = vector.broadcast %32 : vector<1x128xf32> to vector<256x128xf32>
      %34 = arith.mulf %31, %33 : vector<256x128xf32>
      %35 = vector.extract_strided_slice %0 {offsets = [2, 0], sizes = [1, 128], strides = [1, 1]} : vector<16x128xf32> to vector<1x128xf32>
      %36 = vector.broadcast %35 : vector<1x128xf32> to vector<256x128xf32>
      %37 = arith.addf %34, %36 : vector<256x128xf32>
      %cst = arith.constant 0.000000e+00 : f32
      %38 = vector.broadcast %cst : f32 to vector<256x128xf32>
      %39 = arith.maximumf %37, %38 : vector<256x128xf32>
      %40 = arith.truncf %39 : vector<256x128xf32> to vector<256x128xbf16>
      %c1 = arith.constant 1 : index
      %c0_13 = arith.constant 0 : index
      %c0_14 = arith.constant 0 : index
      %41 = vector.load %arg3[%c1, %c0_13, %c0_14] : memref<6x128x128xbf16, #tpu.memory_space<vmem>>, vector<1x128x128xbf16>
      %42 = vector.shape_cast %41 : vector<1x128x128xbf16> to vector<128x128xbf16>
      %cst_15 = arith.constant dense<0.000000e+00> : vector<256x128xf32>
      %43 = tpu.matmul %40, %42, %cst_15 {dimension_numbers = #tpu.dot_dimension_numbers<[1], [0], [0], [1], [0, 0, 1, 1], [], []>} : vector<256x128xbf16>, vector<128x128xbf16>, vector<256x128xf32> -> vector<256x128xf32>
      %44 = vector.extract_strided_slice %0 {offsets = [3, 0], sizes = [1, 128], strides = [1, 1]} : vector<16x128xf32> to vector<1x128xf32>
      %45 = vector.broadcast %44 : vector<1x128xf32> to vector<256x128xf32>
      %46 = arith.addf %43, %45 : vector<256x128xf32>
      %47 = arith.index_cast %arg1 : i32 to index
      %c0_16 = arith.constant 0 : index
      %c0_17 = arith.constant 0 : index
      %48 = vector.load %arg7[%47, %c0_16, %c0_17] : memref<2x256x128xf32, #tpu.memory_space<vmem>>, vector<1x256x128xf32>
      %49 = vector.shape_cast %48 : vector<1x256x128xf32> to vector<256x128xf32>
      %50 = vector.shape_cast %46 : vector<256x128xf32> to vector<1x256x128xf32>
      tpu.vector_store %arg7[%47, %c0_16, %c0_17], %50 {strides = array<i32>} : memref<2x256x128xf32, #tpu.memory_space<vmem>>, vector<1x256x128xf32>,
      %cst_18 = arith.constant dense<0.000000e+00> : vector<128xf32>
      %51 = vector.multi_reduction <add>, %46, %cst_18 [0] : vector<256x128xf32> to vector<128xf32>
      %52 = vector.shape_cast %51 : vector<128xf32> to vector<1x128xf32>
      %53 = arith.mulf %46, %46 : vector<256x128xf32>
      %cst_19 = arith.constant dense<0.000000e+00> : vector<128xf32>
      %54 = vector.multi_reduction <add>, %53, %cst_19 [0] : vector<256x128xf32> to vector<128xf32>
      %55 = vector.shape_cast %54 : vector<128xf32> to vector<1x128xf32>
      %c0_20 = arith.constant 0 : index
      %c0_21 = arith.constant 0 : index
      %56 = vector.load %arg9[%c0_20, %c0_21] : memref<2x128xf32, #tpu.memory_space<vmem>>, vector<2x128xf32>
      %57 = tpu.concatenate %52, %55 in 0 : vector<1x128xf32>, vector<1x128xf32> -> vector<2x128xf32>
      %58 = arith.addf %56, %57 : vector<2x128xf32>
      %c0_22 = arith.constant 0 : index
      %c0_23 = arith.constant 0 : index
      %59 = vector.load %arg9[%c0_22, %c0_23] : memref<2x128xf32, #tpu.memory_space<vmem>>, vector<2x128xf32>
      tpu.vector_store %arg9[%c0_22, %c0_23], %58 {strides = array<i32>} : memref<2x128xf32, #tpu.memory_space<vmem>>, vector<2x128xf32>,
    } else {
    }
    %c2_i32 = arith.constant 2 : i32
    %10 = arith.cmpi eq, %arg0, %c2_i32 : i32
    %11 = arith.extui %10 : i1 to i32
    %c0_i32_5 = arith.constant 0 : i32
    %12 = arith.cmpi ne, %11, %c0_i32_5 : i32
    scf.if %12 {
      %22 = arith.index_cast %arg1 : i32 to index
      %c0_9 = arith.constant 0 : index
      %c0_10 = arith.constant 0 : index
      %23 = vector.load %arg7[%22, %c0_9, %c0_10] : memref<2x256x128xf32, #tpu.memory_space<vmem>>, vector<1x256x128xf32>
      %24 = vector.shape_cast %23 : vector<1x256x128xf32> to vector<256x128xf32>
      %c0_11 = arith.constant 0 : index
      %c0_12 = arith.constant 0 : index
      %25 = vector.load %arg10[%c0_11, %c0_12] : memref<2x128xf32, #tpu.memory_space<vmem>>, vector<2x128xf32>
      %26 = vector.extract_strided_slice %25 {offsets = [0, 0], sizes = [1, 128], strides = [1, 1]} : vector<2x128xf32> to vector<1x128xf32>
      %27 = vector.broadcast %26 : vector<1x128xf32> to vector<256x128xf32>
      %28 = arith.subf %24, %27 : vector<256x128xf32>
      %29 = vector.extract_strided_slice %25 {offsets = [1, 0], sizes = [1, 128], strides = [1, 1]} : vector<2x128xf32> to vector<1x128xf32>
      %30 = vector.broadcast %29 : vector<1x128xf32> to vector<256x128xf32>
      %31 = arith.mulf %28, %30 : vector<256x128xf32>
      %32 = vector.extract_strided_slice %0 {offsets = [4, 0], sizes = [1, 128], strides = [1, 1]} : vector<16x128xf32> to vector<1x128xf32>
      %33 = vector.broadcast %32 : vector<1x128xf32> to vector<256x128xf32>
      %34 = arith.mulf %31, %33 : vector<256x128xf32>
      %35 = vector.extract_strided_slice %0 {offsets = [5, 0], sizes = [1, 128], strides = [1, 1]} : vector<16x128xf32> to vector<1x128xf32>
      %36 = vector.broadcast %35 : vector<1x128xf32> to vector<256x128xf32>
      %37 = arith.addf %34, %36 : vector<256x128xf32>
      %cst = arith.constant 0.000000e+00 : f32
      %38 = vector.broadcast %cst : f32 to vector<256x128xf32>
      %39 = arith.maximumf %37, %38 : vector<256x128xf32>
      %40 = arith.truncf %39 : vector<256x128xf32> to vector<256x128xbf16>
      %c2 = arith.constant 2 : index
      %c0_13 = arith.constant 0 : index
      %c0_14 = arith.constant 0 : index
      %41 = vector.load %arg3[%c2, %c0_13, %c0_14] : memref<6x128x128xbf16, #tpu.memory_space<vmem>>, vector<1x128x128xbf16>
      %42 = vector.shape_cast %41 : vector<1x128x128xbf16> to vector<128x128xbf16>
      %cst_15 = arith.constant dense<0.000000e+00> : vector<256x128xf32>
      %43 = tpu.matmul %40, %42, %cst_15 {dimension_numbers = #tpu.dot_dimension_numbers<[1], [0], [0], [1], [0, 0, 1, 1], [], []>} : vector<256x128xbf16>, vector<128x128xbf16>, vector<256x128xf32> -> vector<256x128xf32>
      %44 = vector.extract_strided_slice %0 {offsets = [6, 0], sizes = [1, 128], strides = [1, 1]} : vector<16x128xf32> to vector<1x128xf32>
      %45 = vector.broadcast %44 : vector<1x128xf32> to vector<256x128xf32>
      %46 = arith.addf %43, %45 : vector<256x128xf32>
      %47 = arith.index_cast %arg1 : i32 to index
      %c0_16 = arith.constant 0 : index
      %c0_17 = arith.constant 0 : index
      %48 = vector.load %arg8[%47, %c0_16, %c0_17] : memref<2x256x128xf32, #tpu.memory_space<vmem>>, vector<1x256x128xf32>
      %49 = vector.shape_cast %48 : vector<1x256x128xf32> to vector<256x128xf32>
      %50 = vector.shape_cast %46 : vector<256x128xf32> to vector<1x256x128xf32>
      tpu.vector_store %arg8[%47, %c0_16, %c0_17], %50 {strides = array<i32>} : memref<2x256x128xf32, #tpu.memory_space<vmem>>, vector<1x256x128xf32>,
      %51 = arith.truncf %46 : vector<256x128xf32> to vector<256x128xbf16>
      %c3 = arith.constant 3 : index
      %c0_18 = arith.constant 0 : index
      %c0_19 = arith.constant 0 : index
      %52 = vector.load %arg3[%c3, %c0_18, %c0_19] : memref<6x128x128xbf16, #tpu.memory_space<vmem>>, vector<1x128x128xbf16>
      %53 = vector.shape_cast %52 : vector<1x128x128xbf16> to vector<128x128xbf16>
      %cst_20 = arith.constant dense<0.000000e+00> : vector<256x128xf32>
      %54 = tpu.matmul %51, %53, %cst_20 {dimension_numbers = #tpu.dot_dimension_numbers<[1], [0], [0], [1], [0, 0, 1, 1], [], []>} : vector<256x128xbf16>, vector<128x128xbf16>, vector<256x128xf32> -> vector<256x128xf32>
      %55 = vector.extract_strided_slice %0 {offsets = [7, 0], sizes = [1, 128], strides = [1, 1]} : vector<16x128xf32> to vector<1x128xf32>
      %56 = vector.broadcast %55 : vector<1x128xf32> to vector<256x128xf32>
      %57 = arith.addf %54, %56 : vector<256x128xf32>
      %58 = arith.index_cast %arg1 : i32 to index
      %c0_21 = arith.constant 0 : index
      %c0_22 = arith.constant 0 : index
      %59 = vector.load %arg7[%58, %c0_21, %c0_22] : memref<2x256x128xf32, #tpu.memory_space<vmem>>, vector<1x256x128xf32>
      %60 = vector.shape_cast %59 : vector<1x256x128xf32> to vector<256x128xf32>
      %61 = vector.shape_cast %57 : vector<256x128xf32> to vector<1x256x128xf32>
      tpu.vector_store %arg7[%58, %c0_21, %c0_22], %61 {strides = array<i32>} : memref<2x256x128xf32, #tpu.memory_space<vmem>>, vector<1x256x128xf32>,
      %cst_23 = arith.constant dense<0.000000e+00> : vector<128xf32>
      %62 = vector.multi_reduction <add>, %57, %cst_23 [0] : vector<256x128xf32> to vector<128xf32>
      %63 = vector.shape_cast %62 : vector<128xf32> to vector<1x128xf32>
      %64 = arith.mulf %57, %57 : vector<256x128xf32>
      %cst_24 = arith.constant dense<0.000000e+00> : vector<128xf32>
      %65 = vector.multi_reduction <add>, %64, %cst_24 [0] : vector<256x128xf32> to vector<128xf32>
      %66 = vector.shape_cast %65 : vector<128xf32> to vector<1x128xf32>
      %c0_25 = arith.constant 0 : index
      %c0_26 = arith.constant 0 : index
      %67 = vector.load %arg9[%c0_25, %c0_26] : memref<2x128xf32, #tpu.memory_space<vmem>>, vector<2x128xf32>
      %68 = tpu.concatenate %63, %66 in 0 : vector<1x128xf32>, vector<1x128xf32> -> vector<2x128xf32>
      %69 = arith.addf %67, %68 : vector<2x128xf32>
      %c0_27 = arith.constant 0 : index
      %c0_28 = arith.constant 0 : index
      %70 = vector.load %arg9[%c0_27, %c0_28] : memref<2x128xf32, #tpu.memory_space<vmem>>, vector<2x128xf32>
      tpu.vector_store %arg9[%c0_27, %c0_28], %69 {strides = array<i32>} : memref<2x128xf32, #tpu.memory_space<vmem>>, vector<2x128xf32>,
    } else {
    }
    %c3_i32 = arith.constant 3 : i32
    %13 = arith.cmpi eq, %arg0, %c3_i32 : i32
    %14 = arith.extui %13 : i1 to i32
    %c0_i32_6 = arith.constant 0 : i32
    %15 = arith.cmpi ne, %14, %c0_i32_6 : i32
    scf.if %15 {
      %22 = arith.index_cast %arg1 : i32 to index
      %c0_9 = arith.constant 0 : index
      %c0_10 = arith.constant 0 : index
      %23 = vector.load %arg7[%22, %c0_9, %c0_10] : memref<2x256x128xf32, #tpu.memory_space<vmem>>, vector<1x256x128xf32>
      %24 = vector.shape_cast %23 : vector<1x256x128xf32> to vector<256x128xf32>
      %c0_11 = arith.constant 0 : index
      %c0_12 = arith.constant 0 : index
      %25 = vector.load %arg10[%c0_11, %c0_12] : memref<2x128xf32, #tpu.memory_space<vmem>>, vector<2x128xf32>
      %26 = vector.extract_strided_slice %25 {offsets = [0, 0], sizes = [1, 128], strides = [1, 1]} : vector<2x128xf32> to vector<1x128xf32>
      %27 = vector.broadcast %26 : vector<1x128xf32> to vector<256x128xf32>
      %28 = arith.subf %24, %27 : vector<256x128xf32>
      %29 = vector.extract_strided_slice %25 {offsets = [1, 0], sizes = [1, 128], strides = [1, 1]} : vector<2x128xf32> to vector<1x128xf32>
      %30 = vector.broadcast %29 : vector<1x128xf32> to vector<256x128xf32>
      %31 = arith.mulf %28, %30 : vector<256x128xf32>
      %32 = vector.extract_strided_slice %0 {offsets = [8, 0], sizes = [1, 128], strides = [1, 1]} : vector<16x128xf32> to vector<1x128xf32>
      %33 = vector.broadcast %32 : vector<1x128xf32> to vector<256x128xf32>
      %34 = arith.mulf %31, %33 : vector<256x128xf32>
      %35 = vector.extract_strided_slice %0 {offsets = [9, 0], sizes = [1, 128], strides = [1, 1]} : vector<16x128xf32> to vector<1x128xf32>
      %36 = vector.broadcast %35 : vector<1x128xf32> to vector<256x128xf32>
      %37 = arith.addf %34, %36 : vector<256x128xf32>
      %cst = arith.constant 0.000000e+00 : f32
      %38 = vector.broadcast %cst : f32 to vector<256x128xf32>
      %39 = arith.maximumf %37, %38 : vector<256x128xf32>
      %40 = arith.truncf %39 : vector<256x128xf32> to vector<256x128xbf16>
      %c4 = arith.constant 4 : index
      %c0_13 = arith.constant 0 : index
      %c0_14 = arith.constant 0 : index
      %41 = vector.load %arg3[%c4, %c0_13, %c0_14] : memref<6x128x128xbf16, #tpu.memory_space<vmem>>, vector<1x128x128xbf16>
      %42 = vector.shape_cast %41 : vector<1x128x128xbf16> to vector<128x128xbf16>
      %cst_15 = arith.constant dense<0.000000e+00> : vector<256x128xf32>
      %43 = tpu.matmul %40, %42, %cst_15 {dimension_numbers = #tpu.dot_dimension_numbers<[1], [0], [0], [1], [0, 0, 1, 1], [], []>} : vector<256x128xbf16>, vector<128x128xbf16>, vector<256x128xf32> -> vector<256x128xf32>
      %44 = vector.extract_strided_slice %0 {offsets = [10, 0], sizes = [1, 128], strides = [1, 1]} : vector<16x128xf32> to vector<1x128xf32>
      %45 = vector.broadcast %44 : vector<1x128xf32> to vector<256x128xf32>
      %46 = arith.addf %43, %45 : vector<256x128xf32>
      %47 = arith.index_cast %arg1 : i32 to index
      %c0_16 = arith.constant 0 : index
      %c0_17 = arith.constant 0 : index
      %48 = vector.load %arg7[%47, %c0_16, %c0_17] : memref<2x256x128xf32, #tpu.memory_space<vmem>>, vector<1x256x128xf32>
      %49 = vector.shape_cast %48 : vector<1x256x128xf32> to vector<256x128xf32>
      %50 = vector.shape_cast %46 : vector<256x128xf32> to vector<1x256x128xf32>
      tpu.vector_store %arg7[%47, %c0_16, %c0_17], %50 {strides = array<i32>} : memref<2x256x128xf32, #tpu.memory_space<vmem>>, vector<1x256x128xf32>,
      %cst_18 = arith.constant dense<0.000000e+00> : vector<128xf32>
      %51 = vector.multi_reduction <add>, %46, %cst_18 [0] : vector<256x128xf32> to vector<128xf32>
      %52 = vector.shape_cast %51 : vector<128xf32> to vector<1x128xf32>
      %53 = arith.mulf %46, %46 : vector<256x128xf32>
      %cst_19 = arith.constant dense<0.000000e+00> : vector<128xf32>
      %54 = vector.multi_reduction <add>, %53, %cst_19 [0] : vector<256x128xf32> to vector<128xf32>
      %55 = vector.shape_cast %54 : vector<128xf32> to vector<1x128xf32>
      %c0_20 = arith.constant 0 : index
      %c0_21 = arith.constant 0 : index
      %56 = vector.load %arg9[%c0_20, %c0_21] : memref<2x128xf32, #tpu.memory_space<vmem>>, vector<2x128xf32>
      %57 = tpu.concatenate %52, %55 in 0 : vector<1x128xf32>, vector<1x128xf32> -> vector<2x128xf32>
      %58 = arith.addf %56, %57 : vector<2x128xf32>
      %c0_22 = arith.constant 0 : index
      %c0_23 = arith.constant 0 : index
      %59 = vector.load %arg9[%c0_22, %c0_23] : memref<2x128xf32, #tpu.memory_space<vmem>>, vector<2x128xf32>
      tpu.vector_store %arg9[%c0_22, %c0_23], %58 {strides = array<i32>} : memref<2x128xf32, #tpu.memory_space<vmem>>, vector<2x128xf32>,
    } else {
    }
    %c4_i32 = arith.constant 4 : i32
    %16 = arith.cmpi eq, %arg0, %c4_i32 : i32
    %17 = arith.extui %16 : i1 to i32
    %c0_i32_7 = arith.constant 0 : i32
    %18 = arith.cmpi ne, %17, %c0_i32_7 : i32
    scf.if %18 {
      %22 = arith.index_cast %arg1 : i32 to index
      %c0_9 = arith.constant 0 : index
      %c0_10 = arith.constant 0 : index
      %23 = vector.load %arg7[%22, %c0_9, %c0_10] : memref<2x256x128xf32, #tpu.memory_space<vmem>>, vector<1x256x128xf32>
      %24 = vector.shape_cast %23 : vector<1x256x128xf32> to vector<256x128xf32>
      %c0_11 = arith.constant 0 : index
      %c0_12 = arith.constant 0 : index
      %25 = vector.load %arg10[%c0_11, %c0_12] : memref<2x128xf32, #tpu.memory_space<vmem>>, vector<2x128xf32>
      %26 = vector.extract_strided_slice %25 {offsets = [0, 0], sizes = [1, 128], strides = [1, 1]} : vector<2x128xf32> to vector<1x128xf32>
      %27 = vector.broadcast %26 : vector<1x128xf32> to vector<256x128xf32>
      %28 = arith.subf %24, %27 : vector<256x128xf32>
      %29 = vector.extract_strided_slice %25 {offsets = [1, 0], sizes = [1, 128], strides = [1, 1]} : vector<2x128xf32> to vector<1x128xf32>
      %30 = vector.broadcast %29 : vector<1x128xf32> to vector<256x128xf32>
      %31 = arith.mulf %28, %30 : vector<256x128xf32>
      %32 = vector.extract_strided_slice %0 {offsets = [11, 0], sizes = [1, 128], strides = [1, 1]} : vector<16x128xf32> to vector<1x128xf32>
      %33 = vector.broadcast %32 : vector<1x128xf32> to vector<256x128xf32>
      %34 = arith.mulf %31, %33 : vector<256x128xf32>
      %35 = vector.extract_strided_slice %0 {offsets = [12, 0], sizes = [1, 128], strides = [1, 1]} : vector<16x128xf32> to vector<1x128xf32>
      %36 = vector.broadcast %35 : vector<1x128xf32> to vector<256x128xf32>
      %37 = arith.addf %34, %36 : vector<256x128xf32>
      %cst = arith.constant 0.000000e+00 : f32
      %38 = vector.broadcast %cst : f32 to vector<256x128xf32>
      %39 = arith.maximumf %37, %38 : vector<256x128xf32>
      %40 = arith.truncf %39 : vector<256x128xf32> to vector<256x128xbf16>
      %c5 = arith.constant 5 : index
      %c0_13 = arith.constant 0 : index
      %c0_14 = arith.constant 0 : index
      %41 = vector.load %arg3[%c5, %c0_13, %c0_14] : memref<6x128x128xbf16, #tpu.memory_space<vmem>>, vector<1x128x128xbf16>
      %42 = vector.shape_cast %41 : vector<1x128x128xbf16> to vector<128x128xbf16>
      %cst_15 = arith.constant dense<0.000000e+00> : vector<256x128xf32>
      %43 = tpu.matmul %40, %42, %cst_15 {dimension_numbers = #tpu.dot_dimension_numbers<[1], [0], [0], [1], [0, 0, 1, 1], [], []>} : vector<256x128xbf16>, vector<128x128xbf16>, vector<256x128xf32> -> vector<256x128xf32>
      %44 = vector.extract_strided_slice %0 {offsets = [13, 0], sizes = [1, 128], strides = [1, 1]} : vector<16x128xf32> to vector<1x128xf32>
      %45 = vector.broadcast %44 : vector<1x128xf32> to vector<256x128xf32>
      %46 = arith.addf %43, %45 : vector<256x128xf32>
      %47 = arith.index_cast %arg1 : i32 to index
      %c0_16 = arith.constant 0 : index
      %c0_17 = arith.constant 0 : index
      %48 = vector.load %arg7[%47, %c0_16, %c0_17] : memref<2x256x128xf32, #tpu.memory_space<vmem>>, vector<1x256x128xf32>
      %49 = vector.shape_cast %48 : vector<1x256x128xf32> to vector<256x128xf32>
      %50 = vector.shape_cast %46 : vector<256x128xf32> to vector<1x256x128xf32>
      tpu.vector_store %arg7[%47, %c0_16, %c0_17], %50 {strides = array<i32>} : memref<2x256x128xf32, #tpu.memory_space<vmem>>, vector<1x256x128xf32>,
      %cst_18 = arith.constant dense<0.000000e+00> : vector<128xf32>
      %51 = vector.multi_reduction <add>, %46, %cst_18 [0] : vector<256x128xf32> to vector<128xf32>
      %52 = vector.shape_cast %51 : vector<128xf32> to vector<1x128xf32>
      %53 = arith.mulf %46, %46 : vector<256x128xf32>
      %cst_19 = arith.constant dense<0.000000e+00> : vector<128xf32>
      %54 = vector.multi_reduction <add>, %53, %cst_19 [0] : vector<256x128xf32> to vector<128xf32>
      %55 = vector.shape_cast %54 : vector<128xf32> to vector<1x128xf32>
      %c0_20 = arith.constant 0 : index
      %c0_21 = arith.constant 0 : index
      %56 = vector.load %arg9[%c0_20, %c0_21] : memref<2x128xf32, #tpu.memory_space<vmem>>, vector<2x128xf32>
      %57 = tpu.concatenate %52, %55 in 0 : vector<1x128xf32>, vector<1x128xf32> -> vector<2x128xf32>
      %58 = arith.addf %56, %57 : vector<2x128xf32>
      %c0_22 = arith.constant 0 : index
      %c0_23 = arith.constant 0 : index
      %59 = vector.load %arg9[%c0_22, %c0_23] : memref<2x128xf32, #tpu.memory_space<vmem>>, vector<2x128xf32>
      tpu.vector_store %arg9[%c0_22, %c0_23], %58 {strides = array<i32>} : memref<2x128xf32, #tpu.memory_space<vmem>>, vector<2x128xf32>,
    } else {
    }
    %c5_i32 = arith.constant 5 : i32
    %19 = arith.cmpi eq, %arg0, %c5_i32 : i32
    %20 = arith.extui %19 : i1 to i32
    %c0_i32_8 = arith.constant 0 : i32
    %21 = arith.cmpi ne, %20, %c0_i32_8 : i32
    scf.if %21 {
      %22 = arith.index_cast %arg1 : i32 to index
      %c0_9 = arith.constant 0 : index
      %c0_10 = arith.constant 0 : index
      %23 = vector.load %arg7[%22, %c0_9, %c0_10] : memref<2x256x128xf32, #tpu.memory_space<vmem>>, vector<1x256x128xf32>
      %24 = vector.shape_cast %23 : vector<1x256x128xf32> to vector<256x128xf32>
      %c0_11 = arith.constant 0 : index
      %c0_12 = arith.constant 0 : index
      %25 = vector.load %arg10[%c0_11, %c0_12] : memref<2x128xf32, #tpu.memory_space<vmem>>, vector<2x128xf32>
      %26 = vector.extract_strided_slice %25 {offsets = [0, 0], sizes = [1, 128], strides = [1, 1]} : vector<2x128xf32> to vector<1x128xf32>
      %27 = vector.broadcast %26 : vector<1x128xf32> to vector<256x128xf32>
      %28 = arith.subf %24, %27 : vector<256x128xf32>
      %29 = vector.extract_strided_slice %25 {offsets = [1, 0], sizes = [1, 128], strides = [1, 1]} : vector<2x128xf32> to vector<1x128xf32>
      %30 = vector.broadcast %29 : vector<1x128xf32> to vector<256x128xf32>
      %31 = arith.mulf %28, %30 : vector<256x128xf32>
      %32 = vector.extract_strided_slice %0 {offsets = [14, 0], sizes = [1, 128], strides = [1, 1]} : vector<16x128xf32> to vector<1x128xf32>
      %33 = vector.broadcast %32 : vector<1x128xf32> to vector<256x128xf32>
      %34 = arith.mulf %31, %33 : vector<256x128xf32>
      %35 = vector.extract_strided_slice %0 {offsets = [15, 0], sizes = [1, 128], strides = [1, 1]} : vector<16x128xf32> to vector<1x128xf32>
      %36 = vector.broadcast %35 : vector<1x128xf32> to vector<256x128xf32>
      %37 = arith.addf %34, %36 : vector<256x128xf32>
      %38 = arith.negf %37 : vector<256x128xf32>
      %39 = math.exp %38 : vector<256x128xf32>
      %cst = arith.constant 1.000000e+00 : f32
      %40 = vector.broadcast %cst : f32 to vector<256x128xf32>
      %41 = arith.addf %40, %39 : vector<256x128xf32>
      %42 = arith.divf %40, %41 : vector<256x128xf32>
      %c0_13 = arith.constant 0 : index
      %c0_14 = arith.constant 0 : index
      %43 = vector.load %arg5[%c0_13, %c0_14] : memref<256x128xf32, #tpu.memory_space<vmem>>, vector<256x128xf32>
      tpu.vector_store %arg5[%c0_13, %c0_14], %42 {strides = array<i32>} : memref<256x128xf32, #tpu.memory_space<vmem>>, vector<256x128xf32>,
      %44 = arith.index_cast %arg1 : i32 to index
      %c0_15 = arith.constant 0 : index
      %c0_16 = arith.constant 0 : index
      %45 = vector.load %arg8[%44, %c0_15, %c0_16] : memref<2x256x128xf32, #tpu.memory_space<vmem>>, vector<1x256x128xf32>
      %46 = vector.shape_cast %45 : vector<1x256x128xf32> to vector<256x128xf32>
      %c0_17 = arith.constant 0 : index
      %c0_18 = arith.constant 0 : index
      %47 = vector.load %arg6[%c0_17, %c0_18] : memref<256x128xf32, #tpu.memory_space<vmem>>, vector<256x128xf32>
      tpu.vector_store %arg6[%c0_17, %c0_18], %46 {strides = array<i32>} : memref<256x128xf32, #tpu.memory_space<vmem>>, vector<256x128xf32>,
    } else {
    }
    return
  }
  func.func @transform_0(%arg0: i32, %arg1: i32) -> (i32, i32) {
    %c0_i32 = arith.constant 0 : i32
    %c0_i32_0 = arith.constant 0 : i32
    return %arg1, %c0_i32 : i32, i32
  }
  func.func @transform_1(%arg0: i32, %arg1: i32) -> (i32, i32, i32) {
    %c0_i32 = arith.constant 0 : i32
    %c0_i32_0 = arith.constant 0 : i32
    %c0_i32_1 = arith.constant 0 : i32
    %c0_i32_2 = arith.constant 0 : i32
    return %c0_i32, %c0_i32_0, %c0_i32_1 : i32, i32, i32
  }
  func.func @transform_2(%arg0: i32, %arg1: i32) -> (i32, i32) {
    %c0_i32 = arith.constant 0 : i32
    %c0_i32_0 = arith.constant 0 : i32
    %c0_i32_1 = arith.constant 0 : i32
    return %c0_i32, %c0_i32_0 : i32, i32
  }
  func.func @transform_3(%arg0: i32, %arg1: i32) -> (i32, i32) {
    %c0_i32 = arith.constant 0 : i32
    %c0_i32_0 = arith.constant 0 : i32
    return %arg1, %c0_i32 : i32, i32
  }
  func.func @transform_4(%arg0: i32, %arg1: i32) -> (i32, i32) {
    %c0_i32 = arith.constant 0 : i32
    %c0_i32_0 = arith.constant 0 : i32
    return %arg1, %c0_i32 : i32, i32
  }
}

</mosaic_0001>

<llo_original>
// kernel: vae_forward.1
$region0: #{vae_forward.1}
  #allocation0 [shape = 'u32[]', space=smem, size = 0x4, offset = 0x4, fixed_abs, tag = 'smem constant byte address 0x4 - core index']
  #allocation1 [shape = 'u32[144,128]{1,0:T(1,128)}', space=vmem, size = 0x12000, scoped, tag = 'internal scratch']
  #allocation2 [shape = 'f32[2,256,128]{2,1,0:T(8,128)}', space=vmem, size = 0x40000, scoped, tag = 'scratch operand']
  #allocation3 [shape = 'f32[2,256,128]{2,1,0:T(8,128)}', space=vmem, size = 0x40000, scoped, tag = 'scratch operand']
  #allocation4 [shape = 'f32[2,128]{1,0:T(2,128)}', space=vmem, size = 0x400, scoped, tag = 'scratch operand']
  #allocation5 [shape = 'f32[2,128]{1,0:T(2,128)}', space=vmem, size = 0x400, scoped, tag = 'scratch operand']
  %s0 = inlined_call_operand.vmem [shape: f32[512,128], index: 0, kind: input, shape index: {}]
  %s1 = inlined_call_operand.vmem [shape: bf16[6,128,128], index: 1, kind: input, shape index: {}]
  %s2 = inlined_call_operand.vmem [shape: f32[16,128], index: 2, kind: input, shape index: {}]
  %s3 = inlined_call_operand.vmem [shape: f32[512,128], index: 3, kind: output, shape index: {0}]
  %s4 = inlined_call_operand.vmem [shape: f32[512,128], index: 4, kind: output, shape index: {1}]
  %5 = xla_tuple %s3, %s4
  %s6 = sld [smem:[#allocation0]]
  $region85: #{vae_forward.1} parent=0
    _
  %s8 = ssub.s32 1, %s6
  %s9 = scalar_select 0, %s8, %s6
  loop: start=0, step=1, limit=14
  $region2: #{vae_forward.1} parent=0 // loop_pre_header
    _
  $region3: #{vae_forward.1} parent=0 // loop_header
    %s11 = sphi 0, %s15
    %p12 = scmp.ge.s32.totalorder %s11, 14
    %s18 = sphi 0, %s30
    %s19 = sphi 0, %s26
    %s20 = sphi 0, %s18
    %s21 = sphi 0, %s19
    %s22 = sphi 0, %s20
    %s23 = sphi 0, %s21
    %s33 = sphi 0, %s35
    %s36 = sphi 0, %s33
    %s37 = sphi 0, %s36
    %s53 = sphi 0, %s37
    %s57 = sphi 0, %s57
    %s59 = sphi 0, %s57
    %s60 = sphi 0, %s59
    %s74 = sphi 0, %s60
    %s78 = sphi 0, %s78
    %s80 = sphi 0, %s78
    %s81 = sphi 0, %s80
    %s95 = sphi 0, %s81
    %s101 = sphi 0, %s103
    %s104 = sphi 0, %s101
    %s105 = sphi 0, %s104
    %s121 = sphi 0, %s105
    %s127 = sphi 0, %s129
    %s130 = sphi 0, %s127
    %s131 = sphi 0, %s130
    %s147 = sphi 0, %s131
  $region4: #{vae_forward.1} parent=0 // loop_header_branch
    %14 = sbr.rel (%p12) target = $region8
  $region5: #{vae_forward.1} parent=0 // loop_body
    %s16 = ssub.s32 %s11, 1
    %s17 = ssub.s32 %s11, 2
    %s24 = sadd.s32 1, %s19
    %p25 = scmp.ge.s32.totalorder %s24, 2
    %s26 = scalar_select %p25, 0, %s24
    %s27 = sadd.s32 1, %s18
    %s28 = scalar_select %p25, %s27, %s18
    %p29 = scmp.ge.s32.totalorder %s28, 6
    %s30 = scalar_select %p29, 0, %s28
    %s31 = ssub.s32 %s19, %s26
    %p32 = scmp.eq.s32.totalorder %s31, 0
    %s34 = sadd.s32 %s33, 1
    %s35 = scalar_select %p32, %s33, %s34
    %p38 = pneg %p32
    %p39 = scmp.eq.s32.totalorder %s11, 11
    %p40 = por %p38, %p39
    %p41 = scmp.ne.s32.totalorder %s33, %s36
    %p42 = scmp.eq.s32.totalorder %s11, 0
    %p43 = por %p41, %p42
    %p44 = scmp.ne.s32.totalorder %s33, %s36
    %p45 = scmp.eq.s32.totalorder %s16, 11
    %p46 = por %p44, %p45
    %p47 = scmp.ne.s32.totalorder %s36, %s37
    %p48 = scmp.eq.s32.totalorder %s16, 0
    %p49 = por %p47, %p48
    %p50 = scmp.ne.s32.totalorder %s36, %s37
    %p51 = scmp.eq.s32.totalorder %s17, 11
    %p52 = por %p50, %p51
    %p54 = scmp.ne.s32.totalorder %s37, %s53
    %p55 = scmp.eq.s32.totalorder %s17, 0
    %p56 = por %p54, %p55
    %s58 = sadd.s32 %s57, 1
    %p61 = scmp.eq.s32.totalorder %s11, 11
    %p62 = scmp.ne.s32.totalorder %s57, %s59
    %p63 = scmp.eq.s32.totalorder %s11, 0
    %p64 = por %p62, %p63
    %p65 = scmp.ne.s32.totalorder %s57, %s59
    %p66 = scmp.eq.s32.totalorder %s16, 11
    %p67 = por %p65, %p66
    %p68 = scmp.ne.s32.totalorder %s59, %s60
    %p69 = scmp.eq.s32.totalorder %s16, 0
    %p70 = por %p68, %p69
    %p71 = scmp.ne.s32.totalorder %s59, %s60
    %p72 = scmp.eq.s32.totalorder %s17, 11
    %p73 = por %p71, %p72
    %p75 = scmp.ne.s32.totalorder %s60, %s74
    %p76 = scmp.eq.s32.totalorder %s17, 0
    %p77 = por %p75, %p76
    %s79 = sadd.s32 %s78, 1
    %p82 = scmp.eq.s32.totalorder %s11, 11
    %p83 = scmp.ne.s32.totalorder %s78, %s80
    %p84 = scmp.eq.s32.totalorder %s11, 0
    %p85 = por %p83, %p84
    %p86 = scmp.ne.s32.totalorder %s78, %s80
    %p87 = scmp.eq.s32.totalorder %s16, 11
    %p88 = por %p86, %p87
    %p89 = scmp.ne.s32.totalorder %s80, %s81
    %p90 = scmp.eq.s32.totalorder %s16, 0
    %p91 = por %p89, %p90
    %p92 = scmp.ne.s32.totalorder %s80, %s81
    %p93 = scmp.eq.s32.totalorder %s17, 11
    %p94 = por %p92, %p93
    %p96 = scmp.ne.s32.totalorder %s81, %s95
    %p97 = scmp.eq.s32.totalorder %s17, 0
    %p98 = por %p96, %p97
    %s99 = ssub.s32 %s19, %s26
    %p100 = scmp.eq.s32.totalorder %s99, 0
    %s102 = sadd.s32 %s101, 1
    %s103 = scalar_select %p100, %s101, %s102
    %p106 = pneg %p100
    %p107 = scmp.eq.s32.totalorder %s11, 11
    %p108 = por %p106, %p107
    %p109 = scmp.ne.s32.totalorder %s101, %s104
    %p110 = scmp.eq.s32.totalorder %s11, 0
    %p111 = por %p109, %p110
    %p112 = scmp.ne.s32.totalorder %s101, %s104
    %p113 = scmp.eq.s32.totalorder %s16, 11
    %p114 = por %p112, %p113
    %p115 = scmp.ne.s32.totalorder %s104, %s105
    %p116 = scmp.eq.s32.totalorder %s16, 0
    %p117 = por %p115, %p116
    %p118 = scmp.ne.s32.totalorder %s104, %s105
    %p119 = scmp.eq.s32.totalorder %s17, 11
    %p120 = por %p118, %p119
    %p122 = scmp.ne.s32.totalorder %s105, %s121
    %p123 = scmp.eq.s32.totalorder %s17, 0
    %p124 = por %p122, %p123
    %s125 = ssub.s32 %s19, %s26
    %p126 = scmp.eq.s32.totalorder %s125, 0
    %s128 = sadd.s32 %s127, 1
    %s129 = scalar_select %p126, %s127, %s128
    %p132 = pneg %p126
    %p133 = scmp.eq.s32.totalorder %s11, 11
    %p134 = por %p132, %p133
    %p135 = scmp.ne.s32.totalorder %s127, %s130
    %p136 = scmp.eq.s32.totalorder %s11, 0
    %p137 = por %p135, %p136
    %p138 = scmp.ne.s32.totalorder %s127, %s130
    %p139 = scmp.eq.s32.totalorder %s16, 11
    %p140 = por %p138, %p139
    %p141 = scmp.ne.s32.totalorder %s130, %s131
    %p142 = scmp.eq.s32.totalorder %s16, 0
    %p143 = por %p141, %p142
    %p144 = scmp.ne.s32.totalorder %s130, %s131
    %p145 = scmp.eq.s32.totalorder %s17, 11
    %p146 = por %p144, %p145
    %p148 = scmp.ne.s32.totalorder %s131, %s147
    %p149 = scmp.eq.s32.totalorder %s17, 0
    %p150 = por %p148, %p149
    %p151 = scmp.le.s32.totalorder 1, %s11
    %p152 = scmp.lt.s32.totalorder %s11, 13
    %p153 = pnand %p151, %p152
    %p154 = pneg %p153
    // Predicated region
    $region9: #{vae_forward.1} parent=5 // pred_check
      _
    $region10: #{vae_forward.1} parent=5 // pred_check_branch
      %156 = sbr.rel (%p153) target = $region12
    $region11: #{vae_forward.1} parent=5 // pred_region
      %s157 = ssub.s32 %s11, 1
      // Predicated region
      $region13: #{vae_forward.1} parent=11 // pred_check
        %p158 = pneg %p70
      $region14: #{vae_forward.1} parent=11 // pred_check_branch
        %160 = sbr.rel (%p158) target = $region16
      $region15: #{vae_forward.1} parent=11 // pred_region
        _
      $region16: #{vae_forward.1} parent=11 // pred_fallthru
        _
      // Predicated region
      $region17: #{vae_forward.1} parent=11 // pred_check
        %p161 = pneg %p91
      $region18: #{vae_forward.1} parent=11 // pred_check_branch
        %163 = sbr.rel (%p161) target = $region20
      $region19: #{vae_forward.1} parent=11 // pred_region
        _
      $region20: #{vae_forward.1} parent=11 // pred_fallthru
        _
    $region12: #{vae_forward.1} parent=5 // pred_fallthru
      _
    %p164 = scmp.lt.s32.totalorder %s11, 12
    // Predicated region
    $region21: #{vae_forward.1} parent=5 // pred_check
      %p165 = pneg %p164
    $region22: #{vae_forward.1} parent=5 // pred_check_branch
      %167 = sbr.rel (%p165) target = $region24
    $region23: #{vae_forward.1} parent=5 // pred_region
      // Predicated region
      $region25: #{vae_forward.1} parent=23 // pred_check
        %p168 = pneg %p43
      $region26: #{vae_forward.1} parent=23 // pred_check_branch
        %170 = sbr.rel (%p168) target = $region28
      $region27: #{vae_forward.1} parent=23 // pred_region
        %s171 = smul.u32 32, %s19
        %p172 = scmp.lt.s32.totalorder %s171, 63
        %s173 = scalar_select %p172, %s171, 63
        %s174 = smul.addr %s173, 8
        %s175 = scalar_lea.vmem %s0, %s174
        %s176 = smul.u32 32, %s19
      $region28: #{vae_forward.1} parent=23 // pred_fallthru
        _
    $region24: #{vae_forward.1} parent=5 // pred_fallthru
      _
    %p177 = scmp.le.s32.totalorder 1, %s11
    %p178 = scmp.lt.s32.totalorder %s11, 13
    %p179 = pnand %p177, %p178
    %p180 = pneg %p179
    // Predicated region
    $region29: #{vae_forward.1} parent=5 // pred_check
      _
    $region30: #{vae_forward.1} parent=5 // pred_check_branch
      %182 = sbr.rel (%p179) target = $region32
    $region31: #{vae_forward.1} parent=5 // pred_region
      %s183 = ssub.s32 %s11, 1
      %s184 = smul.u32 32, %s21
      %p185 = scmp.lt.s32.totalorder %s184, 63
      %s186 = scalar_select %p185, %s184, 63
      %s187 = smul.addr %s186, 8
      %s188 = scalar_lea.vmem %s0, %s187
      %p189 = pneg %p49
      %p190 = pneg %p46
      %p191 = pneg %p70
      %p192 = pneg %p67
      %p193 = pneg %p91
      %p194 = pneg %p88
      %p195 = pneg %p117
      %p196 = pneg %p114
      %s197 = smul.u32 32, %s21
      %p198 = scmp.lt.s32.totalorder %s197, 63
      %s199 = scalar_select %p198, %s197, 63
      %s200 = smul.addr %s199, 8
      %s201 = scalar_lea.vmem %s3, %s200
      %p202 = pneg %p143
      %p203 = pneg %p140
      %s204 = smul.u32 32, %s21
      %p205 = scmp.lt.s32.totalorder %s204, 63
      %s206 = scalar_select %p205, %s204, 63
      %s207 = smul.addr %s206, 8
      %s208 = scalar_lea.vmem %s4, %s207
      %s209 = smul.u32 32, %s21
      %p210 = scmp.lt.s32.totalorder %s209, 63
      %s211 = scalar_select %p210, %s209, 63
      %s212 = smul.addr %s211, 8
      %s213 = scalar_lea.vmem %s0, %s212
      %s214 = smul.u32 32, %s21
      %s215 = smul.u32 32, %s21
      %p216 = scmp.lt.s32.totalorder %s215, 63
      %s217 = scalar_select %p216, %s215, 63
      %s218 = smul.addr %s217, 8
      %s219 = scalar_lea.vmem %s3, %s218
      %s220 = smul.u32 32, %s21
      %s221 = smul.u32 32, %s21
      %p222 = scmp.lt.s32.totalorder %s221, 63
      %s223 = scalar_select %p222, %s221, 63
      %s224 = smul.addr %s223, 8
      %s225 = scalar_lea.vmem %s4, %s224
      %s226 = smul.u32 32, %s21
      %v228 = vld [vmem:[%s2] sm:$0xff]
      %v229 = vld [vmem:[%s2 + $0x8] sm:$0xff]
      %p230 = scmp.eq.s32.totalorder %s21, 0
      // Predicated region
      $region33: #{vae_forward.1} parent=31 // pred_check
        %p231 = pneg %p230
      $region34: #{vae_forward.1} parent=31 // pred_check_branch
        %233 = sbr.rel (%p231) target = $region36
      $region35: #{vae_forward.1} parent=31 // pred_region
        %p234 = scmp.gt.s32.totalorder %s20, 0
        // Predicated region
        $region37: #{vae_forward.1} parent=35 // pred_check
          %p235 = pneg %p234
        $region38: #{vae_forward.1} parent=35 // pred_check_branch
          %237 = sbr.rel (%p235) target = $region40
        $region39: #{vae_forward.1} parent=35 // pred_region
          %v238 = vld [vmem:[#allocation4] sm:$0x3]
          %v239 = vmul.f32 %v238, 0.001953125
          %v240 = vmul.f32 %v239, %v239
          %v242 = vrot.slane %v240, 7
          %v244 = vsub.f32 %v239, %v242
          %v245 = vadd.f32 %v244, 1e-05
          %v246 = vrsqrt.pop %v245
          %vm247 = vcmask 1040384
          %v248 = vsel %vm247, %v239, %v246
          %249 = vst [vmem:[#allocation5] sm:$0x3] %v248
        $region40: #{vae_forward.1} parent=35 // pred_fallthru
          _
        %250 = vst [vmem:[#allocation4] sm:$0x3] 0.0
      $region36: #{vae_forward.1} parent=31 // pred_fallthru
        _
      %p251 = scmp.eq.s32.totalorder %s20, 0
      // Predicated region
      $region41: #{vae_forward.1} parent=31 // pred_check
        %p252 = pneg %p251
      $region42: #{vae_forward.1} parent=31 // pred_check_branch
        %254 = sbr.rel (%p252) target = $region44
      $region43: #{vae_forward.1} parent=31 // pred_region
        %v255 = vld [vmem:[%s213] sm:$0xff]
        %v256 = vld [vmem:[%s213 + $0x8] sm:$0xff]
        %v257 = vld [vmem:[%s213 + $0x10] sm:$0xff]
        %v258 = vld [vmem:[%s213 + $0x18] sm:$0xff]
        %v259 = vld [vmem:[%s213 + $0x20] sm:$0xff]
        %v260 = vld [vmem:[%s213 + $0x28] sm:$0xff]
        %v261 = vld [vmem:[%s213 + $0x30] sm:$0xff]
        %v262 = vld [vmem:[%s213 + $0x38] sm:$0xff]
        %v263 = vld [vmem:[%s213 + $0x40] sm:$0xff]
        %v264 = vld [vmem:[%s213 + $0x48] sm:$0xff]
        %v265 = vld [vmem:[%s213 + $0x50] sm:$0xff]
        %v266 = vld [vmem:[%s213 + $0x58] sm:$0xff]
        %v267 = vld [vmem:[%s213 + $0x60] sm:$0xff]
        %v268 = vld [vmem:[%s213 + $0x68] sm:$0xff]
        %v269 = vld [vmem:[%s213 + $0x70] sm:$0xff]
        %v270 = vld [vmem:[%s213 + $0x78] sm:$0xff]
        %v271 = vld [vmem:[%s213 + $0x80] sm:$0xff]
        %v272 = vld [vmem:[%s213 + $0x88] sm:$0xff]
        %v273 = vld [vmem:[%s213 + $0x90] sm:$0xff]
        %v274 = vld [vmem:[%s213 + $0x98] sm:$0xff]
        %v275 = vld [vmem:[%s213 + $0xa0] sm:$0xff]
        %v276 = vld [vmem:[%s213 + $0xa8] sm:$0xff]
        %v277 = vld [vmem:[%s213 + $0xb0] sm:$0xff]
        %v278 = vld [vmem:[%s213 + $0xb8] sm:$0xff]
        %v279 = vld [vmem:[%s213 + $0xc0] sm:$0xff]
        %v280 = vld [vmem:[%s213 + $0xc8] sm:$0xff]
        %v281 = vld [vmem:[%s213 + $0xd0] sm:$0xff]
        %v282 = vld [vmem:[%s213 + $0xd8] sm:$0xff]
        %v283 = vld [vmem:[%s213 + $0xe0] sm:$0xff]
        %v284 = vld [vmem:[%s213 + $0xe8] sm:$0xff]
        %v285 = vld [vmem:[%s213 + $0xf0] sm:$0xff]
        %v286 = vld [vmem:[%s213 + $0xf8] sm:$0xff]
        %v287 = vpack.c.bf16 %v256, %v255
        %v288 = vpack.c.bf16 %v258, %v257
        %v289 = vpack.c.bf16 %v260, %v259
        %v290 = vpack.c.bf16 %v262, %v261
        %v291 = vpack.c.bf16 %v264, %v263
        %v292 = vpack.c.bf16 %v266, %v265
        %v293 = vpack.c.bf16 %v268, %v267
        %v294 = vpack.c.bf16 %v270, %v269
        %v295 = vpack.c.bf16 %v272, %v271
        %v296 = vpack.c.bf16 %v274, %v273
        %v297 = vpack.c.bf16 %v276, %v275
        %v298 = vpack.c.bf16 %v278, %v277
        %v299 = vpack.c.bf16 %v280, %v279
        %v300 = vpack.c.bf16 %v282, %v281
        %v301 = vpack.c.bf16 %v284, %v283
        %v302 = vpack.c.bf16 %v286, %v285
        %v303 = vld [vmem:[%s1] sm:$0xf]
        %v304 = vld [vmem:[%s1 + $0x4] sm:$0xf]
        %v305 = vld [vmem:[%s1 + $0x8] sm:$0xf]
        %v306 = vld [vmem:[%s1 + $0xc] sm:$0xf]
        %v307 = vld [vmem:[%s1 + $0x10] sm:$0xf]
        %v308 = vld [vmem:[%s1 + $0x14] sm:$0xf]
        %v309 = vld [vmem:[%s1 + $0x18] sm:$0xf]
        %v310 = vld [vmem:[%s1 + $0x1c] sm:$0xf]
        %v311 = vld [vmem:[%s1 + $0x20] sm:$0xf]
        %v312 = vld [vmem:[%s1 + $0x24] sm:$0xf]
        %v313 = vld [vmem:[%s1 + $0x28] sm:$0xf]
        %v314 = vld [vmem:[%s1 + $0x2c] sm:$0xf]
        %v315 = vld [vmem:[%s1 + $0x30] sm:$0xf]
        %v316 = vld [vmem:[%s1 + $0x34] sm:$0xf]
        %v317 = vld [vmem:[%s1 + $0x38] sm:$0xf]
        %v318 = vld [vmem:[%s1 + $0x3c] sm:$0xf]
        %v319 = vlaneseq
        %v320 = vshrl.u32 %v319, 7
        %v321 = vsub.s32 0, %v320
        %v322 = vrot.slane %v228, %v321
        %v339 = vunpack.c.l.b16 %v303
        %v340 = vunpack.c.l.b16 %v304
        %v341 = vunpack.c.l.b16 %v305
        %v342 = vunpack.c.l.b16 %v306
        %v343 = vunpack.c.l.b16 %v307
        %v344 = vunpack.c.l.b16 %v308
        %v345 = vunpack.c.l.b16 %v309
        %v346 = vunpack.c.l.b16 %v310
        %v347 = vunpack.c.l.b16 %v311
        %v348 = vunpack.c.l.b16 %v312
        %v349 = vunpack.c.l.b16 %v313
        %v350 = vunpack.c.l.b16 %v314
        %v351 = vunpack.c.l.b16 %v315
        %v352 = vunpack.c.l.b16 %v316
        %v353 = vunpack.c.l.b16 %v317
        %v354 = vunpack.c.l.b16 %v318
        %v355 = vpack.c.b16 %v340, %v339
        %v356 = vpack.c.b16 %v342, %v341
        %v357 = vpack.c.b16 %v344, %v343
        %v358 = vpack.c.b16 %v346, %v345
        %v359 = vpack.c.b16 %v348, %v347
        %v360 = vpack.c.b16 %v350, %v349
        %v361 = vpack.c.b16 %v352, %v351
        %v362 = vpack.c.b16 %v354, %v353
        %371 = vmatprep.subr.bf16.mxu0 0
        %372 = vmatpush1.bf16.msra.mxu0 %v362
        %373 = vmatprep.subr.bf16.mxu0 0
        %374 = vmatpush1.bf16.msra.mxu0 %v361
        %375 = vmatprep.subr.bf16.mxu0 0
        %376 = vmatpush1.bf16.msra.mxu0 %v360
        %377 = vmatprep.subr.bf16.mxu0 0
        %378 = vmatpush1.bf16.msra.mxu0 %v359
        %379 = vmatprep.subr.bf16.mxu0 0
        %380 = vmatpush1.bf16.msra.mxu0 %v358
        %381 = vmatprep.subr.bf16.mxu0 0
        %382 = vmatpush1.bf16.msra.mxu0 %v357
        %383 = vmatprep.subr.bf16.mxu0 0
        %384 = vmatpush1.bf16.msra.mxu0 %v356
        %385 = vmatprep.subr.bf16.mxu0 0
        %386 = vmatpush1.bf16.msra.mxu0 %v355
        %387 = vmatprep.subr.bf16.mxu0 0
        %388 = vmatpush2.bf16.msra.mxu0 0
        %389 = vmatprep.subr.bf16.mxu0 0
        %390 = vmatpush2.bf16.msra.mxu0 0
        %391 = vmatprep.subr.bf16.mxu0 0
        %392 = vmatpush2.bf16.msra.mxu0 0
        %393 = vmatprep.subr.bf16.mxu0 0
        %394 = vmatpush2.bf16.msra.mxu0 0
        %395 = vmatprep.subr.bf16.mxu0 0
        %396 = vmatpush2.bf16.msra.mxu0 0
        %397 = vmatprep.subr.bf16.mxu0 0
        %398 = vmatpush2.bf16.msra.mxu0 0
        %399 = vmatprep.subr.bf16.mxu0 0
        %400 = vmatpush2.bf16.msra.mxu0 0
        %401 = vmatprep.subr.bf16.mxu0 0
        %402 = vmatpush2.bf16.msra.mxu0 0
        %403 = vmatprep.mubr.bf16.mxu0 0
        %404 = vmatmul.mubr.bf16.gmra.mxu0 %v287
        %v405 = vpop.f32.mrf.mxu0
        %v406 = vadd.f32 %v322, %v405
        %v407 = vpop.f32.mrf.mxu0
        %v408 = vpop.f32.mrf.mxu0
        %v409 = vadd.f32 %v322, %v408
        %v410 = vpop.f32.mrf.mxu0
        %411 = vmatprep.mubr.bf16.mxu0 0
        %412 = vmatmul.mubr.bf16.gmra.mxu0 %v288
        %v413 = vpop.f32.mrf.mxu0
        %v414 = vadd.f32 %v322, %v413
        %v415 = vpop.f32.mrf.mxu0
        %v416 = vpop.f32.mrf.mxu0
        %v417 = vadd.f32 %v322, %v416
        %v418 = vpop.f32.mrf.mxu0
        %419 = vmatprep.mubr.bf16.mxu0 0
        %420 = vmatmul.mubr.bf16.gmra.mxu0 %v289
        %v421 = vpop.f32.mrf.mxu0
        %v422 = vadd.f32 %v322, %v421
        %v423 = vpop.f32.mrf.mxu0
        %v424 = vpop.f32.mrf.mxu0
        %v425 = vadd.f32 %v322, %v424
        %v426 = vpop.f32.mrf.mxu0
        %427 = vmatprep.mubr.bf16.mxu0 0
        %428 = vmatmul.mubr.bf16.gmra.mxu0 %v290
        %v429 = vpop.f32.mrf.mxu0
        %v430 = vadd.f32 %v322, %v429
        %v431 = vpop.f32.mrf.mxu0
        %v432 = vpop.f32.mrf.mxu0
        %v433 = vadd.f32 %v322, %v432
        %v434 = vpop.f32.mrf.mxu0
        %435 = vmatprep.mubr.bf16.mxu0 0
        %436 = vmatmul.mubr.bf16.gmra.mxu0 %v291
        %v437 = vpop.f32.mrf.mxu0
        %v438 = vadd.f32 %v322, %v437
        %v439 = vpop.f32.mrf.mxu0
        %v440 = vpop.f32.mrf.mxu0
        %v441 = vadd.f32 %v322, %v440
        %v442 = vpop.f32.mrf.mxu0
        %443 = vmatprep.mubr.bf16.mxu0 0
        %444 = vmatmul.mubr.bf16.gmra.mxu0 %v292
        %v445 = vpop.f32.mrf.mxu0
        %v446 = vadd.f32 %v322, %v445
        %v447 = vpop.f32.mrf.mxu0
        %v448 = vpop.f32.mrf.mxu0
        %v449 = vadd.f32 %v322, %v448
        %v450 = vpop.f32.mrf.mxu0
        %451 = vmatprep.mubr.bf16.mxu0 0
        %452 = vmatmul.mubr.bf16.gmra.mxu0 %v293
        %v453 = vpop.f32.mrf.mxu0
        %v454 = vadd.f32 %v322, %v453
        %v455 = vpop.f32.mrf.mxu0
        %v456 = vpop.f32.mrf.mxu0
        %v457 = vadd.f32 %v322, %v456
        %v458 = vpop.f32.mrf.mxu0
        %459 = vmatprep.mubr.bf16.mxu0 0
        %460 = vmatmul.mubr.bf16.gmra.mxu0 %v294
        %v461 = vpop.f32.mrf.mxu0
        %v462 = vadd.f32 %v322, %v461
        %v463 = vpop.f32.mrf.mxu0
        %v464 = vpop.f32.mrf.mxu0
        %v465 = vadd.f32 %v322, %v464
        %v466 = vpop.f32.mrf.mxu0
        %467 = vmatprep.mubr.bf16.mxu0 0
        %468 = vmatmul.mubr.bf16.gmra.mxu0 %v295
        %v469 = vpop.f32.mrf.mxu0
        %v470 = vadd.f32 %v322, %v469
        %v471 = vpop.f32.mrf.mxu0
        %v472 = vpop.f32.mrf.mxu0
        %v473 = vadd.f32 %v322, %v472
        %v474 = vpop.f32.mrf.mxu0
        %475 = vmatprep.mubr.bf16.mxu0 0
        %476 = vmatmul.mubr.bf16.gmra.mxu0 %v296
        %v477 = vpop.f32.mrf.mxu0
        %v478 = vadd.f32 %v322, %v477
        %v479 = vpop.f32.mrf.mxu0
        %v480 = vpop.f32.mrf.mxu0
        %v481 = vadd.f32 %v322, %v480
        %v482 = vpop.f32.mrf.mxu0
        %483 = vmatprep.mubr.bf16.mxu0 0
        %484 = vmatmul.mubr.bf16.gmra.mxu0 %v297
        %v485 = vpop.f32.mrf.mxu0
        %v486 = vadd.f32 %v322, %v485
        %v487 = vpop.f32.mrf.mxu0
        %v488 = vpop.f32.mrf.mxu0
        %v489 = vadd.f32 %v322, %v488
        %v490 = vpop.f32.mrf.mxu0
        %491 = vmatprep.mubr.bf16.mxu0 0
        %492 = vmatmul.mubr.bf16.gmra.mxu0 %v298
        %v493 = vpop.f32.mrf.mxu0
        %v494 = vadd.f32 %v322, %v493
        %v495 = vpop.f32.mrf.mxu0
        %v496 = vpop.f32.mrf.mxu0
        %v497 = vadd.f32 %v322, %v496
        %v498 = vpop.f32.mrf.mxu0
        %499 = vmatprep.mubr.bf16.mxu0 0
        %500 = vmatmul.mubr.bf16.gmra.mxu0 %v299
        %v501 = vpop.f32.mrf.mxu0
        %v502 = vadd.f32 %v322, %v501
        %v503 = vpop.f32.mrf.mxu0
        %v504 = vpop.f32.mrf.mxu0
        %v505 = vadd.f32 %v322, %v504
        %v506 = vpop.f32.mrf.mxu0
        %507 = vmatprep.mubr.bf16.mxu0 0
        %508 = vmatmul.mubr.bf16.gmra.mxu0 %v300
        %v509 = vpop.f32.mrf.mxu0
        %v510 = vadd.f32 %v322, %v509
        %v511 = vpop.f32.mrf.mxu0
        %v512 = vpop.f32.mrf.mxu0
        %v513 = vadd.f32 %v322, %v512
        %v514 = vpop.f32.mrf.mxu0
        %515 = vmatprep.mubr.bf16.mxu0 0
        %516 = vmatmul.mubr.bf16.gmra.mxu0 %v301
        %v517 = vpop.f32.mrf.mxu0
        %v518 = vadd.f32 %v322, %v517
        %v519 = vpop.f32.mrf.mxu0
        %v520 = vpop.f32.mrf.mxu0
        %v521 = vadd.f32 %v322, %v520
        %v522 = vpop.f32.mrf.mxu0
        %523 = vmatprep.mubr.bf16.mxu0 0
        %524 = vmatmul.mubr.bf16.gmra.mxu0 %v302
        %v525 = vpop.f32.mrf.mxu0
        %v526 = vadd.f32 %v322, %v525
        %v527 = vpop.f32.mrf.mxu0
        %v528 = vpop.f32.mrf.mxu0
        %v529 = vadd.f32 %v322, %v528
        %v530 = vpop.f32.mrf.mxu0
        %531 = vdwg.mxu0
        %s532 = smul.u32 %s21, 256
        %s533 = scalar_lea.vmem [#allocation2], %s532
        %534 = vst [vmem:[%s533] sm:$0xff] %v406
        %535 = vst [vmem:[%s533 + $0x8] sm:$0xff] %v409
        %536 = vst [vmem:[%s533 + $0x10] sm:$0xff] %v414
        %537 = vst [vmem:[%s533 + $0x18] sm:$0xff] %v417
        %538 = vst [vmem:[%s533 + $0x20] sm:$0xff] %v422
        %539 = vst [vmem:[%s533 + $0x28] sm:$0xff] %v425
        %540 = vst [vmem:[%s533 + $0x30] sm:$0xff] %v430
        %541 = vst [vmem:[%s533 + $0x38] sm:$0xff] %v433
        %542 = vst [vmem:[%s533 + $0x40] sm:$0xff] %v438
        %543 = vst [vmem:[%s533 + $0x48] sm:$0xff] %v441
        %544 = vst [vmem:[%s533 + $0x50] sm:$0xff] %v446
        %545 = vst [vmem:[%s533 + $0x58] sm:$0xff] %v449
        %546 = vst [vmem:[%s533 + $0x60] sm:$0xff] %v454
        %547 = vst [vmem:[%s533 + $0x68] sm:$0xff] %v457
        %548 = vst [vmem:[%s533 + $0x70] sm:$0xff] %v462
        %549 = vst [vmem:[%s533 + $0x78] sm:$0xff] %v465
        %550 = vst [vmem:[%s533 + $0x80] sm:$0xff] %v470
        %551 = vst [vmem:[%s533 + $0x88] sm:$0xff] %v473
        %552 = vst [vmem:[%s533 + $0x90] sm:$0xff] %v478
        %553 = vst [vmem:[%s533 + $0x98] sm:$0xff] %v481
        %554 = vst [vmem:[%s533 + $0xa0] sm:$0xff] %v486
        %555 = vst [vmem:[%s533 + $0xa8] sm:$0xff] %v489
        %556 = vst [vmem:[%s533 + $0xb0] sm:$0xff] %v494
        %557 = vst [vmem:[%s533 + $0xb8] sm:$0xff] %v497
        %558 = vst [vmem:[%s533 + $0xc0] sm:$0xff] %v502
        %559 = vst [vmem:[%s533 + $0xc8] sm:$0xff] %v505
        %560 = vst [vmem:[%s533 + $0xd0] sm:$0xff] %v510
        %561 = vst [vmem:[%s533 + $0xd8] sm:$0xff] %v513
        %562 = vst [vmem:[%s533 + $0xe0] sm:$0xff] %v518
        %563 = vst [vmem:[%s533 + $0xe8] sm:$0xff] %v521
        %564 = vst [vmem:[%s533 + $0xf0] sm:$0xff] %v526
        %565 = vst [vmem:[%s533 + $0xf8] sm:$0xff] %v529
        %v566 = vadd.f32 %v406, %v409
        %v567 = vadd.f32 %v566, %v414
        %v568 = vadd.f32 %v567, %v417
        %v569 = vadd.f32 %v568, %v422
        %v570 = vadd.f32 %v569, %v425
        %v571 = vadd.f32 %v570, %v430
        %v572 = vadd.f32 %v571, %v433
        %v573 = vadd.f32 %v572, %v438
        %v574 = vadd.f32 %v573, %v441
        %v575 = vadd.f32 %v574, %v446
        %v576 = vadd.f32 %v575, %v449
        %v577 = vadd.f32 %v576, %v454
        %v578 = vadd.f32 %v577, %v457
        %v579 = vadd.f32 %v578, %v462
        %v580 = vadd.f32 %v579, %v465
        %v581 = vadd.f32 %v580, %v470
        %v582 = vadd.f32 %v581, %v473
        %v583 = vadd.f32 %v582, %v478
        %v584 = vadd.f32 %v583, %v481
        %v585 = vadd.f32 %v584, %v486
        %v586 = vadd.f32 %v585, %v489
        %v587 = vadd.f32 %v586, %v494
        %v588 = vadd.f32 %v587, %v497
        %v589 = vadd.f32 %v588, %v502
        %v590 = vadd.f32 %v589, %v505
        %v591 = vadd.f32 %v590, %v510
        %v592 = vadd.f32 %v591, %v513
        %v593 = vadd.f32 %v592, %v518
        %v594 = vadd.f32 %v593, %v521
        %v595 = vadd.f32 %v594, %v526
        %v596 = vadd.f32 %v595, %v529
        %v597 = vrot.slane %v596, 4
        %v598 = vadd.f32 %v596, %v597
        %v599 = vrot.slane %v598, 2
        %v600 = vadd.f32 %v598, %v599
        %v601 = vrot.slane %v600, 1
        %v602 = vadd.f32 %v600, %v601
        %v603 = vmul.f32 %v406, %v406
        %v604 = vmul.f32 %v409, %v409
        %v605 = vmul.f32 %v414, %v414
        %v606 = vmul.f32 %v417, %v417
        %v607 = vmul.f32 %v422, %v422
        %v608 = vmul.f32 %v425, %v425
        %v609 = vmul.f32 %v430, %v430
        %v610 = vmul.f32 %v433, %v433
        %v611 = vmul.f32 %v438, %v438
        %v612 = vmul.f32 %v441, %v441
        %v613 = vmul.f32 %v446, %v446
        %v614 = vmul.f32 %v449, %v449
        %v615 = vmul.f32 %v454, %v454
        %v616 = vmul.f32 %v457, %v457
        %v617 = vmul.f32 %v462, %v462
        %v618 = vmul.f32 %v465, %v465
        %v619 = vmul.f32 %v470, %v470
        %v620 = vmul.f32 %v473, %v473
        %v621 = vmul.f32 %v478, %v478
        %v622 = vmul.f32 %v481, %v481
        %v623 = vmul.f32 %v486, %v486
        %v624 = vmul.f32 %v489, %v489
        %v625 = vmul.f32 %v494, %v494
        %v626 = vmul.f32 %v497, %v497
        %v627 = vmul.f32 %v502, %v502
        %v628 = vmul.f32 %v505, %v505
        %v629 = vmul.f32 %v510, %v510
        %v630 = vmul.f32 %v513, %v513
        %v631 = vmul.f32 %v518, %v518
        %v632 = vmul.f32 %v521, %v521
        %v633 = vmul.f32 %v526, %v526
        %v634 = vmul.f32 %v529, %v529
        %v635 = vadd.f32 %v603, %v604
        %v636 = vadd.f32 %v635, %v605
        %v637 = vadd.f32 %v636, %v606
        %v638 = vadd.f32 %v637, %v607
        %v639 = vadd.f32 %v638, %v608
        %v640 = vadd.f32 %v639, %v609
        %v641 = vadd.f32 %v640, %v610
        %v642 = vadd.f32 %v641, %v611
        %v643 = vadd.f32 %v642, %v612
        %v644 = vadd.f32 %v643, %v613
        %v645 = vadd.f32 %v644, %v614
        %v646 = vadd.f32 %v645, %v615
        %v647 = vadd.f32 %v646, %v616
        %v648 = vadd.f32 %v647, %v617
        %v649 = vadd.f32 %v648, %v618
        %v650 = vadd.f32 %v649, %v619
        %v651 = vadd.f32 %v650, %v620
        %v652 = vadd.f32 %v651, %v621
        %v653 = vadd.f32 %v652, %v622
        %v654 = vadd.f32 %v653, %v623
        %v655 = vadd.f32 %v654, %v624
        %v656 = vadd.f32 %v655, %v625
        %v657 = vadd.f32 %v656, %v626
        %v658 = vadd.f32 %v657, %v627
        %v659 = vadd.f32 %v658, %v628
        %v660 = vadd.f32 %v659, %v629
        %v661 = vadd.f32 %v660, %v630
        %v662 = vadd.f32 %v661, %v631
        %v663 = vadd.f32 %v662, %v632
        %v664 = vadd.f32 %v663, %v633
        %v665 = vadd.f32 %v664, %v634
        %v666 = vrot.slane %v665, 4
        %v667 = vadd.f32 %v665, %v666
        %v668 = vrot.slane %v667, 2
        %v669 = vadd.f32 %v667, %v668
        %v670 = vrot.slane %v669, 1
        %v671 = vadd.f32 %v669, %v670
        %v672 = vld [vmem:[#allocation4] sm:$0x3]
        %vm673 = vcmask 1040384
        %v674 = vsel %vm673, %v602, %v671
        %v675 = vadd.f32 %v672, %v674
        %676 = vst [vmem:[#allocation4] sm:$0x3] %v675
        %677 = vst [vmem:[%s219] sm:$0xff] 0.0
        %678 = vst [vmem:[%s219 + $0x8] sm:$0xff] 0.0
        %679 = vst [vmem:[%s219 + $0x10] sm:$0xff] 0.0
        %680 = vst [vmem:[%s219 + $0x18] sm:$0xff] 0.0
        %681 = vst [vmem:[%s219 + $0x20] sm:$0xff] 0.0
        %682 = vst [vmem:[%s219 + $0x28] sm:$0xff] 0.0
        %683 = vst [vmem:[%s219 + $0x30] sm:$0xff] 0.0
        %684 = vst [vmem:[%s219 + $0x38] sm:$0xff] 0.0
        %685 = vst [vmem:[%s219 + $0x40] sm:$0xff] 0.0
        %686 = vst [vmem:[%s219 + $0x48] sm:$0xff] 0.0
        %687 = vst [vmem:[%s219 + $0x50] sm:$0xff] 0.0
        %688 = vst [vmem:[%s219 + $0x58] sm:$0xff] 0.0
        %689 = vst [vmem:[%s219 + $0x60] sm:$0xff] 0.0
        %690 = vst [vmem:[%s219 + $0x68] sm:$0xff] 0.0
        %691 = vst [vmem:[%s219 + $0x70] sm:$0xff] 0.0
        %692 = vst [vmem:[%s219 + $0x78] sm:$0xff] 0.0
        %693 = vst [vmem:[%s219 + $0x80] sm:$0xff] 0.0
        %694 = vst [vmem:[%s219 + $0x88] sm:$0xff] 0.0
        %695 = vst [vmem:[%s219 + $0x90] sm:$0xff] 0.0
        %696 = vst [vmem:[%s219 + $0x98] sm:$0xff] 0.0
        %697 = vst [vmem:[%s219 + $0xa0] sm:$0xff] 0.0
        %698 = vst [vmem:[%s219 + $0xa8] sm:$0xff] 0.0
        %699 = vst [vmem:[%s219 + $0xb0] sm:$0xff] 0.0
        %700 = vst [vmem:[%s219 + $0xb8] sm:$0xff] 0.0
        %701 = vst [vmem:[%s219 + $0xc0] sm:$0xff] 0.0
        %702 = vst [vmem:[%s219 + $0xc8] sm:$0xff] 0.0
        %703 = vst [vmem:[%s219 + $0xd0] sm:$0xff] 0.0
        %704 = vst [vmem:[%s219 + $0xd8] sm:$0xff] 0.0
        %705 = vst [vmem:[%s219 + $0xe0] sm:$0xff] 0.0
        %706 = vst [vmem:[%s219 + $0xe8] sm:$0xff] 0.0
        %707 = vst [vmem:[%s219 + $0xf0] sm:$0xff] 0.0
        %708 = vst [vmem:[%s219 + $0xf8] sm:$0xff] 0.0
        %709 = vst [vmem:[%s225] sm:$0xff] 0.0
        %710 = vst [vmem:[%s225 + $0x8] sm:$0xff] 0.0
        %711 = vst [vmem:[%s225 + $0x10] sm:$0xff] 0.0
        %712 = vst [vmem:[%s225 + $0x18] sm:$0xff] 0.0
        %713 = vst [vmem:[%s225 + $0x20] sm:$0xff] 0.0
        %714 = vst [vmem:[%s225 + $0x28] sm:$0xff] 0.0
        %715 = vst [vmem:[%s225 + $0x30] sm:$0xff] 0.0
        %716 = vst [vmem:[%s225 + $0x38] sm:$0xff] 0.0
        %717 = vst [vmem:[%s225 + $0x40] sm:$0xff] 0.0
        %718 = vst [vmem:[%s225 + $0x48] sm:$0xff] 0.0
        %719 = vst [vmem:[%s225 + $0x50] sm:$0xff] 0.0
        %720 = vst [vmem:[%s225 + $0x58] sm:$0xff] 0.0
        %721 = vst [vmem:[%s225 + $0x60] sm:$0xff] 0.0
        %722 = vst [vmem:[%s225 + $0x68] sm:$0xff] 0.0
        %723 = vst [vmem:[%s225 + $0x70] sm:$0xff] 0.0
        %724 = vst [vmem:[%s225 + $0x78] sm:$0xff] 0.0
        %725 = vst [vmem:[%s225 + $0x80] sm:$0xff] 0.0
        %726 = vst [vmem:[%s225 + $0x88] sm:$0xff] 0.0
        %727 = vst [vmem:[%s225 + $0x90] sm:$0xff] 0.0
        %728 = vst [vmem:[%s225 + $0x98] sm:$0xff] 0.0
        %729 = vst [vmem:[%s225 + $0xa0] sm:$0xff] 0.0
        %730 = vst [vmem:[%s225 + $0xa8] sm:$0xff] 0.0
        %731 = vst [vmem:[%s225 + $0xb0] sm:$0xff] 0.0
        %732 = vst [vmem:[%s225 + $0xb8] sm:$0xff] 0.0
        %733 = vst [vmem:[%s225 + $0xc0] sm:$0xff] 0.0
        %734 = vst [vmem:[%s225 + $0xc8] sm:$0xff] 0.0
        %735 = vst [vmem:[%s225 + $0xd0] sm:$0xff] 0.0
        %736 = vst [vmem:[%s225 + $0xd8] sm:$0xff] 0.0
        %737 = vst [vmem:[%s225 + $0xe0] sm:$0xff] 0.0
        %738 = vst [vmem:[%s225 + $0xe8] sm:$0xff] 0.0
        %739 = vst [vmem:[%s225 + $0xf0] sm:$0xff] 0.0
        %740 = vst [vmem:[%s225 + $0xf8] sm:$0xff] 0.0
      $region44: #{vae_forward.1} parent=31 // pred_fallthru
        _
      %p741 = scmp.eq.s32.totalorder %s20, 1
      // Predicated region
      $region45: #{vae_forward.1} parent=31 // pred_check
        %p742 = pneg %p741
      $region46: #{vae_forward.1} parent=31 // pred_check_branch
        %744 = sbr.rel (%p742) target = $region48
      $region47: #{vae_forward.1} parent=31 // pred_region
        %s745 = smul.u32 %s21, 256
        %s746 = scalar_lea.vmem [#allocation2], %s745
        %v747 = vld [vmem:[%s746] sm:$0xff]
        %v748 = vld [vmem:[%s746 + $0x8] sm:$0xff]
        %v749 = vld [vmem:[%s746 + $0x10] sm:$0xff]
        %v750 = vld [vmem:[%s746 + $0x18] sm:$0xff]
        %v751 = vld [vmem:[%s746 + $0x20] sm:$0xff]
        %v752 = vld [vmem:[%s746 + $0x28] sm:$0xff]
        %v753 = vld [vmem:[%s746 + $0x30] sm:$0xff]
        %v754 = vld [vmem:[%s746 + $0x38] sm:$0xff]
        %v755 = vld [vmem:[%s746 + $0x40] sm:$0xff]
        %v756 = vld [vmem:[%s746 + $0x48] sm:$0xff]
        %v757 = vld [vmem:[%s746 + $0x50] sm:$0xff]
        %v758 = vld [vmem:[%s746 + $0x58] sm:$0xff]
        %v759 = vld [vmem:[%s746 + $0x60] sm:$0xff]
        %v760 = vld [vmem:[%s746 + $0x68] sm:$0xff]
        %v761 = vld [vmem:[%s746 + $0x70] sm:$0xff]
        %v762 = vld [vmem:[%s746 + $0x78] sm:$0xff]
        %v763 = vld [vmem:[%s746 + $0x80] sm:$0xff]
        %v764 = vld [vmem:[%s746 + $0x88] sm:$0xff]
        %v765 = vld [vmem:[%s746 + $0x90] sm:$0xff]
        %v766 = vld [vmem:[%s746 + $0x98] sm:$0xff]
        %v767 = vld [vmem:[%s746 + $0xa0] sm:$0xff]
        %v768 = vld [vmem:[%s746 + $0xa8] sm:$0xff]
        %v769 = vld [vmem:[%s746 + $0xb0] sm:$0xff]
        %v770 = vld [vmem:[%s746 + $0xb8] sm:$0xff]
        %v771 = vld [vmem:[%s746 + $0xc0] sm:$0xff]
        %v772 = vld [vmem:[%s746 + $0xc8] sm:$0xff]
        %v773 = vld [vmem:[%s746 + $0xd0] sm:$0xff]
        %v774 = vld [vmem:[%s746 + $0xd8] sm:$0xff]
        %v775 = vld [vmem:[%s746 + $0xe0] sm:$0xff]
        %v776 = vld [vmem:[%s746 + $0xe8] sm:$0xff]
        %v777 = vld [vmem:[%s746 + $0xf0] sm:$0xff]
        %v778 = vld [vmem:[%s746 + $0xf8] sm:$0xff]
        %v779 = vld [vmem:[#allocation5] sm:$0x3]
        %v780 = vlaneseq
        %v781 = vshrl.u32 %v780, 7
        %v782 = vsub.s32 0, %v781
        %v783 = vrot.slane %v779, %v782
        %v784 = vsub.f32 %v747, %v783
        %v785 = vsub.f32 %v748, %v783
        %v786 = vsub.f32 %v749, %v783
        %v787 = vsub.f32 %v750, %v783
        %v788 = vsub.f32 %v751, %v783
        %v789 = vsub.f32 %v752, %v783
        %v790 = vsub.f32 %v753, %v783
        %v791 = vsub.f32 %v754, %v783
        %v792 = vsub.f32 %v755, %v783
        %v793 = vsub.f32 %v756, %v783
        %v794 = vsub.f32 %v757, %v783
        %v795 = vsub.f32 %v758, %v783
        %v796 = vsub.f32 %v759, %v783
        %v797 = vsub.f32 %v760, %v783
        %v798 = vsub.f32 %v761, %v783
        %v799 = vsub.f32 %v762, %v783
        %v800 = vsub.f32 %v763, %v783
        %v801 = vsub.f32 %v764, %v783
        %v802 = vsub.f32 %v765, %v783
        %v803 = vsub.f32 %v766, %v783
        %v804 = vsub.f32 %v767, %v783
        %v805 = vsub.f32 %v768, %v783
        %v806 = vsub.f32 %v769, %v783
        %v807 = vsub.f32 %v770, %v783
        %v808 = vsub.f32 %v771, %v783
        %v809 = vsub.f32 %v772, %v783
        %v810 = vsub.f32 %v773, %v783
        %v811 = vsub.f32 %v774, %v783
        %v812 = vsub.f32 %v775, %v783
        %v813 = vsub.f32 %v776, %v783
        %v814 = vsub.f32 %v777, %v783
        %v815 = vsub.f32 %v778, %v783
        %v816 = vlaneseq
        %v817 = vshrl.u32 %v816, 7
        %v818 = vsub.s32 1, %v817
        %v819 = vrot.slane %v779, %v818
        %v820 = vmul.f32 %v784, %v819
        %v821 = vmul.f32 %v785, %v819
        %v822 = vmul.f32 %v786, %v819
        %v823 = vmul.f32 %v787, %v819
        %v824 = vmul.f32 %v788, %v819
        %v825 = vmul.f32 %v789, %v819
        %v826 = vmul.f32 %v790, %v819
        %v827 = vmul.f32 %v791, %v819
        %v828 = vmul.f32 %v792, %v819
        %v829 = vmul.f32 %v793, %v819
        %v830 = vmul.f32 %v794, %v819
        %v831 = vmul.f32 %v795, %v819
        %v832 = vmul.f32 %v796, %v819
        %v833 = vmul.f32 %v797, %v819
        %v834 = vmul.f32 %v798, %v819
        %v835 = vmul.f32 %v799, %v819
        %v836 = vmul.f32 %v800, %v819
        %v837 = vmul.f32 %v801, %v819
        %v838 = vmul.f32 %v802, %v819
        %v839 = vmul.f32 %v803, %v819
        %v840 = vmul.f32 %v804, %v819
        %v841 = vmul.f32 %v805, %v819
        %v842 = vmul.f32 %v806, %v819
        %v843 = vmul.f32 %v807, %v819
        %v844 = vmul.f32 %v808, %v819
        %v845 = vmul.f32 %v809, %v819
        %v846 = vmul.f32 %v810, %v819
        %v847 = vmul.f32 %v811, %v819
        %v848 = vmul.f32 %v812, %v819
        %v849 = vmul.f32 %v813, %v819
        %v850 = vmul.f32 %v814, %v819
        %v851 = vmul.f32 %v815, %v819
        %v852 = vlaneseq
        %v853 = vshrl.u32 %v852, 7
        %v854 = vsub.s32 1, %v853
        %v855 = vrot.slane %v228, %v854
        %v856 = vmul.f32 %v820, %v855
        %v857 = vmul.f32 %v821, %v855
        %v858 = vmul.f32 %v822, %v855
        %v859 = vmul.f32 %v823, %v855
        %v860 = vmul.f32 %v824, %v855
        %v861 = vmul.f32 %v825, %v855
        %v862 = vmul.f32 %v826, %v855
        %v863 = vmul.f32 %v827, %v855
        %v864 = vmul.f32 %v828, %v855
        %v865 = vmul.f32 %v829, %v855
        %v866 = vmul.f32 %v830, %v855
        %v867 = vmul.f32 %v831, %v855
        %v868 = vmul.f32 %v832, %v855
        %v869 = vmul.f32 %v833, %v855
        %v870 = vmul.f32 %v834, %v855
        %v871 = vmul.f32 %v835, %v855
        %v872 = vmul.f32 %v836, %v855
        %v873 = vmul.f32 %v837, %v855
        %v874 = vmul.f32 %v838, %v855
        %v875 = vmul.f32 %v839, %v855
        %v876 = vmul.f32 %v840, %v855
        %v877 = vmul.f32 %v841, %v855
        %v878 = vmul.f32 %v842, %v855
        %v879 = vmul.f32 %v843, %v855
        %v880 = vmul.f32 %v844, %v855
        %v881 = vmul.f32 %v845, %v855
        %v882 = vmul.f32 %v846, %v855
        %v883 = vmul.f32 %v847, %v855
        %v884 = vmul.f32 %v848, %v855
        %v885 = vmul.f32 %v849, %v855
        %v886 = vmul.f32 %v850, %v855
        %v887 = vmul.f32 %v851, %v855
        %v888 = vlaneseq
        %v889 = vshrl.u32 %v888, 7
        %v890 = vsub.s32 2, %v889
        %v891 = vrot.slane %v228, %v890
        %v892 = vadd.f32 %v856, %v891
        %v893 = vadd.f32 %v857, %v891
        %v894 = vadd.f32 %v858, %v891
        %v895 = vadd.f32 %v859, %v891
        %v896 = vadd.f32 %v860, %v891
        %v897 = vadd.f32 %v861, %v891
        %v898 = vadd.f32 %v862, %v891
        %v899 = vadd.f32 %v863, %v891
        %v900 = vadd.f32 %v864, %v891
        %v901 = vadd.f32 %v865, %v891
        %v902 = vadd.f32 %v866, %v891
        %v903 = vadd.f32 %v867, %v891
        %v904 = vadd.f32 %v868, %v891
        %v905 = vadd.f32 %v869, %v891
        %v906 = vadd.f32 %v870, %v891
        %v907 = vadd.f32 %v871, %v891
        %v908 = vadd.f32 %v872, %v891
        %v909 = vadd.f32 %v873, %v891
        %v910 = vadd.f32 %v874, %v891
        %v911 = vadd.f32 %v875, %v891
        %v912 = vadd.f32 %v876, %v891
        %v913 = vadd.f32 %v877, %v891
        %v914 = vadd.f32 %v878, %v891
        %v915 = vadd.f32 %v879, %v891
        %v916 = vadd.f32 %v880, %v891
        %v917 = vadd.f32 %v881, %v891
        %v918 = vadd.f32 %v882, %v891
        %v919 = vadd.f32 %v883, %v891
        %v920 = vadd.f32 %v884, %v891
        %v921 = vadd.f32 %v885, %v891
        %v922 = vadd.f32 %v886, %v891
        %v923 = vadd.f32 %v887, %v891
        %v924 = vmax.f32 %v892, 0.0
        %v925 = vmax.f32 %v893, 0.0
        %v926 = vmax.f32 %v894, 0.0
        %v927 = vmax.f32 %v895, 0.0
        %v928 = vmax.f32 %v896, 0.0
        %v929 = vmax.f32 %v897, 0.0
        %v930 = vmax.f32 %v898, 0.0
        %v931 = vmax.f32 %v899, 0.0
        %v932 = vmax.f32 %v900, 0.0
        %v933 = vmax.f32 %v901, 0.0
        %v934 = vmax.f32 %v902, 0.0
        %v935 = vmax.f32 %v903, 0.0
        %v936 = vmax.f32 %v904, 0.0
        %v937 = vmax.f32 %v905, 0.0
        %v938 = vmax.f32 %v906, 0.0
        %v939 = vmax.f32 %v907, 0.0
        %v940 = vmax.f32 %v908, 0.0
        %v941 = vmax.f32 %v909, 0.0
        %v942 = vmax.f32 %v910, 0.0
        %v943 = vmax.f32 %v911, 0.0
        %v944 = vmax.f32 %v912, 0.0
        %v945 = vmax.f32 %v913, 0.0
        %v946 = vmax.f32 %v914, 0.0
        %v947 = vmax.f32 %v915, 0.0
        %v948 = vmax.f32 %v916, 0.0
        %v949 = vmax.f32 %v917, 0.0
        %v950 = vmax.f32 %v918, 0.0
        %v951 = vmax.f32 %v919, 0.0
        %v952 = vmax.f32 %v920, 0.0
        %v953 = vmax.f32 %v921, 0.0
        %v954 = vmax.f32 %v922, 0.0
        %v955 = vmax.f32 %v923, 0.0
        %v956 = vpack.c.bf16 %v925, %v924
        %v957 = vpack.c.bf16 %v927, %v926
        %v958 = vpack.c.bf16 %v929, %v928
        %v959 = vpack.c.bf16 %v931, %v930
        %v960 = vpack.c.bf16 %v933, %v932
        %v961 = vpack.c.bf16 %v935, %v934
        %v962 = vpack.c.bf16 %v937, %v936
        %v963 = vpack.c.bf16 %v939, %v938
        %v964 = vpack.c.bf16 %v941, %v940
        %v965 = vpack.c.bf16 %v943, %v942
        %v966 = vpack.c.bf16 %v945, %v944
        %v967 = vpack.c.bf16 %v947, %v946
        %v968 = vpack.c.bf16 %v949, %v948
        %v969 = vpack.c.bf16 %v951, %v950
        %v970 = vpack.c.bf16 %v953, %v952
        %v971 = vpack.c.bf16 %v955, %v954
        %s972 = scalar_lea.vmem %s1, 64
        %v973 = vld [vmem:[%s972] sm:$0xf]
        %v974 = vld [vmem:[%s972 + $0x4] sm:$0xf]
        %v975 = vld [vmem:[%s972 + $0x8] sm:$0xf]
        %v976 = vld [vmem:[%s972 + $0xc] sm:$0xf]
        %v977 = vld [vmem:[%s972 + $0x10] sm:$0xf]
        %v978 = vld [vmem:[%s972 + $0x14] sm:$0xf]
        %v979 = vld [vmem:[%s972 + $0x18] sm:$0xf]
        %v980 = vld [vmem:[%s972 + $0x1c] sm:$0xf]
        %v981 = vld [vmem:[%s972 + $0x20] sm:$0xf]
        %v982 = vld [vmem:[%s972 + $0x24] sm:$0xf]
        %v983 = vld [vmem:[%s972 + $0x28] sm:$0xf]
        %v984 = vld [vmem:[%s972 + $0x2c] sm:$0xf]
        %v985 = vld [vmem:[%s972 + $0x30] sm:$0xf]
        %v986 = vld [vmem:[%s972 + $0x34] sm:$0xf]
        %v987 = vld [vmem:[%s972 + $0x38] sm:$0xf]
        %v988 = vld [vmem:[%s972 + $0x3c] sm:$0xf]
        %v989 = vlaneseq
        %v990 = vshrl.u32 %v989, 7
        %v991 = vsub.s32 3, %v990
        %v992 = vrot.slane %v228, %v991
        %v1009 = vunpack.c.l.b16 %v973
        %v1010 = vunpack.c.l.b16 %v974
        %v1011 = vunpack.c.l.b16 %v975
        %v1012 = vunpack.c.l.b16 %v976
        %v1013 = vunpack.c.l.b16 %v977
        %v1014 = vunpack.c.l.b16 %v978
        %v1015 = vunpack.c.l.b16 %v979
        %v1016 = vunpack.c.l.b16 %v980
        %v1017 = vunpack.c.l.b16 %v981
        %v1018 = vunpack.c.l.b16 %v982
        %v1019 = vunpack.c.l.b16 %v983
        %v1020 = vunpack.c.l.b16 %v984
        %v1021 = vunpack.c.l.b16 %v985
        %v1022 = vunpack.c.l.b16 %v986
        %v1023 = vunpack.c.l.b16 %v987
        %v1024 = vunpack.c.l.b16 %v988
        %v1025 = vpack.c.b16 %v1010, %v1009
        %v1026 = vpack.c.b16 %v1012, %v1011
        %v1027 = vpack.c.b16 %v1014, %v1013
        %v1028 = vpack.c.b16 %v1016, %v1015
        %v1029 = vpack.c.b16 %v1018, %v1017
        %v1030 = vpack.c.b16 %v1020, %v1019
        %v1031 = vpack.c.b16 %v1022, %v1021
        %v1032 = vpack.c.b16 %v1024, %v1023
        %1041 = vmatprep.subr.bf16.mxu0 0
        %1042 = vmatpush1.bf16.msra.mxu0 %v1032
        %1043 = vmatprep.subr.bf16.mxu0 0
        %1044 = vmatpush1.bf16.msra.mxu0 %v1031
        %1045 = vmatprep.subr.bf16.mxu0 0
        %1046 = vmatpush1.bf16.msra.mxu0 %v1030
        %1047 = vmatprep.subr.bf16.mxu0 0
        %1048 = vmatpush1.bf16.msra.mxu0 %v1029
        %1049 = vmatprep.subr.bf16.mxu0 0
        %1050 = vmatpush1.bf16.msra.mxu0 %v1028
        %1051 = vmatprep.subr.bf16.mxu0 0
        %1052 = vmatpush1.bf16.msra.mxu0 %v1027
        %1053 = vmatprep.subr.bf16.mxu0 0
        %1054 = vmatpush1.bf16.msra.mxu0 %v1026
        %1055 = vmatprep.subr.bf16.mxu0 0
        %1056 = vmatpush1.bf16.msra.mxu0 %v1025
        %1057 = vmatprep.subr.bf16.mxu0 0
        %1058 = vmatpush2.bf16.msra.mxu0 0
        %1059 = vmatprep.subr.bf16.mxu0 0
        %1060 = vmatpush2.bf16.msra.mxu0 0
        %1061 = vmatprep.subr.bf16.mxu0 0
        %1062 = vmatpush2.bf16.msra.mxu0 0
        %1063 = vmatprep.subr.bf16.mxu0 0
        %1064 = vmatpush2.bf16.msra.mxu0 0
        %1065 = vmatprep.subr.bf16.mxu0 0
        %1066 = vmatpush2.bf16.msra.mxu0 0
        %1067 = vmatprep.subr.bf16.mxu0 0
        %1068 = vmatpush2.bf16.msra.mxu0 0
        %1069 = vmatprep.subr.bf16.mxu0 0
        %1070 = vmatpush2.bf16.msra.mxu0 0
        %1071 = vmatprep.subr.bf16.mxu0 0
        %1072 = vmatpush2.bf16.msra.mxu0 0
        %1073 = vmatprep.mubr.bf16.mxu0 0
        %1074 = vmatmul.mubr.bf16.gmra.mxu0 %v956
        %v1075 = vpop.f32.mrf.mxu0
        %v1076 = vadd.f32 %v992, %v1075
        %v1077 = vpop.f32.mrf.mxu0
        %v1078 = vpop.f32.mrf.mxu0
        %v1079 = vadd.f32 %v992, %v1078
        %v1080 = vpop.f32.mrf.mxu0
        %1081 = vmatprep.mubr.bf16.mxu0 0
        %1082 = vmatmul.mubr.bf16.gmra.mxu0 %v957
        %v1083 = vpop.f32.mrf.mxu0
        %v1084 = vadd.f32 %v992, %v1083
        %v1085 = vpop.f32.mrf.mxu0
        %v1086 = vpop.f32.mrf.mxu0
        %v1087 = vadd.f32 %v992, %v1086
        %v1088 = vpop.f32.mrf.mxu0
        %1089 = vmatprep.mubr.bf16.mxu0 0
        %1090 = vmatmul.mubr.bf16.gmra.mxu0 %v958
        %v1091 = vpop.f32.mrf.mxu0
        %v1092 = vadd.f32 %v992, %v1091
        %v1093 = vpop.f32.mrf.mxu0
        %v1094 = vpop.f32.mrf.mxu0
        %v1095 = vadd.f32 %v992, %v1094
        %v1096 = vpop.f32.mrf.mxu0
        %1097 = vmatprep.mubr.bf16.mxu0 0
        %1098 = vmatmul.mubr.bf16.gmra.mxu0 %v959
        %v1099 = vpop.f32.mrf.mxu0
        %v1100 = vadd.f32 %v992, %v1099
        %v1101 = vpop.f32.mrf.mxu0
        %v1102 = vpop.f32.mrf.mxu0
        %v1103 = vadd.f32 %v992, %v1102
        %v1104 = vpop.f32.mrf.mxu0
        %1105 = vmatprep.mubr.bf16.mxu0 0
        %1106 = vmatmul.mubr.bf16.gmra.mxu0 %v960
        %v1107 = vpop.f32.mrf.mxu0
        %v1108 = vadd.f32 %v992, %v1107
        %v1109 = vpop.f32.mrf.mxu0
        %v1110 = vpop.f32.mrf.mxu0
        %v1111 = vadd.f32 %v992, %v1110
        %v1112 = vpop.f32.mrf.mxu0
        %1113 = vmatprep.mubr.bf16.mxu0 0
        %1114 = vmatmul.mubr.bf16.gmra.mxu0 %v961
        %v1115 = vpop.f32.mrf.mxu0
        %v1116 = vadd.f32 %v992, %v1115
        %v1117 = vpop.f32.mrf.mxu0
        %v1118 = vpop.f32.mrf.mxu0
        %v1119 = vadd.f32 %v992, %v1118
        %v1120 = vpop.f32.mrf.mxu0
        %1121 = vmatprep.mubr.bf16.mxu0 0
        %1122 = vmatmul.mubr.bf16.gmra.mxu0 %v962
        %v1123 = vpop.f32.mrf.mxu0
        %v1124 = vadd.f32 %v992, %v1123
        %v1125 = vpop.f32.mrf.mxu0
        %v1126 = vpop.f32.mrf.mxu0
        %v1127 = vadd.f32 %v992, %v1126
        %v1128 = vpop.f32.mrf.mxu0
        %1129 = vmatprep.mubr.bf16.mxu0 0
        %1130 = vmatmul.mubr.bf16.gmra.mxu0 %v963
        %v1131 = vpop.f32.mrf.mxu0
        %v1132 = vadd.f32 %v992, %v1131
        %v1133 = vpop.f32.mrf.mxu0
        %v1134 = vpop.f32.mrf.mxu0
        %v1135 = vadd.f32 %v992, %v1134
        %v1136 = vpop.f32.mrf.mxu0
        %1137 = vmatprep.mubr.bf16.mxu0 0
        %1138 = vmatmul.mubr.bf16.gmra.mxu0 %v964
        %v1139 = vpop.f32.mrf.mxu0
        %v1140 = vadd.f32 %v992, %v1139
        %v1141 = vpop.f32.mrf.mxu0
        %v1142 = vpop.f32.mrf.mxu0
        %v1143 = vadd.f32 %v992, %v1142
        %v1144 = vpop.f32.mrf.mxu0
        %1145 = vmatprep.mubr.bf16.mxu0 0
        %1146 = vmatmul.mubr.bf16.gmra.mxu0 %v965
        %v1147 = vpop.f32.mrf.mxu0
        %v1148 = vadd.f32 %v992, %v1147
        %v1149 = vpop.f32.mrf.mxu0
        %v1150 = vpop.f32.mrf.mxu0
        %v1151 = vadd.f32 %v992, %v1150
        %v1152 = vpop.f32.mrf.mxu0
        %1153 = vmatprep.mubr.bf16.mxu0 0
        %1154 = vmatmul.mubr.bf16.gmra.mxu0 %v966
        %v1155 = vpop.f32.mrf.mxu0
        %v1156 = vadd.f32 %v992, %v1155
        %v1157 = vpop.f32.mrf.mxu0
        %v1158 = vpop.f32.mrf.mxu0
        %v1159 = vadd.f32 %v992, %v1158
        %v1160 = vpop.f32.mrf.mxu0
        %1161 = vmatprep.mubr.bf16.mxu0 0
        %1162 = vmatmul.mubr.bf16.gmra.mxu0 %v967
        %v1163 = vpop.f32.mrf.mxu0
        %v1164 = vadd.f32 %v992, %v1163
        %v1165 = vpop.f32.mrf.mxu0
        %v1166 = vpop.f32.mrf.mxu0
        %v1167 = vadd.f32 %v992, %v1166
        %v1168 = vpop.f32.mrf.mxu0
        %1169 = vmatprep.mubr.bf16.mxu0 0
        %1170 = vmatmul.mubr.bf16.gmra.mxu0 %v968
        %v1171 = vpop.f32.mrf.mxu0
        %v1172 = vadd.f32 %v992, %v1171
        %v1173 = vpop.f32.mrf.mxu0
        %v1174 = vpop.f32.mrf.mxu0
        %v1175 = vadd.f32 %v992, %v1174
        %v1176 = vpop.f32.mrf.mxu0
        %1177 = vmatprep.mubr.bf16.mxu0 0
        %1178 = vmatmul.mubr.bf16.gmra.mxu0 %v969
        %v1179 = vpop.f32.mrf.mxu0
        %v1180 = vadd.f32 %v992, %v1179
        %v1181 = vpop.f32.mrf.mxu0
        %v1182 = vpop.f32.mrf.mxu0
        %v1183 = vadd.f32 %v992, %v1182
        %v1184 = vpop.f32.mrf.mxu0
        %1185 = vmatprep.mubr.bf16.mxu0 0
        %1186 = vmatmul.mubr.bf16.gmra.mxu0 %v970
        %v1187 = vpop.f32.mrf.mxu0
        %v1188 = vadd.f32 %v992, %v1187
        %v1189 = vpop.f32.mrf.mxu0
        %v1190 = vpop.f32.mrf.mxu0
        %v1191 = vadd.f32 %v992, %v1190
        %v1192 = vpop.f32.mrf.mxu0
        %1193 = vmatprep.mubr.bf16.mxu0 0
        %1194 = vmatmul.mubr.bf16.gmra.mxu0 %v971
        %v1195 = vpop.f32.mrf.mxu0
        %v1196 = vadd.f32 %v992, %v1195
        %v1197 = vpop.f32.mrf.mxu0
        %v1198 = vpop.f32.mrf.mxu0
        %v1199 = vadd.f32 %v992, %v1198
        %v1200 = vpop.f32.mrf.mxu0
        %1201 = vdwg.mxu0
        %1202 = vst [vmem:[%s746] sm:$0xff] %v1076
        %1203 = vst [vmem:[%s746 + $0x8] sm:$0xff] %v1079
        %1204 = vst [vmem:[%s746 + $0x10] sm:$0xff] %v1084
        %1205 = vst [vmem:[%s746 + $0x18] sm:$0xff] %v1087
        %1206 = vst [vmem:[%s746 + $0x20] sm:$0xff] %v1092
        %1207 = vst [vmem:[%s746 + $0x28] sm:$0xff] %v1095
        %1208 = vst [vmem:[%s746 + $0x30] sm:$0xff] %v1100
        %1209 = vst [vmem:[%s746 + $0x38] sm:$0xff] %v1103
        %1210 = vst [vmem:[%s746 + $0x40] sm:$0xff] %v1108
        %1211 = vst [vmem:[%s746 + $0x48] sm:$0xff] %v1111
        %1212 = vst [vmem:[%s746 + $0x50] sm:$0xff] %v1116
        %1213 = vst [vmem:[%s746 + $0x58] sm:$0xff] %v1119
        %1214 = vst [vmem:[%s746 + $0x60] sm:$0xff] %v1124
        %1215 = vst [vmem:[%s746 + $0x68] sm:$0xff] %v1127
        %1216 = vst [vmem:[%s746 + $0x70] sm:$0xff] %v1132
        %1217 = vst [vmem:[%s746 + $0x78] sm:$0xff] %v1135
        %1218 = vst [vmem:[%s746 + $0x80] sm:$0xff] %v1140
        %1219 = vst [vmem:[%s746 + $0x88] sm:$0xff] %v1143
        %1220 = vst [vmem:[%s746 + $0x90] sm:$0xff] %v1148
        %1221 = vst [vmem:[%s746 + $0x98] sm:$0xff] %v1151
        %1222 = vst [vmem:[%s746 + $0xa0] sm:$0xff] %v1156
        %1223 = vst [vmem:[%s746 + $0xa8] sm:$0xff] %v1159
        %1224 = vst [vmem:[%s746 + $0xb0] sm:$0xff] %v1164
        %1225 = vst [vmem:[%s746 + $0xb8] sm:$0xff] %v1167
        %1226 = vst [vmem:[%s746 + $0xc0] sm:$0xff] %v1172
        %1227 = vst [vmem:[%s746 + $0xc8] sm:$0xff] %v1175
        %1228 = vst [vmem:[%s746 + $0xd0] sm:$0xff] %v1180
        %1229 = vst [vmem:[%s746 + $0xd8] sm:$0xff] %v1183
        %1230 = vst [vmem:[%s746 + $0xe0] sm:$0xff] %v1188
        %1231 = vst [vmem:[%s746 + $0xe8] sm:$0xff] %v1191
        %1232 = vst [vmem:[%s746 + $0xf0] sm:$0xff] %v1196
        %1233 = vst [vmem:[%s746 + $0xf8] sm:$0xff] %v1199
        %v1234 = vadd.f32 %v1076, %v1079
        %v1235 = vadd.f32 %v1234, %v1084
        %v1236 = vadd.f32 %v1235, %v1087
        %v1237 = vadd.f32 %v1236, %v1092
        %v1238 = vadd.f32 %v1237, %v1095
        %v1239 = vadd.f32 %v1238, %v1100
        %v1240 = vadd.f32 %v1239, %v1103
        %v1241 = vadd.f32 %v1240, %v1108
        %v1242 = vadd.f32 %v1241, %v1111
        %v1243 = vadd.f32 %v1242, %v1116
        %v1244 = vadd.f32 %v1243, %v1119
        %v1245 = vadd.f32 %v1244, %v1124
        %v1246 = vadd.f32 %v1245, %v1127
        %v1247 = vadd.f32 %v1246, %v1132
        %v1248 = vadd.f32 %v1247, %v1135
        %v1249 = vadd.f32 %v1248, %v1140
        %v1250 = vadd.f32 %v1249, %v1143
        %v1251 = vadd.f32 %v1250, %v1148
        %v1252 = vadd.f32 %v1251, %v1151
        %v1253 = vadd.f32 %v1252, %v1156
        %v1254 = vadd.f32 %v1253, %v1159
        %v1255 = vadd.f32 %v1254, %v1164
        %v1256 = vadd.f32 %v1255, %v1167
        %v1257 = vadd.f32 %v1256, %v1172
        %v1258 = vadd.f32 %v1257, %v1175
        %v1259 = vadd.f32 %v1258, %v1180
        %v1260 = vadd.f32 %v1259, %v1183
        %v1261 = vadd.f32 %v1260, %v1188
        %v1262 = vadd.f32 %v1261, %v1191
        %v1263 = vadd.f32 %v1262, %v1196
        %v1264 = vadd.f32 %v1263, %v1199
        %v1265 = vrot.slane %v1264, 4
        %v1266 = vadd.f32 %v1264, %v1265
        %v1267 = vrot.slane %v1266, 2
        %v1268 = vadd.f32 %v1266, %v1267
        %v1269 = vrot.slane %v1268, 1
        %v1270 = vadd.f32 %v1268, %v1269
        %v1271 = vmul.f32 %v1076, %v1076
        %v1272 = vmul.f32 %v1079, %v1079
        %v1273 = vmul.f32 %v1084, %v1084
        %v1274 = vmul.f32 %v1087, %v1087
        %v1275 = vmul.f32 %v1092, %v1092
        %v1276 = vmul.f32 %v1095, %v1095
        %v1277 = vmul.f32 %v1100, %v1100
        %v1278 = vmul.f32 %v1103, %v1103
        %v1279 = vmul.f32 %v1108, %v1108
        %v1280 = vmul.f32 %v1111, %v1111
        %v1281 = vmul.f32 %v1116, %v1116
        %v1282 = vmul.f32 %v1119, %v1119
        %v1283 = vmul.f32 %v1124, %v1124
        %v1284 = vmul.f32 %v1127, %v1127
        %v1285 = vmul.f32 %v1132, %v1132
        %v1286 = vmul.f32 %v1135, %v1135
        %v1287 = vmul.f32 %v1140, %v1140
        %v1288 = vmul.f32 %v1143, %v1143
        %v1289 = vmul.f32 %v1148, %v1148
        %v1290 = vmul.f32 %v1151, %v1151
        %v1291 = vmul.f32 %v1156, %v1156
        %v1292 = vmul.f32 %v1159, %v1159
        %v1293 = vmul.f32 %v1164, %v1164
        %v1294 = vmul.f32 %v1167, %v1167
        %v1295 = vmul.f32 %v1172, %v1172
        %v1296 = vmul.f32 %v1175, %v1175
        %v1297 = vmul.f32 %v1180, %v1180
        %v1298 = vmul.f32 %v1183, %v1183
        %v1299 = vmul.f32 %v1188, %v1188
        %v1300 = vmul.f32 %v1191, %v1191
        %v1301 = vmul.f32 %v1196, %v1196
        %v1302 = vmul.f32 %v1199, %v1199
        %v1303 = vadd.f32 %v1271, %v1272
        %v1304 = vadd.f32 %v1303, %v1273
        %v1305 = vadd.f32 %v1304, %v1274
        %v1306 = vadd.f32 %v1305, %v1275
        %v1307 = vadd.f32 %v1306, %v1276
        %v1308 = vadd.f32 %v1307, %v1277
        %v1309 = vadd.f32 %v1308, %v1278
        %v1310 = vadd.f32 %v1309, %v1279
        %v1311 = vadd.f32 %v1310, %v1280
        %v1312 = vadd.f32 %v1311, %v1281
        %v1313 = vadd.f32 %v1312, %v1282
        %v1314 = vadd.f32 %v1313, %v1283
        %v1315 = vadd.f32 %v1314, %v1284
        %v1316 = vadd.f32 %v1315, %v1285
        %v1317 = vadd.f32 %v1316, %v1286
        %v1318 = vadd.f32 %v1317, %v1287
        %v1319 = vadd.f32 %v1318, %v1288
        %v1320 = vadd.f32 %v1319, %v1289
        %v1321 = vadd.f32 %v1320, %v1290
        %v1322 = vadd.f32 %v1321, %v1291
        %v1323 = vadd.f32 %v1322, %v1292
        %v1324 = vadd.f32 %v1323, %v1293
        %v1325 = vadd.f32 %v1324, %v1294
        %v1326 = vadd.f32 %v1325, %v1295
        %v1327 = vadd.f32 %v1326, %v1296
        %v1328 = vadd.f32 %v1327, %v1297
        %v1329 = vadd.f32 %v1328, %v1298
        %v1330 = vadd.f32 %v1329, %v1299
        %v1331 = vadd.f32 %v1330, %v1300
        %v1332 = vadd.f32 %v1331, %v1301
        %v1333 = vadd.f32 %v1332, %v1302
        %v1334 = vrot.slane %v1333, 4
        %v1335 = vadd.f32 %v1333, %v1334
        %v1336 = vrot.slane %v1335, 2
        %v1337 = vadd.f32 %v1335, %v1336
        %v1338 = vrot.slane %v1337, 1
        %v1339 = vadd.f32 %v1337, %v1338
        %v1340 = vld [vmem:[#allocation4] sm:$0x3]
        %vm1341 = vcmask 1040384
        %v1342 = vsel %vm1341, %v1270, %v1339
        %v1343 = vadd.f32 %v1340, %v1342
        %1344 = vst [vmem:[#allocation4] sm:$0x3] %v1343
      $region48: #{vae_forward.1} parent=31 // pred_fallthru
        _
      %p1345 = scmp.eq.s32.totalorder %s20, 2
      // Predicated region
      $region49: #{vae_forward.1} parent=31 // pred_check
        %p1346 = pneg %p1345
      $region50: #{vae_forward.1} parent=31 // pred_check_branch
        %1348 = sbr.rel (%p1346) target = $region52
      $region51: #{vae_forward.1} parent=31 // pred_region
        %s1349 = smul.u32 %s21, 256
        %s1350 = scalar_lea.vmem [#allocation2], %s1349
        %v1351 = vld [vmem:[%s1350] sm:$0xff]
        %v1352 = vld [vmem:[%s1350 + $0x8] sm:$0xff]
        %v1353 = vld [vmem:[%s1350 + $0x10] sm:$0xff]
        %v1354 = vld [vmem:[%s1350 + $0x18] sm:$0xff]
        %v1355 = vld [vmem:[%s1350 + $0x20] sm:$0xff]
        %v1356 = vld [vmem:[%s1350 + $0x28] sm:$0xff]
        %v1357 = vld [vmem:[%s1350 + $0x30] sm:$0xff]
        %v1358 = vld [vmem:[%s1350 + $0x38] sm:$0xff]
        %v1359 = vld [vmem:[%s1350 + $0x40] sm:$0xff]
        %v1360 = vld [vmem:[%s1350 + $0x48] sm:$0xff]
        %v1361 = vld [vmem:[%s1350 + $0x50] sm:$0xff]
        %v1362 = vld [vmem:[%s1350 + $0x58] sm:$0xff]
        %v1363 = vld [vmem:[%s1350 + $0x60] sm:$0xff]
        %v1364 = vld [vmem:[%s1350 + $0x68] sm:$0xff]
        %v1365 = vld [vmem:[%s1350 + $0x70] sm:$0xff]
        %v1366 = vld [vmem:[%s1350 + $0x78] sm:$0xff]
        %v1367 = vld [vmem:[%s1350 + $0x80] sm:$0xff]
        %v1368 = vld [vmem:[%s1350 + $0x88] sm:$0xff]
        %v1369 = vld [vmem:[%s1350 + $0x90] sm:$0xff]
        %v1370 = vld [vmem:[%s1350 + $0x98] sm:$0xff]
        %v1371 = vld [vmem:[%s1350 + $0xa0] sm:$0xff]
        %v1372 = vld [vmem:[%s1350 + $0xa8] sm:$0xff]
        %v1373 = vld [vmem:[%s1350 + $0xb0] sm:$0xff]
        %v1374 = vld [vmem:[%s1350 + $0xb8] sm:$0xff]
        %v1375 = vld [vmem:[%s1350 + $0xc0] sm:$0xff]
        %v1376 = vld [vmem:[%s1350 + $0xc8] sm:$0xff]
        %v1377 = vld [vmem:[%s1350 + $0xd0] sm:$0xff]
        %v1378 = vld [vmem:[%s1350 + $0xd8] sm:$0xff]
        %v1379 = vld [vmem:[%s1350 + $0xe0] sm:$0xff]
        %v1380 = vld [vmem:[%s1350 + $0xe8] sm:$0xff]
        %v1381 = vld [vmem:[%s1350 + $0xf0] sm:$0xff]
        %v1382 = vld [vmem:[%s1350 + $0xf8] sm:$0xff]
        %v1383 = vld [vmem:[#allocation5] sm:$0x3]
        %v1384 = vlaneseq
        %v1385 = vshrl.u32 %v1384, 7
        %v1386 = vsub.s32 0, %v1385
        %v1387 = vrot.slane %v1383, %v1386
        %v1388 = vsub.f32 %v1351, %v1387
        %v1389 = vsub.f32 %v1352, %v1387
        %v1390 = vsub.f32 %v1353, %v1387
        %v1391 = vsub.f32 %v1354, %v1387
        %v1392 = vsub.f32 %v1355, %v1387
        %v1393 = vsub.f32 %v1356, %v1387
        %v1394 = vsub.f32 %v1357, %v1387
        %v1395 = vsub.f32 %v1358, %v1387
        %v1396 = vsub.f32 %v1359, %v1387
        %v1397 = vsub.f32 %v1360, %v1387
        %v1398 = vsub.f32 %v1361, %v1387
        %v1399 = vsub.f32 %v1362, %v1387
        %v1400 = vsub.f32 %v1363, %v1387
        %v1401 = vsub.f32 %v1364, %v1387
        %v1402 = vsub.f32 %v1365, %v1387
        %v1403 = vsub.f32 %v1366, %v1387
        %v1404 = vsub.f32 %v1367, %v1387
        %v1405 = vsub.f32 %v1368, %v1387
        %v1406 = vsub.f32 %v1369, %v1387
        %v1407 = vsub.f32 %v1370, %v1387
        %v1408 = vsub.f32 %v1371, %v1387
        %v1409 = vsub.f32 %v1372, %v1387
        %v1410 = vsub.f32 %v1373, %v1387
        %v1411 = vsub.f32 %v1374, %v1387
        %v1412 = vsub.f32 %v1375, %v1387
        %v1413 = vsub.f32 %v1376, %v1387
        %v1414 = vsub.f32 %v1377, %v1387
        %v1415 = vsub.f32 %v1378, %v1387
        %v1416 = vsub.f32 %v1379, %v1387
        %v1417 = vsub.f32 %v1380, %v1387
        %v1418 = vsub.f32 %v1381, %v1387
        %v1419 = vsub.f32 %v1382, %v1387
        %v1420 = vlaneseq
        %v1421 = vshrl.u32 %v1420, 7
        %v1422 = vsub.s32 1, %v1421
        %v1423 = vrot.slane %v1383, %v1422
        %v1424 = vmul.f32 %v1388, %v1423
        %v1425 = vmul.f32 %v1389, %v1423
        %v1426 = vmul.f32 %v1390, %v1423
        %v1427 = vmul.f32 %v1391, %v1423
        %v1428 = vmul.f32 %v1392, %v1423
        %v1429 = vmul.f32 %v1393, %v1423
        %v1430 = vmul.f32 %v1394, %v1423
        %v1431 = vmul.f32 %v1395, %v1423
        %v1432 = vmul.f32 %v1396, %v1423
        %v1433 = vmul.f32 %v1397, %v1423
        %v1434 = vmul.f32 %v1398, %v1423
        %v1435 = vmul.f32 %v1399, %v1423
        %v1436 = vmul.f32 %v1400, %v1423
        %v1437 = vmul.f32 %v1401, %v1423
        %v1438 = vmul.f32 %v1402, %v1423
        %v1439 = vmul.f32 %v1403, %v1423
        %v1440 = vmul.f32 %v1404, %v1423
        %v1441 = vmul.f32 %v1405, %v1423
        %v1442 = vmul.f32 %v1406, %v1423
        %v1443 = vmul.f32 %v1407, %v1423
        %v1444 = vmul.f32 %v1408, %v1423
        %v1445 = vmul.f32 %v1409, %v1423
        %v1446 = vmul.f32 %v1410, %v1423
        %v1447 = vmul.f32 %v1411, %v1423
        %v1448 = vmul.f32 %v1412, %v1423
        %v1449 = vmul.f32 %v1413, %v1423
        %v1450 = vmul.f32 %v1414, %v1423
        %v1451 = vmul.f32 %v1415, %v1423
        %v1452 = vmul.f32 %v1416, %v1423
        %v1453 = vmul.f32 %v1417, %v1423
        %v1454 = vmul.f32 %v1418, %v1423
        %v1455 = vmul.f32 %v1419, %v1423
        %v1456 = vlaneseq
        %v1457 = vshrl.u32 %v1456, 7
        %v1458 = vsub.s32 4, %v1457
        %v1459 = vrot.slane %v228, %v1458
        %v1460 = vmul.f32 %v1424, %v1459
        %v1461 = vmul.f32 %v1425, %v1459
        %v1462 = vmul.f32 %v1426, %v1459
        %v1463 = vmul.f32 %v1427, %v1459
        %v1464 = vmul.f32 %v1428, %v1459
        %v1465 = vmul.f32 %v1429, %v1459
        %v1466 = vmul.f32 %v1430, %v1459
        %v1467 = vmul.f32 %v1431, %v1459
        %v1468 = vmul.f32 %v1432, %v1459
        %v1469 = vmul.f32 %v1433, %v1459
        %v1470 = vmul.f32 %v1434, %v1459
        %v1471 = vmul.f32 %v1435, %v1459
        %v1472 = vmul.f32 %v1436, %v1459
        %v1473 = vmul.f32 %v1437, %v1459
        %v1474 = vmul.f32 %v1438, %v1459
        %v1475 = vmul.f32 %v1439, %v1459
        %v1476 = vmul.f32 %v1440, %v1459
        %v1477 = vmul.f32 %v1441, %v1459
        %v1478 = vmul.f32 %v1442, %v1459
        %v1479 = vmul.f32 %v1443, %v1459
        %v1480 = vmul.f32 %v1444, %v1459
        %v1481 = vmul.f32 %v1445, %v1459
        %v1482 = vmul.f32 %v1446, %v1459
        %v1483 = vmul.f32 %v1447, %v1459
        %v1484 = vmul.f32 %v1448, %v1459
        %v1485 = vmul.f32 %v1449, %v1459
        %v1486 = vmul.f32 %v1450, %v1459
        %v1487 = vmul.f32 %v1451, %v1459
        %v1488 = vmul.f32 %v1452, %v1459
        %v1489 = vmul.f32 %v1453, %v1459
        %v1490 = vmul.f32 %v1454, %v1459
        %v1491 = vmul.f32 %v1455, %v1459
        %v1492 = vlaneseq
        %v1493 = vshrl.u32 %v1492, 7
        %v1494 = vsub.s32 5, %v1493
        %v1495 = vrot.slane %v228, %v1494
        %v1496 = vadd.f32 %v1460, %v1495
        %v1497 = vadd.f32 %v1461, %v1495
        %v1498 = vadd.f32 %v1462, %v1495
        %v1499 = vadd.f32 %v1463, %v1495
        %v1500 = vadd.f32 %v1464, %v1495
        %v1501 = vadd.f32 %v1465, %v1495
        %v1502 = vadd.f32 %v1466, %v1495
        %v1503 = vadd.f32 %v1467, %v1495
        %v1504 = vadd.f32 %v1468, %v1495
        %v1505 = vadd.f32 %v1469, %v1495
        %v1506 = vadd.f32 %v1470, %v1495
        %v1507 = vadd.f32 %v1471, %v1495
        %v1508 = vadd.f32 %v1472, %v1495
        %v1509 = vadd.f32 %v1473, %v1495
        %v1510 = vadd.f32 %v1474, %v1495
        %v1511 = vadd.f32 %v1475, %v1495
        %v1512 = vadd.f32 %v1476, %v1495
        %v1513 = vadd.f32 %v1477, %v1495
        %v1514 = vadd.f32 %v1478, %v1495
        %v1515 = vadd.f32 %v1479, %v1495
        %v1516 = vadd.f32 %v1480, %v1495
        %v1517 = vadd.f32 %v1481, %v1495
        %v1518 = vadd.f32 %v1482, %v1495
        %v1519 = vadd.f32 %v1483, %v1495
        %v1520 = vadd.f32 %v1484, %v1495
        %v1521 = vadd.f32 %v1485, %v1495
        %v1522 = vadd.f32 %v1486, %v1495
        %v1523 = vadd.f32 %v1487, %v1495
        %v1524 = vadd.f32 %v1488, %v1495
        %v1525 = vadd.f32 %v1489, %v1495
        %v1526 = vadd.f32 %v1490, %v1495
        %v1527 = vadd.f32 %v1491, %v1495
        %v1528 = vmax.f32 %v1496, 0.0
        %v1529 = vmax.f32 %v1497, 0.0
        %v1530 = vmax.f32 %v1498, 0.0
        %v1531 = vmax.f32 %v1499, 0.0
        %v1532 = vmax.f32 %v1500, 0.0
        %v1533 = vmax.f32 %v1501, 0.0
        %v1534 = vmax.f32 %v1502, 0.0
        %v1535 = vmax.f32 %v1503, 0.0
        %v1536 = vmax.f32 %v1504, 0.0
        %v1537 = vmax.f32 %v1505, 0.0
        %v1538 = vmax.f32 %v1506, 0.0
        %v1539 = vmax.f32 %v1507, 0.0
        %v1540 = vmax.f32 %v1508, 0.0
        %v1541 = vmax.f32 %v1509, 0.0
        %v1542 = vmax.f32 %v1510, 0.0
        %v1543 = vmax.f32 %v1511, 0.0
        %v1544 = vmax.f32 %v1512, 0.0
        %v1545 = vmax.f32 %v1513, 0.0
        %v1546 = vmax.f32 %v1514, 0.0
        %v1547 = vmax.f32 %v1515, 0.0
        %v1548 = vmax.f32 %v1516, 0.0
        %v1549 = vmax.f32 %v1517, 0.0
        %v1550 = vmax.f32 %v1518, 0.0
        %v1551 = vmax.f32 %v1519, 0.0
        %v1552 = vmax.f32 %v1520, 0.0
        %v1553 = vmax.f32 %v1521, 0.0
        %v1554 = vmax.f32 %v1522, 0.0
        %v1555 = vmax.f32 %v1523, 0.0
        %v1556 = vmax.f32 %v1524, 0.0
        %v1557 = vmax.f32 %v1525, 0.0
        %v1558 = vmax.f32 %v1526, 0.0
        %v1559 = vmax.f32 %v1527, 0.0
        %v1560 = vpack.c.bf16 %v1529, %v1528
        %v1561 = vpack.c.bf16 %v1531, %v1530
        %v1562 = vpack.c.bf16 %v1533, %v1532
        %v1563 = vpack.c.bf16 %v1535, %v1534
        %v1564 = vpack.c.bf16 %v1537, %v1536
        %v1565 = vpack.c.bf16 %v1539, %v1538
        %v1566 = vpack.c.bf16 %v1541, %v1540
        %v1567 = vpack.c.bf16 %v1543, %v1542
        %v1568 = vpack.c.bf16 %v1545, %v1544
        %v1569 = vpack.c.bf16 %v1547, %v1546
        %v1570 = vpack.c.bf16 %v1549, %v1548
        %v1571 = vpack.c.bf16 %v1551, %v1550
        %v1572 = vpack.c.bf16 %v1553, %v1552
        %v1573 = vpack.c.bf16 %v1555, %v1554
        %v1574 = vpack.c.bf16 %v1557, %v1556
        %v1575 = vpack.c.bf16 %v1559, %v1558
        %s1576 = scalar_lea.vmem %s1, 128
        %v1577 = vld [vmem:[%s1576] sm:$0xf]
        %v1578 = vld [vmem:[%s1576 + $0x4] sm:$0xf]
        %v1579 = vld [vmem:[%s1576 + $0x8] sm:$0xf]
        %v1580 = vld [vmem:[%s1576 + $0xc] sm:$0xf]
        %v1581 = vld [vmem:[%s1576 + $0x10] sm:$0xf]
        %v1582 = vld [vmem:[%s1576 + $0x14] sm:$0xf]
        %v1583 = vld [vmem:[%s1576 + $0x18] sm:$0xf]
        %v1584 = vld [vmem:[%s1576 + $0x1c] sm:$0xf]
        %v1585 = vld [vmem:[%s1576 + $0x20] sm:$0xf]
        %v1586 = vld [vmem:[%s1576 + $0x24] sm:$0xf]
        %v1587 = vld [vmem:[%s1576 + $0x28] sm:$0xf]
        %v1588 = vld [vmem:[%s1576 + $0x2c] sm:$0xf]
        %v1589 = vld [vmem:[%s1576 + $0x30] sm:$0xf]
        %v1590 = vld [vmem:[%s1576 + $0x34] sm:$0xf]
        %v1591 = vld [vmem:[%s1576 + $0x38] sm:$0xf]
        %v1592 = vld [vmem:[%s1576 + $0x3c] sm:$0xf]
        %v1593 = vlaneseq
        %v1594 = vshrl.u32 %v1593, 7
        %v1595 = vsub.s32 6, %v1594
        %v1596 = vrot.slane %v228, %v1595
        %v1613 = vunpack.c.l.b16 %v1577
        %v1614 = vunpack.c.l.b16 %v1578
        %v1615 = vunpack.c.l.b16 %v1579
        %v1616 = vunpack.c.l.b16 %v1580
        %v1617 = vunpack.c.l.b16 %v1581
        %v1618 = vunpack.c.l.b16 %v1582
        %v1619 = vunpack.c.l.b16 %v1583
        %v1620 = vunpack.c.l.b16 %v1584
        %v1621 = vunpack.c.l.b16 %v1585
        %v1622 = vunpack.c.l.b16 %v1586
        %v1623 = vunpack.c.l.b16 %v1587
        %v1624 = vunpack.c.l.b16 %v1588
        %v1625 = vunpack.c.l.b16 %v1589
        %v1626 = vunpack.c.l.b16 %v1590
        %v1627 = vunpack.c.l.b16 %v1591
        %v1628 = vunpack.c.l.b16 %v1592
        %v1629 = vpack.c.b16 %v1614, %v1613
        %v1630 = vpack.c.b16 %v1616, %v1615
        %v1631 = vpack.c.b16 %v1618, %v1617
        %v1632 = vpack.c.b16 %v1620, %v1619
        %v1633 = vpack.c.b16 %v1622, %v1621
        %v1634 = vpack.c.b16 %v1624, %v1623
        %v1635 = vpack.c.b16 %v1626, %v1625
        %v1636 = vpack.c.b16 %v1628, %v1627
        %1645 = vmatprep.subr.bf16.mxu0 0
        %1646 = vmatpush1.bf16.msra.mxu0 %v1636
        %1647 = vmatprep.subr.bf16.mxu0 0
        %1648 = vmatpush1.bf16.msra.mxu0 %v1635
        %1649 = vmatprep.subr.bf16.mxu0 0
        %1650 = vmatpush1.bf16.msra.mxu0 %v1634
        %1651 = vmatprep.subr.bf16.mxu0 0
        %1652 = vmatpush1.bf16.msra.mxu0 %v1633
        %1653 = vmatprep.subr.bf16.mxu0 0
        %1654 = vmatpush1.bf16.msra.mxu0 %v1632
        %1655 = vmatprep.subr.bf16.mxu0 0
        %1656 = vmatpush1.bf16.msra.mxu0 %v1631
        %1657 = vmatprep.subr.bf16.mxu0 0
        %1658 = vmatpush1.bf16.msra.mxu0 %v1630
        %1659 = vmatprep.subr.bf16.mxu0 0
        %1660 = vmatpush1.bf16.msra.mxu0 %v1629
        %1661 = vmatprep.subr.bf16.mxu0 0
        %1662 = vmatpush2.bf16.msra.mxu0 0
        %1663 = vmatprep.subr.bf16.mxu0 0
        %1664 = vmatpush2.bf16.msra.mxu0 0
        %1665 = vmatprep.subr.bf16.mxu0 0
        %1666 = vmatpush2.bf16.msra.mxu0 0
        %1667 = vmatprep.subr.bf16.mxu0 0
        %1668 = vmatpush2.bf16.msra.mxu0 0
        %1669 = vmatprep.subr.bf16.mxu0 0
        %1670 = vmatpush2.bf16.msra.mxu0 0
        %1671 = vmatprep.subr.bf16.mxu0 0
        %1672 = vmatpush2.bf16.msra.mxu0 0
        %1673 = vmatprep.subr.bf16.mxu0 0
        %1674 = vmatpush2.bf16.msra.mxu0 0
        %1675 = vmatprep.subr.bf16.mxu0 0
        %1676 = vmatpush2.bf16.msra.mxu0 0
        %1677 = vmatprep.mubr.bf16.mxu0 0
        %1678 = vmatmul.mubr.bf16.gmra.mxu0 %v1560
        %v1679 = vpop.f32.mrf.mxu0
        %v1680 = vadd.f32 %v1596, %v1679
        %v1681 = vpop.f32.mrf.mxu0
        %v1682 = vpop.f32.mrf.mxu0
        %v1683 = vadd.f32 %v1596, %v1682
        %v1684 = vpop.f32.mrf.mxu0
        %1685 = vmatprep.mubr.bf16.mxu0 0
        %1686 = vmatmul.mubr.bf16.gmra.mxu0 %v1561
        %v1687 = vpop.f32.mrf.mxu0
        %v1688 = vadd.f32 %v1596, %v1687
        %v1689 = vpop.f32.mrf.mxu0
        %v1690 = vpop.f32.mrf.mxu0
        %v1691 = vadd.f32 %v1596, %v1690
        %v1692 = vpop.f32.mrf.mxu0
        %1693 = vmatprep.mubr.bf16.mxu0 0
        %1694 = vmatmul.mubr.bf16.gmra.mxu0 %v1562
        %v1695 = vpop.f32.mrf.mxu0
        %v1696 = vadd.f32 %v1596, %v1695
        %v1697 = vpop.f32.mrf.mxu0
        %v1698 = vpop.f32.mrf.mxu0
        %v1699 = vadd.f32 %v1596, %v1698
        %v1700 = vpop.f32.mrf.mxu0
        %1701 = vmatprep.mubr.bf16.mxu0 0
        %1702 = vmatmul.mubr.bf16.gmra.mxu0 %v1563
        %v1703 = vpop.f32.mrf.mxu0
        %v1704 = vadd.f32 %v1596, %v1703
        %v1705 = vpop.f32.mrf.mxu0
        %v1706 = vpop.f32.mrf.mxu0
        %v1707 = vadd.f32 %v1596, %v1706
        %v1708 = vpop.f32.mrf.mxu0
        %1709 = vmatprep.mubr.bf16.mxu0 0
        %1710 = vmatmul.mubr.bf16.gmra.mxu0 %v1564
        %v1711 = vpop.f32.mrf.mxu0
        %v1712 = vadd.f32 %v1596, %v1711
        %v1713 = vpop.f32.mrf.mxu0
        %v1714 = vpop.f32.mrf.mxu0
        %v1715 = vadd.f32 %v1596, %v1714
        %v1716 = vpop.f32.mrf.mxu0
        %1717 = vmatprep.mubr.bf16.mxu0 0
        %1718 = vmatmul.mubr.bf16.gmra.mxu0 %v1565
        %v1719 = vpop.f32.mrf.mxu0
        %v1720 = vadd.f32 %v1596, %v1719
        %v1721 = vpop.f32.mrf.mxu0
        %v1722 = vpop.f32.mrf.mxu0
        %v1723 = vadd.f32 %v1596, %v1722
        %v1724 = vpop.f32.mrf.mxu0
        %1725 = vmatprep.mubr.bf16.mxu0 0
        %1726 = vmatmul.mubr.bf16.gmra.mxu0 %v1566
        %v1727 = vpop.f32.mrf.mxu0
        %v1728 = vadd.f32 %v1596, %v1727
        %v1729 = vpop.f32.mrf.mxu0
        %v1730 = vpop.f32.mrf.mxu0
        %v1731 = vadd.f32 %v1596, %v1730
        %v1732 = vpop.f32.mrf.mxu0
        %1733 = vmatprep.mubr.bf16.mxu0 0
        %1734 = vmatmul.mubr.bf16.gmra.mxu0 %v1567
        %v1735 = vpop.f32.mrf.mxu0
        %v1736 = vadd.f32 %v1596, %v1735
        %v1737 = vpop.f32.mrf.mxu0
        %v1738 = vpop.f32.mrf.mxu0
        %v1739 = vadd.f32 %v1596, %v1738
        %v1740 = vpop.f32.mrf.mxu0
        %1741 = vmatprep.mubr.bf16.mxu0 0
        %1742 = vmatmul.mubr.bf16.gmra.mxu0 %v1568
        %v1743 = vpop.f32.mrf.mxu0
        %v1744 = vadd.f32 %v1596, %v1743
        %v1745 = vpop.f32.mrf.mxu0
        %v1746 = vpop.f32.mrf.mxu0
        %v1747 = vadd.f32 %v1596, %v1746
        %v1748 = vpop.f32.mrf.mxu0
        %1749 = vmatprep.mubr.bf16.mxu0 0
        %1750 = vmatmul.mubr.bf16.gmra.mxu0 %v1569
        %v1751 = vpop.f32.mrf.mxu0
        %v1752 = vadd.f32 %v1596, %v1751
        %v1753 = vpop.f32.mrf.mxu0
        %v1754 = vpop.f32.mrf.mxu0
        %v1755 = vadd.f32 %v1596, %v1754
        %v1756 = vpop.f32.mrf.mxu0
        %1757 = vmatprep.mubr.bf16.mxu0 0
        %1758 = vmatmul.mubr.bf16.gmra.mxu0 %v1570
        %v1759 = vpop.f32.mrf.mxu0
        %v1760 = vadd.f32 %v1596, %v1759
        %v1761 = vpop.f32.mrf.mxu0
        %v1762 = vpop.f32.mrf.mxu0
        %v1763 = vadd.f32 %v1596, %v1762
        %v1764 = vpop.f32.mrf.mxu0
        %1765 = vmatprep.mubr.bf16.mxu0 0
        %1766 = vmatmul.mubr.bf16.gmra.mxu0 %v1571
        %v1767 = vpop.f32.mrf.mxu0
        %v1768 = vadd.f32 %v1596, %v1767
        %v1769 = vpop.f32.mrf.mxu0
        %v1770 = vpop.f32.mrf.mxu0
        %v1771 = vadd.f32 %v1596, %v1770
        %v1772 = vpop.f32.mrf.mxu0
        %1773 = vmatprep.mubr.bf16.mxu0 0
        %1774 = vmatmul.mubr.bf16.gmra.mxu0 %v1572
        %v1775 = vpop.f32.mrf.mxu0
        %v1776 = vadd.f32 %v1596, %v1775
        %v1777 = vpop.f32.mrf.mxu0
        %v1778 = vpop.f32.mrf.mxu0
        %v1779 = vadd.f32 %v1596, %v1778
        %v1780 = vpop.f32.mrf.mxu0
        %1781 = vmatprep.mubr.bf16.mxu0 0
        %1782 = vmatmul.mubr.bf16.gmra.mxu0 %v1573
        %v1783 = vpop.f32.mrf.mxu0
        %v1784 = vadd.f32 %v1596, %v1783
        %v1785 = vpop.f32.mrf.mxu0
        %v1786 = vpop.f32.mrf.mxu0
        %v1787 = vadd.f32 %v1596, %v1786
        %v1788 = vpop.f32.mrf.mxu0
        %1789 = vmatprep.mubr.bf16.mxu0 0
        %1790 = vmatmul.mubr.bf16.gmra.mxu0 %v1574
        %v1791 = vpop.f32.mrf.mxu0
        %v1792 = vadd.f32 %v1596, %v1791
        %v1793 = vpop.f32.mrf.mxu0
        %v1794 = vpop.f32.mrf.mxu0
        %v1795 = vadd.f32 %v1596, %v1794
        %v1796 = vpop.f32.mrf.mxu0
        %1797 = vmatprep.mubr.bf16.mxu0 0
        %1798 = vmatmul.mubr.bf16.gmra.mxu0 %v1575
        %v1799 = vpop.f32.mrf.mxu0
        %v1800 = vadd.f32 %v1596, %v1799
        %v1801 = vpop.f32.mrf.mxu0
        %v1802 = vpop.f32.mrf.mxu0
        %v1803 = vadd.f32 %v1596, %v1802
        %v1804 = vpop.f32.mrf.mxu0
        %1805 = vdwg.mxu0
        %s1806 = scalar_lea.vmem [#allocation3], %s1349
        %1807 = vst [vmem:[%s1806] sm:$0xff] %v1680
        %1808 = vst [vmem:[%s1806 + $0x8] sm:$0xff] %v1683
        %1809 = vst [vmem:[%s1806 + $0x10] sm:$0xff] %v1688
        %1810 = vst [vmem:[%s1806 + $0x18] sm:$0xff] %v1691
        %1811 = vst [vmem:[%s1806 + $0x20] sm:$0xff] %v1696
        %1812 = vst [vmem:[%s1806 + $0x28] sm:$0xff] %v1699
        %1813 = vst [vmem:[%s1806 + $0x30] sm:$0xff] %v1704
        %1814 = vst [vmem:[%s1806 + $0x38] sm:$0xff] %v1707
        %1815 = vst [vmem:[%s1806 + $0x40] sm:$0xff] %v1712
        %1816 = vst [vmem:[%s1806 + $0x48] sm:$0xff] %v1715
        %1817 = vst [vmem:[%s1806 + $0x50] sm:$0xff] %v1720
        %1818 = vst [vmem:[%s1806 + $0x58] sm:$0xff] %v1723
        %1819 = vst [vmem:[%s1806 + $0x60] sm:$0xff] %v1728
        %1820 = vst [vmem:[%s1806 + $0x68] sm:$0xff] %v1731
        %1821 = vst [vmem:[%s1806 + $0x70] sm:$0xff] %v1736
        %1822 = vst [vmem:[%s1806 + $0x78] sm:$0xff] %v1739
        %1823 = vst [vmem:[%s1806 + $0x80] sm:$0xff] %v1744
        %1824 = vst [vmem:[%s1806 + $0x88] sm:$0xff] %v1747
        %1825 = vst [vmem:[%s1806 + $0x90] sm:$0xff] %v1752
        %1826 = vst [vmem:[%s1806 + $0x98] sm:$0xff] %v1755
        %1827 = vst [vmem:[%s1806 + $0xa0] sm:$0xff] %v1760
        %1828 = vst [vmem:[%s1806 + $0xa8] sm:$0xff] %v1763
        %1829 = vst [vmem:[%s1806 + $0xb0] sm:$0xff] %v1768
        %1830 = vst [vmem:[%s1806 + $0xb8] sm:$0xff] %v1771
        %1831 = vst [vmem:[%s1806 + $0xc0] sm:$0xff] %v1776
        %1832 = vst [vmem:[%s1806 + $0xc8] sm:$0xff] %v1779
        %1833 = vst [vmem:[%s1806 + $0xd0] sm:$0xff] %v1784
        %1834 = vst [vmem:[%s1806 + $0xd8] sm:$0xff] %v1787
        %1835 = vst [vmem:[%s1806 + $0xe0] sm:$0xff] %v1792
        %1836 = vst [vmem:[%s1806 + $0xe8] sm:$0xff] %v1795
        %1837 = vst [vmem:[%s1806 + $0xf0] sm:$0xff] %v1800
        %1838 = vst [vmem:[%s1806 + $0xf8] sm:$0xff] %v1803
        %v1839 = vpack.c.bf16 %v1683, %v1680
        %v1840 = vpack.c.bf16 %v1691, %v1688
        %v1841 = vpack.c.bf16 %v1699, %v1696
        %v1842 = vpack.c.bf16 %v1707, %v1704
        %v1843 = vpack.c.bf16 %v1715, %v1712
        %v1844 = vpack.c.bf16 %v1723, %v1720
        %v1845 = vpack.c.bf16 %v1731, %v1728
        %v1846 = vpack.c.bf16 %v1739, %v1736
        %v1847 = vpack.c.bf16 %v1747, %v1744
        %v1848 = vpack.c.bf16 %v1755, %v1752
        %v1849 = vpack.c.bf16 %v1763, %v1760
        %v1850 = vpack.c.bf16 %v1771, %v1768
        %v1851 = vpack.c.bf16 %v1779, %v1776
        %v1852 = vpack.c.bf16 %v1787, %v1784
        %v1853 = vpack.c.bf16 %v1795, %v1792
        %v1854 = vpack.c.bf16 %v1803, %v1800
        %s1855 = scalar_lea.vmem %s1, 192
        %v1856 = vld [vmem:[%s1855] sm:$0xf]
        %v1857 = vld [vmem:[%s1855 + $0x4] sm:$0xf]
        %v1858 = vld [vmem:[%s1855 + $0x8] sm:$0xf]
        %v1859 = vld [vmem:[%s1855 + $0xc] sm:$0xf]
        %v1860 = vld [vmem:[%s1855 + $0x10] sm:$0xf]
        %v1861 = vld [vmem:[%s1855 + $0x14] sm:$0xf]
        %v1862 = vld [vmem:[%s1855 + $0x18] sm:$0xf]
        %v1863 = vld [vmem:[%s1855 + $0x1c] sm:$0xf]
        %v1864 = vld [vmem:[%s1855 + $0x20] sm:$0xf]
        %v1865 = vld [vmem:[%s1855 + $0x24] sm:$0xf]
        %v1866 = vld [vmem:[%s1855 + $0x28] sm:$0xf]
        %v1867 = vld [vmem:[%s1855 + $0x2c] sm:$0xf]
        %v1868 = vld [vmem:[%s1855 + $0x30] sm:$0xf]
        %v1869 = vld [vmem:[%s1855 + $0x34] sm:$0xf]
        %v1870 = vld [vmem:[%s1855 + $0x38] sm:$0xf]
        %v1871 = vld [vmem:[%s1855 + $0x3c] sm:$0xf]
        %v1872 = vlaneseq
        %v1873 = vshrl.u32 %v1872, 7
        %v1874 = vsub.s32 7, %v1873
        %v1875 = vrot.slane %v228, %v1874
        %v1892 = vunpack.c.l.b16 %v1856
        %v1893 = vunpack.c.l.b16 %v1857
        %v1894 = vunpack.c.l.b16 %v1858
        %v1895 = vunpack.c.l.b16 %v1859
        %v1896 = vunpack.c.l.b16 %v1860
        %v1897 = vunpack.c.l.b16 %v1861
        %v1898 = vunpack.c.l.b16 %v1862
        %v1899 = vunpack.c.l.b16 %v1863
        %v1900 = vunpack.c.l.b16 %v1864
        %v1901 = vunpack.c.l.b16 %v1865
        %v1902 = vunpack.c.l.b16 %v1866
        %v1903 = vunpack.c.l.b16 %v1867
        %v1904 = vunpack.c.l.b16 %v1868
        %v1905 = vunpack.c.l.b16 %v1869
        %v1906 = vunpack.c.l.b16 %v1870
        %v1907 = vunpack.c.l.b16 %v1871
        %v1908 = vpack.c.b16 %v1893, %v1892
        %v1909 = vpack.c.b16 %v1895, %v1894
        %v1910 = vpack.c.b16 %v1897, %v1896
        %v1911 = vpack.c.b16 %v1899, %v1898
        %v1912 = vpack.c.b16 %v1901, %v1900
        %v1913 = vpack.c.b16 %v1903, %v1902
        %v1914 = vpack.c.b16 %v1905, %v1904
        %v1915 = vpack.c.b16 %v1907, %v1906
        %1924 = vmatprep.subr.bf16.mxu0 0
        %1925 = vmatpush1.bf16.msra.mxu0 %v1915
        %1926 = vmatprep.subr.bf16.mxu0 0
        %1927 = vmatpush1.bf16.msra.mxu0 %v1914
        %1928 = vmatprep.subr.bf16.mxu0 0
        %1929 = vmatpush1.bf16.msra.mxu0 %v1913
        %1930 = vmatprep.subr.bf16.mxu0 0
        %1931 = vmatpush1.bf16.msra.mxu0 %v1912
        %1932 = vmatprep.subr.bf16.mxu0 0
        %1933 = vmatpush1.bf16.msra.mxu0 %v1911
        %1934 = vmatprep.subr.bf16.mxu0 0
        %1935 = vmatpush1.bf16.msra.mxu0 %v1910
        %1936 = vmatprep.subr.bf16.mxu0 0
        %1937 = vmatpush1.bf16.msra.mxu0 %v1909
        %1938 = vmatprep.subr.bf16.mxu0 0
        %1939 = vmatpush1.bf16.msra.mxu0 %v1908
        %1940 = vmatprep.subr.bf16.mxu0 0
        %1941 = vmatpush2.bf16.msra.mxu0 0
        %1942 = vmatprep.subr.bf16.mxu0 0
        %1943 = vmatpush2.bf16.msra.mxu0 0
        %1944 = vmatprep.subr.bf16.mxu0 0
        %1945 = vmatpush2.bf16.msra.mxu0 0
        %1946 = vmatprep.subr.bf16.mxu0 0
        %1947 = vmatpush2.bf16.msra.mxu0 0
        %1948 = vmatprep.subr.bf16.mxu0 0
        %1949 = vmatpush2.bf16.msra.mxu0 0
        %1950 = vmatprep.subr.bf16.mxu0 0
        %1951 = vmatpush2.bf16.msra.mxu0 0
        %1952 = vmatprep.subr.bf16.mxu0 0
        %1953 = vmatpush2.bf16.msra.mxu0 0
        %1954 = vmatprep.subr.bf16.mxu0 0
        %1955 = vmatpush2.bf16.msra.mxu0 0
        %1956 = vmatprep.mubr.bf16.mxu0 0
        %1957 = vmatmul.mubr.bf16.gmra.mxu0 %v1839
        %v1958 = vpop.f32.mrf.mxu0
        %v1959 = vadd.f32 %v1875, %v1958
        %v1960 = vpop.f32.mrf.mxu0
        %v1961 = vpop.f32.mrf.mxu0
        %v1962 = vadd.f32 %v1875, %v1961
        %v1963 = vpop.f32.mrf.mxu0
        %1964 = vmatprep.mubr.bf16.mxu0 0
        %1965 = vmatmul.mubr.bf16.gmra.mxu0 %v1840
        %v1966 = vpop.f32.mrf.mxu0
        %v1967 = vadd.f32 %v1875, %v1966
        %v1968 = vpop.f32.mrf.mxu0
        %v1969 = vpop.f32.mrf.mxu0
        %v1970 = vadd.f32 %v1875, %v1969
        %v1971 = vpop.f32.mrf.mxu0
        %1972 = vmatprep.mubr.bf16.mxu0 0
        %1973 = vmatmul.mubr.bf16.gmra.mxu0 %v1841
        %v1974 = vpop.f32.mrf.mxu0
        %v1975 = vadd.f32 %v1875, %v1974
        %v1976 = vpop.f32.mrf.mxu0
        %v1977 = vpop.f32.mrf.mxu0
        %v1978 = vadd.f32 %v1875, %v1977
        %v1979 = vpop.f32.mrf.mxu0
        %1980 = vmatprep.mubr.bf16.mxu0 0
        %1981 = vmatmul.mubr.bf16.gmra.mxu0 %v1842
        %v1982 = vpop.f32.mrf.mxu0
        %v1983 = vadd.f32 %v1875, %v1982
        %v1984 = vpop.f32.mrf.mxu0
        %v1985 = vpop.f32.mrf.mxu0
        %v1986 = vadd.f32 %v1875, %v1985
        %v1987 = vpop.f32.mrf.mxu0
        %1988 = vmatprep.mubr.bf16.mxu0 0
        %1989 = vmatmul.mubr.bf16.gmra.mxu0 %v1843
        %v1990 = vpop.f32.mrf.mxu0
        %v1991 = vadd.f32 %v1875, %v1990
        %v1992 = vpop.f32.mrf.mxu0
        %v1993 = vpop.f32.mrf.mxu0
        %v1994 = vadd.f32 %v1875, %v1993
        %v1995 = vpop.f32.mrf.mxu0
        %1996 = vmatprep.mubr.bf16.mxu0 0
        %1997 = vmatmul.mubr.bf16.gmra.mxu0 %v1844
        %v1998 = vpop.f32.mrf.mxu0
        %v1999 = vadd.f32 %v1875, %v1998
        %v2000 = vpop.f32.mrf.mxu0
        %v2001 = vpop.f32.mrf.mxu0
        %v2002 = vadd.f32 %v1875, %v2001
        %v2003 = vpop.f32.mrf.mxu0
        %2004 = vmatprep.mubr.bf16.mxu0 0
        %2005 = vmatmul.mubr.bf16.gmra.mxu0 %v1845
        %v2006 = vpop.f32.mrf.mxu0
        %v2007 = vadd.f32 %v1875, %v2006
        %v2008 = vpop.f32.mrf.mxu0
        %v2009 = vpop.f32.mrf.mxu0
        %v2010 = vadd.f32 %v1875, %v2009
        %v2011 = vpop.f32.mrf.mxu0
        %2012 = vmatprep.mubr.bf16.mxu0 0
        %2013 = vmatmul.mubr.bf16.gmra.mxu0 %v1846
        %v2014 = vpop.f32.mrf.mxu0
        %v2015 = vadd.f32 %v1875, %v2014
        %v2016 = vpop.f32.mrf.mxu0
        %v2017 = vpop.f32.mrf.mxu0
        %v2018 = vadd.f32 %v1875, %v2017
        %v2019 = vpop.f32.mrf.mxu0
        %2020 = vmatprep.mubr.bf16.mxu0 0
        %2021 = vmatmul.mubr.bf16.gmra.mxu0 %v1847
        %v2022 = vpop.f32.mrf.mxu0
        %v2023 = vadd.f32 %v1875, %v2022
        %v2024 = vpop.f32.mrf.mxu0
        %v2025 = vpop.f32.mrf.mxu0
        %v2026 = vadd.f32 %v1875, %v2025
        %v2027 = vpop.f32.mrf.mxu0
        %2028 = vmatprep.mubr.bf16.mxu0 0
        %2029 = vmatmul.mubr.bf16.gmra.mxu0 %v1848
        %v2030 = vpop.f32.mrf.mxu0
        %v2031 = vadd.f32 %v1875, %v2030
        %v2032 = vpop.f32.mrf.mxu0
        %v2033 = vpop.f32.mrf.mxu0
        %v2034 = vadd.f32 %v1875, %v2033
        %v2035 = vpop.f32.mrf.mxu0
        %2036 = vmatprep.mubr.bf16.mxu0 0
        %2037 = vmatmul.mubr.bf16.gmra.mxu0 %v1849
        %v2038 = vpop.f32.mrf.mxu0
        %v2039 = vadd.f32 %v1875, %v2038
        %v2040 = vpop.f32.mrf.mxu0
        %v2041 = vpop.f32.mrf.mxu0
        %v2042 = vadd.f32 %v1875, %v2041
        %v2043 = vpop.f32.mrf.mxu0
        %2044 = vmatprep.mubr.bf16.mxu0 0
        %2045 = vmatmul.mubr.bf16.gmra.mxu0 %v1850
        %v2046 = vpop.f32.mrf.mxu0
        %v2047 = vadd.f32 %v1875, %v2046
        %v2048 = vpop.f32.mrf.mxu0
        %v2049 = vpop.f32.mrf.mxu0
        %v2050 = vadd.f32 %v1875, %v2049
        %v2051 = vpop.f32.mrf.mxu0
        %2052 = vmatprep.mubr.bf16.mxu0 0
        %2053 = vmatmul.mubr.bf16.gmra.mxu0 %v1851
        %v2054 = vpop.f32.mrf.mxu0
        %v2055 = vadd.f32 %v1875, %v2054
        %v2056 = vpop.f32.mrf.mxu0
        %v2057 = vpop.f32.mrf.mxu0
        %v2058 = vadd.f32 %v1875, %v2057
        %v2059 = vpop.f32.mrf.mxu0
        %2060 = vmatprep.mubr.bf16.mxu0 0
        %2061 = vmatmul.mubr.bf16.gmra.mxu0 %v1852
        %v2062 = vpop.f32.mrf.mxu0
        %v2063 = vadd.f32 %v1875, %v2062
        %v2064 = vpop.f32.mrf.mxu0
        %v2065 = vpop.f32.mrf.mxu0
        %v2066 = vadd.f32 %v1875, %v2065
        %v2067 = vpop.f32.mrf.mxu0
        %2068 = vmatprep.mubr.bf16.mxu0 0
        %2069 = vmatmul.mubr.bf16.gmra.mxu0 %v1853
        %v2070 = vpop.f32.mrf.mxu0
        %v2071 = vadd.f32 %v1875, %v2070
        %v2072 = vpop.f32.mrf.mxu0
        %v2073 = vpop.f32.mrf.mxu0
        %v2074 = vadd.f32 %v1875, %v2073
        %v2075 = vpop.f32.mrf.mxu0
        %2076 = vmatprep.mubr.bf16.mxu0 0
        %2077 = vmatmul.mubr.bf16.gmra.mxu0 %v1854
        %v2078 = vpop.f32.mrf.mxu0
        %v2079 = vadd.f32 %v1875, %v2078
        %v2080 = vpop.f32.mrf.mxu0
        %v2081 = vpop.f32.mrf.mxu0
        %v2082 = vadd.f32 %v1875, %v2081
        %v2083 = vpop.f32.mrf.mxu0
        %2084 = vdwg.mxu0
        %2085 = vst [vmem:[%s1350] sm:$0xff] %v1959
        %2086 = vst [vmem:[%s1350 + $0x8] sm:$0xff] %v1962
        %2087 = vst [vmem:[%s1350 + $0x10] sm:$0xff] %v1967
        %2088 = vst [vmem:[%s1350 + $0x18] sm:$0xff] %v1970
        %2089 = vst [vmem:[%s1350 + $0x20] sm:$0xff] %v1975
        %2090 = vst [vmem:[%s1350 + $0x28] sm:$0xff] %v1978
        %2091 = vst [vmem:[%s1350 + $0x30] sm:$0xff] %v1983
        %2092 = vst [vmem:[%s1350 + $0x38] sm:$0xff] %v1986
        %2093 = vst [vmem:[%s1350 + $0x40] sm:$0xff] %v1991
        %2094 = vst [vmem:[%s1350 + $0x48] sm:$0xff] %v1994
        %2095 = vst [vmem:[%s1350 + $0x50] sm:$0xff] %v1999
        %2096 = vst [vmem:[%s1350 + $0x58] sm:$0xff] %v2002
        %2097 = vst [vmem:[%s1350 + $0x60] sm:$0xff] %v2007
        %2098 = vst [vmem:[%s1350 + $0x68] sm:$0xff] %v2010
        %2099 = vst [vmem:[%s1350 + $0x70] sm:$0xff] %v2015
        %2100 = vst [vmem:[%s1350 + $0x78] sm:$0xff] %v2018
        %2101 = vst [vmem:[%s1350 + $0x80] sm:$0xff] %v2023
        %2102 = vst [vmem:[%s1350 + $0x88] sm:$0xff] %v2026
        %2103 = vst [vmem:[%s1350 + $0x90] sm:$0xff] %v2031
        %2104 = vst [vmem:[%s1350 + $0x98] sm:$0xff] %v2034
        %2105 = vst [vmem:[%s1350 + $0xa0] sm:$0xff] %v2039
        %2106 = vst [vmem:[%s1350 + $0xa8] sm:$0xff] %v2042
        %2107 = vst [vmem:[%s1350 + $0xb0] sm:$0xff] %v2047
        %2108 = vst [vmem:[%s1350 + $0xb8] sm:$0xff] %v2050
        %2109 = vst [vmem:[%s1350 + $0xc0] sm:$0xff] %v2055
        %2110 = vst [vmem:[%s1350 + $0xc8] sm:$0xff] %v2058
        %2111 = vst [vmem:[%s1350 + $0xd0] sm:$0xff] %v2063
        %2112 = vst [vmem:[%s1350 + $0xd8] sm:$0xff] %v2066
        %2113 = vst [vmem:[%s1350 + $0xe0] sm:$0xff] %v2071
        %2114 = vst [vmem:[%s1350 + $0xe8] sm:$0xff] %v2074
        %2115 = vst [vmem:[%s1350 + $0xf0] sm:$0xff] %v2079
        %2116 = vst [vmem:[%s1350 + $0xf8] sm:$0xff] %v2082
        %v2117 = vadd.f32 %v1959, %v1962
        %v2118 = vadd.f32 %v2117, %v1967
        %v2119 = vadd.f32 %v2118, %v1970
        %v2120 = vadd.f32 %v2119, %v1975
        %v2121 = vadd.f32 %v2120, %v1978
        %v2122 = vadd.f32 %v2121, %v1983
        %v2123 = vadd.f32 %v2122, %v1986
        %v2124 = vadd.f32 %v2123, %v1991
        %v2125 = vadd.f32 %v2124, %v1994
        %v2126 = vadd.f32 %v2125, %v1999
        %v2127 = vadd.f32 %v2126, %v2002
        %v2128 = vadd.f32 %v2127, %v2007
        %v2129 = vadd.f32 %v2128, %v2010
        %v2130 = vadd.f32 %v2129, %v2015
        %v2131 = vadd.f32 %v2130, %v2018
        %v2132 = vadd.f32 %v2131, %v2023
        %v2133 = vadd.f32 %v2132, %v2026
        %v2134 = vadd.f32 %v2133, %v2031
        %v2135 = vadd.f32 %v2134, %v2034
        %v2136 = vadd.f32 %v2135, %v2039
        %v2137 = vadd.f32 %v2136, %v2042
        %v2138 = vadd.f32 %v2137, %v2047
        %v2139 = vadd.f32 %v2138, %v2050
        %v2140 = vadd.f32 %v2139, %v2055
        %v2141 = vadd.f32 %v2140, %v2058
        %v2142 = vadd.f32 %v2141, %v2063
        %v2143 = vadd.f32 %v2142, %v2066
        %v2144 = vadd.f32 %v2143, %v2071
        %v2145 = vadd.f32 %v2144, %v2074
        %v2146 = vadd.f32 %v2145, %v2079
        %v2147 = vadd.f32 %v2146, %v2082
        %v2148 = vrot.slane %v2147, 4
        %v2149 = vadd.f32 %v2147, %v2148
        %v2150 = vrot.slane %v2149, 2
        %v2151 = vadd.f32 %v2149, %v2150
        %v2152 = vrot.slane %v2151, 1
        %v2153 = vadd.f32 %v2151, %v2152
        %v2154 = vmul.f32 %v1959, %v1959
        %v2155 = vmul.f32 %v1962, %v1962
        %v2156 = vmul.f32 %v1967, %v1967
        %v2157 = vmul.f32 %v1970, %v1970
        %v2158 = vmul.f32 %v1975, %v1975
        %v2159 = vmul.f32 %v1978, %v1978
        %v2160 = vmul.f32 %v1983, %v1983
        %v2161 = vmul.f32 %v1986, %v1986
        %v2162 = vmul.f32 %v1991, %v1991
        %v2163 = vmul.f32 %v1994, %v1994
        %v2164 = vmul.f32 %v1999, %v1999
        %v2165 = vmul.f32 %v2002, %v2002
        %v2166 = vmul.f32 %v2007, %v2007
        %v2167 = vmul.f32 %v2010, %v2010
        %v2168 = vmul.f32 %v2015, %v2015
        %v2169 = vmul.f32 %v2018, %v2018
        %v2170 = vmul.f32 %v2023, %v2023
        %v2171 = vmul.f32 %v2026, %v2026
        %v2172 = vmul.f32 %v2031, %v2031
        %v2173 = vmul.f32 %v2034, %v2034
        %v2174 = vmul.f32 %v2039, %v2039
        %v2175 = vmul.f32 %v2042, %v2042
        %v2176 = vmul.f32 %v2047, %v2047
        %v2177 = vmul.f32 %v2050, %v2050
        %v2178 = vmul.f32 %v2055, %v2055
        %v2179 = vmul.f32 %v2058, %v2058
        %v2180 = vmul.f32 %v2063, %v2063
        %v2181 = vmul.f32 %v2066, %v2066
        %v2182 = vmul.f32 %v2071, %v2071
        %v2183 = vmul.f32 %v2074, %v2074
        %v2184 = vmul.f32 %v2079, %v2079
        %v2185 = vmul.f32 %v2082, %v2082
        %v2186 = vadd.f32 %v2154, %v2155
        %v2187 = vadd.f32 %v2186, %v2156
        %v2188 = vadd.f32 %v2187, %v2157
        %v2189 = vadd.f32 %v2188, %v2158
        %v2190 = vadd.f32 %v2189, %v2159
        %v2191 = vadd.f32 %v2190, %v2160
        %v2192 = vadd.f32 %v2191, %v2161
        %v2193 = vadd.f32 %v2192, %v2162
        %v2194 = vadd.f32 %v2193, %v2163
        %v2195 = vadd.f32 %v2194, %v2164
        %v2196 = vadd.f32 %v2195, %v2165
        %v2197 = vadd.f32 %v2196, %v2166
        %v2198 = vadd.f32 %v2197, %v2167
        %v2199 = vadd.f32 %v2198, %v2168
        %v2200 = vadd.f32 %v2199, %v2169
        %v2201 = vadd.f32 %v2200, %v2170
        %v2202 = vadd.f32 %v2201, %v2171
        %v2203 = vadd.f32 %v2202, %v2172
        %v2204 = vadd.f32 %v2203, %v2173
        %v2205 = vadd.f32 %v2204, %v2174
        %v2206 = vadd.f32 %v2205, %v2175
        %v2207 = vadd.f32 %v2206, %v2176
        %v2208 = vadd.f32 %v2207, %v2177
        %v2209 = vadd.f32 %v2208, %v2178
        %v2210 = vadd.f32 %v2209, %v2179
        %v2211 = vadd.f32 %v2210, %v2180
        %v2212 = vadd.f32 %v2211, %v2181
        %v2213 = vadd.f32 %v2212, %v2182
        %v2214 = vadd.f32 %v2213, %v2183
        %v2215 = vadd.f32 %v2214, %v2184
        %v2216 = vadd.f32 %v2215, %v2185
        %v2217 = vrot.slane %v2216, 4
        %v2218 = vadd.f32 %v2216, %v2217
        %v2219 = vrot.slane %v2218, 2
        %v2220 = vadd.f32 %v2218, %v2219
        %v2221 = vrot.slane %v2220, 1
        %v2222 = vadd.f32 %v2220, %v2221
        %v2223 = vld [vmem:[#allocation4] sm:$0x3]
        %vm2224 = vcmask 1040384
        %v2225 = vsel %vm2224, %v2153, %v2222
        %v2226 = vadd.f32 %v2223, %v2225
        %2227 = vst [vmem:[#allocation4] sm:$0x3] %v2226
      $region52: #{vae_forward.1} parent=31 // pred_fallthru
        _
      %p2228 = scmp.eq.s32.totalorder %s20, 3
      // Predicated region
      $region53: #{vae_forward.1} parent=31 // pred_check
        %p2229 = pneg %p2228
      $region54: #{vae_forward.1} parent=31 // pred_check_branch
        %2231 = sbr.rel (%p2229) target = $region56
      $region55: #{vae_forward.1} parent=31 // pred_region
        %s2232 = smul.u32 %s21, 256
        %s2233 = scalar_lea.vmem [#allocation2], %s2232
        %v2234 = vld [vmem:[%s2233] sm:$0xff]
        %v2235 = vld [vmem:[%s2233 + $0x8] sm:$0xff]
        %v2236 = vld [vmem:[%s2233 + $0x10] sm:$0xff]
        %v2237 = vld [vmem:[%s2233 + $0x18] sm:$0xff]
        %v2238 = vld [vmem:[%s2233 + $0x20] sm:$0xff]
        %v2239 = vld [vmem:[%s2233 + $0x28] sm:$0xff]
        %v2240 = vld [vmem:[%s2233 + $0x30] sm:$0xff]
        %v2241 = vld [vmem:[%s2233 + $0x38] sm:$0xff]
        %v2242 = vld [vmem:[%s2233 + $0x40] sm:$0xff]
        %v2243 = vld [vmem:[%s2233 + $0x48] sm:$0xff]
        %v2244 = vld [vmem:[%s2233 + $0x50] sm:$0xff]
        %v2245 = vld [vmem:[%s2233 + $0x58] sm:$0xff]
        %v2246 = vld [vmem:[%s2233 + $0x60] sm:$0xff]
        %v2247 = vld [vmem:[%s2233 + $0x68] sm:$0xff]
        %v2248 = vld [vmem:[%s2233 + $0x70] sm:$0xff]
        %v2249 = vld [vmem:[%s2233 + $0x78] sm:$0xff]
        %v2250 = vld [vmem:[%s2233 + $0x80] sm:$0xff]
        %v2251 = vld [vmem:[%s2233 + $0x88] sm:$0xff]
        %v2252 = vld [vmem:[%s2233 + $0x90] sm:$0xff]
        %v2253 = vld [vmem:[%s2233 + $0x98] sm:$0xff]
        %v2254 = vld [vmem:[%s2233 + $0xa0] sm:$0xff]
        %v2255 = vld [vmem:[%s2233 + $0xa8] sm:$0xff]
        %v2256 = vld [vmem:[%s2233 + $0xb0] sm:$0xff]
        %v2257 = vld [vmem:[%s2233 + $0xb8] sm:$0xff]
        %v2258 = vld [vmem:[%s2233 + $0xc0] sm:$0xff]
        %v2259 = vld [vmem:[%s2233 + $0xc8] sm:$0xff]
        %v2260 = vld [vmem:[%s2233 + $0xd0] sm:$0xff]
        %v2261 = vld [vmem:[%s2233 + $0xd8] sm:$0xff]
        %v2262 = vld [vmem:[%s2233 + $0xe0] sm:$0xff]
        %v2263 = vld [vmem:[%s2233 + $0xe8] sm:$0xff]
        %v2264 = vld [vmem:[%s2233 + $0xf0] sm:$0xff]
        %v2265 = vld [vmem:[%s2233 + $0xf8] sm:$0xff]
        %v2266 = vld [vmem:[#allocation5] sm:$0x3]
        %v2267 = vlaneseq
        %v2268 = vshrl.u32 %v2267, 7
        %v2269 = vsub.s32 0, %v2268
        %v2270 = vrot.slane %v2266, %v2269
        %v2271 = vsub.f32 %v2234, %v2270
        %v2272 = vsub.f32 %v2235, %v2270
        %v2273 = vsub.f32 %v2236, %v2270
        %v2274 = vsub.f32 %v2237, %v2270
        %v2275 = vsub.f32 %v2238, %v2270
        %v2276 = vsub.f32 %v2239, %v2270
        %v2277 = vsub.f32 %v2240, %v2270
        %v2278 = vsub.f32 %v2241, %v2270
        %v2279 = vsub.f32 %v2242, %v2270
        %v2280 = vsub.f32 %v2243, %v2270
        %v2281 = vsub.f32 %v2244, %v2270
        %v2282 = vsub.f32 %v2245, %v2270
        %v2283 = vsub.f32 %v2246, %v2270
        %v2284 = vsub.f32 %v2247, %v2270
        %v2285 = vsub.f32 %v2248, %v2270
        %v2286 = vsub.f32 %v2249, %v2270
        %v2287 = vsub.f32 %v2250, %v2270
        %v2288 = vsub.f32 %v2251, %v2270
        %v2289 = vsub.f32 %v2252, %v2270
        %v2290 = vsub.f32 %v2253, %v2270
        %v2291 = vsub.f32 %v2254, %v2270
        %v2292 = vsub.f32 %v2255, %v2270
        %v2293 = vsub.f32 %v2256, %v2270
        %v2294 = vsub.f32 %v2257, %v2270
        %v2295 = vsub.f32 %v2258, %v2270
        %v2296 = vsub.f32 %v2259, %v2270
        %v2297 = vsub.f32 %v2260, %v2270
        %v2298 = vsub.f32 %v2261, %v2270
        %v2299 = vsub.f32 %v2262, %v2270
        %v2300 = vsub.f32 %v2263, %v2270
        %v2301 = vsub.f32 %v2264, %v2270
        %v2302 = vsub.f32 %v2265, %v2270
        %v2303 = vlaneseq
        %v2304 = vshrl.u32 %v2303, 7
        %v2305 = vsub.s32 1, %v2304
        %v2306 = vrot.slane %v2266, %v2305
        %v2307 = vmul.f32 %v2271, %v2306
        %v2308 = vmul.f32 %v2272, %v2306
        %v2309 = vmul.f32 %v2273, %v2306
        %v2310 = vmul.f32 %v2274, %v2306
        %v2311 = vmul.f32 %v2275, %v2306
        %v2312 = vmul.f32 %v2276, %v2306
        %v2313 = vmul.f32 %v2277, %v2306
        %v2314 = vmul.f32 %v2278, %v2306
        %v2315 = vmul.f32 %v2279, %v2306
        %v2316 = vmul.f32 %v2280, %v2306
        %v2317 = vmul.f32 %v2281, %v2306
        %v2318 = vmul.f32 %v2282, %v2306
        %v2319 = vmul.f32 %v2283, %v2306
        %v2320 = vmul.f32 %v2284, %v2306
        %v2321 = vmul.f32 %v2285, %v2306
        %v2322 = vmul.f32 %v2286, %v2306
        %v2323 = vmul.f32 %v2287, %v2306
        %v2324 = vmul.f32 %v2288, %v2306
        %v2325 = vmul.f32 %v2289, %v2306
        %v2326 = vmul.f32 %v2290, %v2306
        %v2327 = vmul.f32 %v2291, %v2306
        %v2328 = vmul.f32 %v2292, %v2306
        %v2329 = vmul.f32 %v2293, %v2306
        %v2330 = vmul.f32 %v2294, %v2306
        %v2331 = vmul.f32 %v2295, %v2306
        %v2332 = vmul.f32 %v2296, %v2306
        %v2333 = vmul.f32 %v2297, %v2306
        %v2334 = vmul.f32 %v2298, %v2306
        %v2335 = vmul.f32 %v2299, %v2306
        %v2336 = vmul.f32 %v2300, %v2306
        %v2337 = vmul.f32 %v2301, %v2306
        %v2338 = vmul.f32 %v2302, %v2306
        %v2339 = vlaneseq
        %v2340 = vshrl.u32 %v2339, 7
        %v2341 = vsub.s32 0, %v2340
        %v2342 = vrot.slane %v229, %v2341
        %v2343 = vmul.f32 %v2307, %v2342
        %v2344 = vmul.f32 %v2308, %v2342
        %v2345 = vmul.f32 %v2309, %v2342
        %v2346 = vmul.f32 %v2310, %v2342
        %v2347 = vmul.f32 %v2311, %v2342
        %v2348 = vmul.f32 %v2312, %v2342
        %v2349 = vmul.f32 %v2313, %v2342
        %v2350 = vmul.f32 %v2314, %v2342
        %v2351 = vmul.f32 %v2315, %v2342
        %v2352 = vmul.f32 %v2316, %v2342
        %v2353 = vmul.f32 %v2317, %v2342
        %v2354 = vmul.f32 %v2318, %v2342
        %v2355 = vmul.f32 %v2319, %v2342
        %v2356 = vmul.f32 %v2320, %v2342
        %v2357 = vmul.f32 %v2321, %v2342
        %v2358 = vmul.f32 %v2322, %v2342
        %v2359 = vmul.f32 %v2323, %v2342
        %v2360 = vmul.f32 %v2324, %v2342
        %v2361 = vmul.f32 %v2325, %v2342
        %v2362 = vmul.f32 %v2326, %v2342
        %v2363 = vmul.f32 %v2327, %v2342
        %v2364 = vmul.f32 %v2328, %v2342
        %v2365 = vmul.f32 %v2329, %v2342
        %v2366 = vmul.f32 %v2330, %v2342
        %v2367 = vmul.f32 %v2331, %v2342
        %v2368 = vmul.f32 %v2332, %v2342
        %v2369 = vmul.f32 %v2333, %v2342
        %v2370 = vmul.f32 %v2334, %v2342
        %v2371 = vmul.f32 %v2335, %v2342
        %v2372 = vmul.f32 %v2336, %v2342
        %v2373 = vmul.f32 %v2337, %v2342
        %v2374 = vmul.f32 %v2338, %v2342
        %v2375 = vlaneseq
        %v2376 = vshrl.u32 %v2375, 7
        %v2377 = vsub.s32 1, %v2376
        %v2378 = vrot.slane %v229, %v2377
        %v2379 = vadd.f32 %v2343, %v2378
        %v2380 = vadd.f32 %v2344, %v2378
        %v2381 = vadd.f32 %v2345, %v2378
        %v2382 = vadd.f32 %v2346, %v2378
        %v2383 = vadd.f32 %v2347, %v2378
        %v2384 = vadd.f32 %v2348, %v2378
        %v2385 = vadd.f32 %v2349, %v2378
        %v2386 = vadd.f32 %v2350, %v2378
        %v2387 = vadd.f32 %v2351, %v2378
        %v2388 = vadd.f32 %v2352, %v2378
        %v2389 = vadd.f32 %v2353, %v2378
        %v2390 = vadd.f32 %v2354, %v2378
        %v2391 = vadd.f32 %v2355, %v2378
        %v2392 = vadd.f32 %v2356, %v2378
        %v2393 = vadd.f32 %v2357, %v2378
        %v2394 = vadd.f32 %v2358, %v2378
        %v2395 = vadd.f32 %v2359, %v2378
        %v2396 = vadd.f32 %v2360, %v2378
        %v2397 = vadd.f32 %v2361, %v2378
        %v2398 = vadd.f32 %v2362, %v2378
        %v2399 = vadd.f32 %v2363, %v2378
        %v2400 = vadd.f32 %v2364, %v2378
        %v2401 = vadd.f32 %v2365, %v2378
        %v2402 = vadd.f32 %v2366, %v2378
        %v2403 = vadd.f32 %v2367, %v2378
        %v2404 = vadd.f32 %v2368, %v2378
        %v2405 = vadd.f32 %v2369, %v2378
        %v2406 = vadd.f32 %v2370, %v2378
        %v2407 = vadd.f32 %v2371, %v2378
        %v2408 = vadd.f32 %v2372, %v2378
        %v2409 = vadd.f32 %v2373, %v2378
        %v2410 = vadd.f32 %v2374, %v2378
        %v2411 = vmax.f32 %v2379, 0.0
        %v2412 = vmax.f32 %v2380, 0.0
        %v2413 = vmax.f32 %v2381, 0.0
        %v2414 = vmax.f32 %v2382, 0.0
        %v2415 = vmax.f32 %v2383, 0.0
        %v2416 = vmax.f32 %v2384, 0.0
        %v2417 = vmax.f32 %v2385, 0.0
        %v2418 = vmax.f32 %v2386, 0.0
        %v2419 = vmax.f32 %v2387, 0.0
        %v2420 = vmax.f32 %v2388, 0.0
        %v2421 = vmax.f32 %v2389, 0.0
        %v2422 = vmax.f32 %v2390, 0.0
        %v2423 = vmax.f32 %v2391, 0.0
        %v2424 = vmax.f32 %v2392, 0.0
        %v2425 = vmax.f32 %v2393, 0.0
        %v2426 = vmax.f32 %v2394, 0.0
        %v2427 = vmax.f32 %v2395, 0.0
        %v2428 = vmax.f32 %v2396, 0.0
        %v2429 = vmax.f32 %v2397, 0.0
        %v2430 = vmax.f32 %v2398, 0.0
        %v2431 = vmax.f32 %v2399, 0.0
        %v2432 = vmax.f32 %v2400, 0.0
        %v2433 = vmax.f32 %v2401, 0.0
        %v2434 = vmax.f32 %v2402, 0.0
        %v2435 = vmax.f32 %v2403, 0.0
        %v2436 = vmax.f32 %v2404, 0.0
        %v2437 = vmax.f32 %v2405, 0.0
        %v2438 = vmax.f32 %v2406, 0.0
        %v2439 = vmax.f32 %v2407, 0.0
        %v2440 = vmax.f32 %v2408, 0.0
        %v2441 = vmax.f32 %v2409, 0.0
        %v2442 = vmax.f32 %v2410, 0.0
        %v2443 = vpack.c.bf16 %v2412, %v2411
        %v2444 = vpack.c.bf16 %v2414, %v2413
        %v2445 = vpack.c.bf16 %v2416, %v2415
        %v2446 = vpack.c.bf16 %v2418, %v2417
        %v2447 = vpack.c.bf16 %v2420, %v2419
        %v2448 = vpack.c.bf16 %v2422, %v2421
        %v2449 = vpack.c.bf16 %v2424, %v2423
        %v2450 = vpack.c.bf16 %v2426, %v2425
        %v2451 = vpack.c.bf16 %v2428, %v2427
        %v2452 = vpack.c.bf16 %v2430, %v2429
        %v2453 = vpack.c.bf16 %v2432, %v2431
        %v2454 = vpack.c.bf16 %v2434, %v2433
        %v2455 = vpack.c.bf16 %v2436, %v2435
        %v2456 = vpack.c.bf16 %v2438, %v2437
        %v2457 = vpack.c.bf16 %v2440, %v2439
        %v2458 = vpack.c.bf16 %v2442, %v2441
        %s2459 = scalar_lea.vmem %s1, 256
        %v2460 = vld [vmem:[%s2459] sm:$0xf]
        %v2461 = vld [vmem:[%s2459 + $0x4] sm:$0xf]
        %v2462 = vld [vmem:[%s2459 + $0x8] sm:$0xf]
        %v2463 = vld [vmem:[%s2459 + $0xc] sm:$0xf]
        %v2464 = vld [vmem:[%s2459 + $0x10] sm:$0xf]
        %v2465 = vld [vmem:[%s2459 + $0x14] sm:$0xf]
        %v2466 = vld [vmem:[%s2459 + $0x18] sm:$0xf]
        %v2467 = vld [vmem:[%s2459 + $0x1c] sm:$0xf]
        %v2468 = vld [vmem:[%s2459 + $0x20] sm:$0xf]
        %v2469 = vld [vmem:[%s2459 + $0x24] sm:$0xf]
        %v2470 = vld [vmem:[%s2459 + $0x28] sm:$0xf]
        %v2471 = vld [vmem:[%s2459 + $0x2c] sm:$0xf]
        %v2472 = vld [vmem:[%s2459 + $0x30] sm:$0xf]
        %v2473 = vld [vmem:[%s2459 + $0x34] sm:$0xf]
        %v2474 = vld [vmem:[%s2459 + $0x38] sm:$0xf]
        %v2475 = vld [vmem:[%s2459 + $0x3c] sm:$0xf]
        %v2476 = vlaneseq
        %v2477 = vshrl.u32 %v2476, 7
        %v2478 = vsub.s32 2, %v2477
        %v2479 = vrot.slane %v229, %v2478
        %v2496 = vunpack.c.l.b16 %v2460
        %v2497 = vunpack.c.l.b16 %v2461
        %v2498 = vunpack.c.l.b16 %v2462
        %v2499 = vunpack.c.l.b16 %v2463
        %v2500 = vunpack.c.l.b16 %v2464
        %v2501 = vunpack.c.l.b16 %v2465
        %v2502 = vunpack.c.l.b16 %v2466
        %v2503 = vunpack.c.l.b16 %v2467
        %v2504 = vunpack.c.l.b16 %v2468
        %v2505 = vunpack.c.l.b16 %v2469
        %v2506 = vunpack.c.l.b16 %v2470
        %v2507 = vunpack.c.l.b16 %v2471
        %v2508 = vunpack.c.l.b16 %v2472
        %v2509 = vunpack.c.l.b16 %v2473
        %v2510 = vunpack.c.l.b16 %v2474
        %v2511 = vunpack.c.l.b16 %v2475
        %v2512 = vpack.c.b16 %v2497, %v2496
        %v2513 = vpack.c.b16 %v2499, %v2498
        %v2514 = vpack.c.b16 %v2501, %v2500
        %v2515 = vpack.c.b16 %v2503, %v2502
        %v2516 = vpack.c.b16 %v2505, %v2504
        %v2517 = vpack.c.b16 %v2507, %v2506
        %v2518 = vpack.c.b16 %v2509, %v2508
        %v2519 = vpack.c.b16 %v2511, %v2510
        %2528 = vmatprep.subr.bf16.mxu0 0
        %2529 = vmatpush1.bf16.msra.mxu0 %v2519
        %2530 = vmatprep.subr.bf16.mxu0 0
        %2531 = vmatpush1.bf16.msra.mxu0 %v2518
        %2532 = vmatprep.subr.bf16.mxu0 0
        %2533 = vmatpush1.bf16.msra.mxu0 %v2517
        %2534 = vmatprep.subr.bf16.mxu0 0
        %2535 = vmatpush1.bf16.msra.mxu0 %v2516
        %2536 = vmatprep.subr.bf16.mxu0 0
        %2537 = vmatpush1.bf16.msra.mxu0 %v2515
        %2538 = vmatprep.subr.bf16.mxu0 0
        %2539 = vmatpush1.bf16.msra.mxu0 %v2514
        %2540 = vmatprep.subr.bf16.mxu0 0
        %2541 = vmatpush1.bf16.msra.mxu0 %v2513
        %2542 = vmatprep.subr.bf16.mxu0 0
        %2543 = vmatpush1.bf16.msra.mxu0 %v2512
        %2544 = vmatprep.subr.bf16.mxu0 0
        %2545 = vmatpush2.bf16.msra.mxu0 0
        %2546 = vmatprep.subr.bf16.mxu0 0
        %2547 = vmatpush2.bf16.msra.mxu0 0
        %2548 = vmatprep.subr.bf16.mxu0 0
        %2549 = vmatpush2.bf16.msra.mxu0 0
        %2550 = vmatprep.subr.bf16.mxu0 0
        %2551 = vmatpush2.bf16.msra.mxu0 0
        %2552 = vmatprep.subr.bf16.mxu0 0
        %2553 = vmatpush2.bf16.msra.mxu0 0
        %2554 = vmatprep.subr.bf16.mxu0 0
        %2555 = vmatpush2.bf16.msra.mxu0 0
        %2556 = vmatprep.subr.bf16.mxu0 0
        %2557 = vmatpush2.bf16.msra.mxu0 0
        %2558 = vmatprep.subr.bf16.mxu0 0
        %2559 = vmatpush2.bf16.msra.mxu0 0
        %2560 = vmatprep.mubr.bf16.mxu0 0
        %2561 = vmatmul.mubr.bf16.gmra.mxu0 %v2443
        %v2562 = vpop.f32.mrf.mxu0
        %v2563 = vadd.f32 %v2479, %v2562
        %v2564 = vpop.f32.mrf.mxu0
        %v2565 = vpop.f32.mrf.mxu0
        %v2566 = vadd.f32 %v2479, %v2565
        %v2567 = vpop.f32.mrf.mxu0
        %2568 = vmatprep.mubr.bf16.mxu0 0
        %2569 = vmatmul.mubr.bf16.gmra.mxu0 %v2444
        %v2570 = vpop.f32.mrf.mxu0
        %v2571 = vadd.f32 %v2479, %v2570
        %v2572 = vpop.f32.mrf.mxu0
        %v2573 = vpop.f32.mrf.mxu0
        %v2574 = vadd.f32 %v2479, %v2573
        %v2575 = vpop.f32.mrf.mxu0
        %2576 = vmatprep.mubr.bf16.mxu0 0
        %2577 = vmatmul.mubr.bf16.gmra.mxu0 %v2445
        %v2578 = vpop.f32.mrf.mxu0
        %v2579 = vadd.f32 %v2479, %v2578
        %v2580 = vpop.f32.mrf.mxu0
        %v2581 = vpop.f32.mrf.mxu0
        %v2582 = vadd.f32 %v2479, %v2581
        %v2583 = vpop.f32.mrf.mxu0
        %2584 = vmatprep.mubr.bf16.mxu0 0
        %2585 = vmatmul.mubr.bf16.gmra.mxu0 %v2446
        %v2586 = vpop.f32.mrf.mxu0
        %v2587 = vadd.f32 %v2479, %v2586
        %v2588 = vpop.f32.mrf.mxu0
        %v2589 = vpop.f32.mrf.mxu0
        %v2590 = vadd.f32 %v2479, %v2589
        %v2591 = vpop.f32.mrf.mxu0
        %2592 = vmatprep.mubr.bf16.mxu0 0
        %2593 = vmatmul.mubr.bf16.gmra.mxu0 %v2447
        %v2594 = vpop.f32.mrf.mxu0
        %v2595 = vadd.f32 %v2479, %v2594
        %v2596 = vpop.f32.mrf.mxu0
        %v2597 = vpop.f32.mrf.mxu0
        %v2598 = vadd.f32 %v2479, %v2597
        %v2599 = vpop.f32.mrf.mxu0
        %2600 = vmatprep.mubr.bf16.mxu0 0
        %2601 = vmatmul.mubr.bf16.gmra.mxu0 %v2448
        %v2602 = vpop.f32.mrf.mxu0
        %v2603 = vadd.f32 %v2479, %v2602
        %v2604 = vpop.f32.mrf.mxu0
        %v2605 = vpop.f32.mrf.mxu0
        %v2606 = vadd.f32 %v2479, %v2605
        %v2607 = vpop.f32.mrf.mxu0
        %2608 = vmatprep.mubr.bf16.mxu0 0
        %2609 = vmatmul.mubr.bf16.gmra.mxu0 %v2449
        %v2610 = vpop.f32.mrf.mxu0
        %v2611 = vadd.f32 %v2479, %v2610
        %v2612 = vpop.f32.mrf.mxu0
        %v2613 = vpop.f32.mrf.mxu0
        %v2614 = vadd.f32 %v2479, %v2613
        %v2615 = vpop.f32.mrf.mxu0
        %2616 = vmatprep.mubr.bf16.mxu0 0
        %2617 = vmatmul.mubr.bf16.gmra.mxu0 %v2450
        %v2618 = vpop.f32.mrf.mxu0
        %v2619 = vadd.f32 %v2479, %v2618
        %v2620 = vpop.f32.mrf.mxu0
        %v2621 = vpop.f32.mrf.mxu0
        %v2622 = vadd.f32 %v2479, %v2621
        %v2623 = vpop.f32.mrf.mxu0
        %2624 = vmatprep.mubr.bf16.mxu0 0
        %2625 = vmatmul.mubr.bf16.gmra.mxu0 %v2451
        %v2626 = vpop.f32.mrf.mxu0
        %v2627 = vadd.f32 %v2479, %v2626
        %v2628 = vpop.f32.mrf.mxu0
        %v2629 = vpop.f32.mrf.mxu0
        %v2630 = vadd.f32 %v2479, %v2629
        %v2631 = vpop.f32.mrf.mxu0
        %2632 = vmatprep.mubr.bf16.mxu0 0
        %2633 = vmatmul.mubr.bf16.gmra.mxu0 %v2452
        %v2634 = vpop.f32.mrf.mxu0
        %v2635 = vadd.f32 %v2479, %v2634
        %v2636 = vpop.f32.mrf.mxu0
        %v2637 = vpop.f32.mrf.mxu0
        %v2638 = vadd.f32 %v2479, %v2637
        %v2639 = vpop.f32.mrf.mxu0
        %2640 = vmatprep.mubr.bf16.mxu0 0
        %2641 = vmatmul.mubr.bf16.gmra.mxu0 %v2453
        %v2642 = vpop.f32.mrf.mxu0
        %v2643 = vadd.f32 %v2479, %v2642
        %v2644 = vpop.f32.mrf.mxu0
        %v2645 = vpop.f32.mrf.mxu0
        %v2646 = vadd.f32 %v2479, %v2645
        %v2647 = vpop.f32.mrf.mxu0
        %2648 = vmatprep.mubr.bf16.mxu0 0
        %2649 = vmatmul.mubr.bf16.gmra.mxu0 %v2454
        %v2650 = vpop.f32.mrf.mxu0
        %v2651 = vadd.f32 %v2479, %v2650
        %v2652 = vpop.f32.mrf.mxu0
        %v2653 = vpop.f32.mrf.mxu0
        %v2654 = vadd.f32 %v2479, %v2653
        %v2655 = vpop.f32.mrf.mxu0
        %2656 = vmatprep.mubr.bf16.mxu0 0
        %2657 = vmatmul.mubr.bf16.gmra.mxu0 %v2455
        %v2658 = vpop.f32.mrf.mxu0
        %v2659 = vadd.f32 %v2479, %v2658
        %v2660 = vpop.f32.mrf.mxu0
        %v2661 = vpop.f32.mrf.mxu0
        %v2662 = vadd.f32 %v2479, %v2661
        %v2663 = vpop.f32.mrf.mxu0
        %2664 = vmatprep.mubr.bf16.mxu0 0
        %2665 = vmatmul.mubr.bf16.gmra.mxu0 %v2456
        %v2666 = vpop.f32.mrf.mxu0
        %v2667 = vadd.f32 %v2479, %v2666
        %v2668 = vpop.f32.mrf.mxu0
        %v2669 = vpop.f32.mrf.mxu0
        %v2670 = vadd.f32 %v2479, %v2669
        %v2671 = vpop.f32.mrf.mxu0
        %2672 = vmatprep.mubr.bf16.mxu0 0
        %2673 = vmatmul.mubr.bf16.gmra.mxu0 %v2457
        %v2674 = vpop.f32.mrf.mxu0
        %v2675 = vadd.f32 %v2479, %v2674
        %v2676 = vpop.f32.mrf.mxu0
        %v2677 = vpop.f32.mrf.mxu0
        %v2678 = vadd.f32 %v2479, %v2677
        %v2679 = vpop.f32.mrf.mxu0
        %2680 = vmatprep.mubr.bf16.mxu0 0
        %2681 = vmatmul.mubr.bf16.gmra.mxu0 %v2458
        %v2682 = vpop.f32.mrf.mxu0
        %v2683 = vadd.f32 %v2479, %v2682
        %v2684 = vpop.f32.mrf.mxu0
        %v2685 = vpop.f32.mrf.mxu0
        %v2686 = vadd.f32 %v2479, %v2685
        %v2687 = vpop.f32.mrf.mxu0
        %2688 = vdwg.mxu0
        %2689 = vst [vmem:[%s2233] sm:$0xff] %v2563
        %2690 = vst [vmem:[%s2233 + $0x8] sm:$0xff] %v2566
        %2691 = vst [vmem:[%s2233 + $0x10] sm:$0xff] %v2571
        %2692 = vst [vmem:[%s2233 + $0x18] sm:$0xff] %v2574
        %2693 = vst [vmem:[%s2233 + $0x20] sm:$0xff] %v2579
        %2694 = vst [vmem:[%s2233 + $0x28] sm:$0xff] %v2582
        %2695 = vst [vmem:[%s2233 + $0x30] sm:$0xff] %v2587
        %2696 = vst [vmem:[%s2233 + $0x38] sm:$0xff] %v2590
        %2697 = vst [vmem:[%s2233 + $0x40] sm:$0xff] %v2595
        %2698 = vst [vmem:[%s2233 + $0x48] sm:$0xff] %v2598
        %2699 = vst [vmem:[%s2233 + $0x50] sm:$0xff] %v2603
        %2700 = vst [vmem:[%s2233 + $0x58] sm:$0xff] %v2606
        %2701 = vst [vmem:[%s2233 + $0x60] sm:$0xff] %v2611
        %2702 = vst [vmem:[%s2233 + $0x68] sm:$0xff] %v2614
        %2703 = vst [vmem:[%s2233 + $0x70] sm:$0xff] %v2619
        %2704 = vst [vmem:[%s2233 + $0x78] sm:$0xff] %v2622
        %2705 = vst [vmem:[%s2233 + $0x80] sm:$0xff] %v2627
        %2706 = vst [vmem:[%s2233 + $0x88] sm:$0xff] %v2630
        %2707 = vst [vmem:[%s2233 + $0x90] sm:$0xff] %v2635
        %2708 = vst [vmem:[%s2233 + $0x98] sm:$0xff] %v2638
        %2709 = vst [vmem:[%s2233 + $0xa0] sm:$0xff] %v2643
        %2710 = vst [vmem:[%s2233 + $0xa8] sm:$0xff] %v2646
        %2711 = vst [vmem:[%s2233 + $0xb0] sm:$0xff] %v2651
        %2712 = vst [vmem:[%s2233 + $0xb8] sm:$0xff] %v2654
        %2713 = vst [vmem:[%s2233 + $0xc0] sm:$0xff] %v2659
        %2714 = vst [vmem:[%s2233 + $0xc8] sm:$0xff] %v2662
        %2715 = vst [vmem:[%s2233 + $0xd0] sm:$0xff] %v2667
        %2716 = vst [vmem:[%s2233 + $0xd8] sm:$0xff] %v2670
        %2717 = vst [vmem:[%s2233 + $0xe0] sm:$0xff] %v2675
        %2718 = vst [vmem:[%s2233 + $0xe8] sm:$0xff] %v2678
        %2719 = vst [vmem:[%s2233 + $0xf0] sm:$0xff] %v2683
        %2720 = vst [vmem:[%s2233 + $0xf8] sm:$0xff] %v2686
        %v2721 = vadd.f32 %v2563, %v2566
        %v2722 = vadd.f32 %v2721, %v2571
        %v2723 = vadd.f32 %v2722, %v2574
        %v2724 = vadd.f32 %v2723, %v2579
        %v2725 = vadd.f32 %v2724, %v2582
        %v2726 = vadd.f32 %v2725, %v2587
        %v2727 = vadd.f32 %v2726, %v2590
        %v2728 = vadd.f32 %v2727, %v2595
        %v2729 = vadd.f32 %v2728, %v2598
        %v2730 = vadd.f32 %v2729, %v2603
        %v2731 = vadd.f32 %v2730, %v2606
        %v2732 = vadd.f32 %v2731, %v2611
        %v2733 = vadd.f32 %v2732, %v2614
        %v2734 = vadd.f32 %v2733, %v2619
        %v2735 = vadd.f32 %v2734, %v2622
        %v2736 = vadd.f32 %v2735, %v2627
        %v2737 = vadd.f32 %v2736, %v2630
        %v2738 = vadd.f32 %v2737, %v2635
        %v2739 = vadd.f32 %v2738, %v2638
        %v2740 = vadd.f32 %v2739, %v2643
        %v2741 = vadd.f32 %v2740, %v2646
        %v2742 = vadd.f32 %v2741, %v2651
        %v2743 = vadd.f32 %v2742, %v2654
        %v2744 = vadd.f32 %v2743, %v2659
        %v2745 = vadd.f32 %v2744, %v2662
        %v2746 = vadd.f32 %v2745, %v2667
        %v2747 = vadd.f32 %v2746, %v2670
        %v2748 = vadd.f32 %v2747, %v2675
        %v2749 = vadd.f32 %v2748, %v2678
        %v2750 = vadd.f32 %v2749, %v2683
        %v2751 = vadd.f32 %v2750, %v2686
        %v2752 = vrot.slane %v2751, 4
        %v2753 = vadd.f32 %v2751, %v2752
        %v2754 = vrot.slane %v2753, 2
        %v2755 = vadd.f32 %v2753, %v2754
        %v2756 = vrot.slane %v2755, 1
        %v2757 = vadd.f32 %v2755, %v2756
        %v2758 = vmul.f32 %v2563, %v2563
        %v2759 = vmul.f32 %v2566, %v2566
        %v2760 = vmul.f32 %v2571, %v2571
        %v2761 = vmul.f32 %v2574, %v2574
        %v2762 = vmul.f32 %v2579, %v2579
        %v2763 = vmul.f32 %v2582, %v2582
        %v2764 = vmul.f32 %v2587, %v2587
        %v2765 = vmul.f32 %v2590, %v2590
        %v2766 = vmul.f32 %v2595, %v2595
        %v2767 = vmul.f32 %v2598, %v2598
        %v2768 = vmul.f32 %v2603, %v2603
        %v2769 = vmul.f32 %v2606, %v2606
        %v2770 = vmul.f32 %v2611, %v2611
        %v2771 = vmul.f32 %v2614, %v2614
        %v2772 = vmul.f32 %v2619, %v2619
        %v2773 = vmul.f32 %v2622, %v2622
        %v2774 = vmul.f32 %v2627, %v2627
        %v2775 = vmul.f32 %v2630, %v2630
        %v2776 = vmul.f32 %v2635, %v2635
        %v2777 = vmul.f32 %v2638, %v2638
        %v2778 = vmul.f32 %v2643, %v2643
        %v2779 = vmul.f32 %v2646, %v2646
        %v2780 = vmul.f32 %v2651, %v2651
        %v2781 = vmul.f32 %v2654, %v2654
        %v2782 = vmul.f32 %v2659, %v2659
        %v2783 = vmul.f32 %v2662, %v2662
        %v2784 = vmul.f32 %v2667, %v2667
        %v2785 = vmul.f32 %v2670, %v2670
        %v2786 = vmul.f32 %v2675, %v2675
        %v2787 = vmul.f32 %v2678, %v2678
        %v2788 = vmul.f32 %v2683, %v2683
        %v2789 = vmul.f32 %v2686, %v2686
        %v2790 = vadd.f32 %v2758, %v2759
        %v2791 = vadd.f32 %v2790, %v2760
        %v2792 = vadd.f32 %v2791, %v2761
        %v2793 = vadd.f32 %v2792, %v2762
        %v2794 = vadd.f32 %v2793, %v2763
        %v2795 = vadd.f32 %v2794, %v2764
        %v2796 = vadd.f32 %v2795, %v2765
        %v2797 = vadd.f32 %v2796, %v2766
        %v2798 = vadd.f32 %v2797, %v2767
        %v2799 = vadd.f32 %v2798, %v2768
        %v2800 = vadd.f32 %v2799, %v2769
        %v2801 = vadd.f32 %v2800, %v2770
        %v2802 = vadd.f32 %v2801, %v2771
        %v2803 = vadd.f32 %v2802, %v2772
        %v2804 = vadd.f32 %v2803, %v2773
        %v2805 = vadd.f32 %v2804, %v2774
        %v2806 = vadd.f32 %v2805, %v2775
        %v2807 = vadd.f32 %v2806, %v2776
        %v2808 = vadd.f32 %v2807, %v2777
        %v2809 = vadd.f32 %v2808, %v2778
        %v2810 = vadd.f32 %v2809, %v2779
        %v2811 = vadd.f32 %v2810, %v2780
        %v2812 = vadd.f32 %v2811, %v2781
        %v2813 = vadd.f32 %v2812, %v2782
        %v2814 = vadd.f32 %v2813, %v2783
        %v2815 = vadd.f32 %v2814, %v2784
        %v2816 = vadd.f32 %v2815, %v2785
        %v2817 = vadd.f32 %v2816, %v2786
        %v2818 = vadd.f32 %v2817, %v2787
        %v2819 = vadd.f32 %v2818, %v2788
        %v2820 = vadd.f32 %v2819, %v2789
        %v2821 = vrot.slane %v2820, 4
        %v2822 = vadd.f32 %v2820, %v2821
        %v2823 = vrot.slane %v2822, 2
        %v2824 = vadd.f32 %v2822, %v2823
        %v2825 = vrot.slane %v2824, 1
        %v2826 = vadd.f32 %v2824, %v2825
        %v2827 = vld [vmem:[#allocation4] sm:$0x3]
        %vm2828 = vcmask 1040384
        %v2829 = vsel %vm2828, %v2757, %v2826
        %v2830 = vadd.f32 %v2827, %v2829
        %2831 = vst [vmem:[#allocation4] sm:$0x3] %v2830
      $region56: #{vae_forward.1} parent=31 // pred_fallthru
        _
      %p2832 = scmp.eq.s32.totalorder %s20, 4
      // Predicated region
      $region57: #{vae_forward.1} parent=31 // pred_check
        %p2833 = pneg %p2832
      $region58: #{vae_forward.1} parent=31 // pred_check_branch
        %2835 = sbr.rel (%p2833) target = $region60
      $region59: #{vae_forward.1} parent=31 // pred_region
        %s2836 = smul.u32 %s21, 256
        %s2837 = scalar_lea.vmem [#allocation2], %s2836
        %v2838 = vld [vmem:[%s2837] sm:$0xff]
        %v2839 = vld [vmem:[%s2837 + $0x8] sm:$0xff]
        %v2840 = vld [vmem:[%s2837 + $0x10] sm:$0xff]
        %v2841 = vld [vmem:[%s2837 + $0x18] sm:$0xff]
        %v2842 = vld [vmem:[%s2837 + $0x20] sm:$0xff]
        %v2843 = vld [vmem:[%s2837 + $0x28] sm:$0xff]
        %v2844 = vld [vmem:[%s2837 + $0x30] sm:$0xff]
        %v2845 = vld [vmem:[%s2837 + $0x38] sm:$0xff]
        %v2846 = vld [vmem:[%s2837 + $0x40] sm:$0xff]
        %v2847 = vld [vmem:[%s2837 + $0x48] sm:$0xff]
        %v2848 = vld [vmem:[%s2837 + $0x50] sm:$0xff]
        %v2849 = vld [vmem:[%s2837 + $0x58] sm:$0xff]
        %v2850 = vld [vmem:[%s2837 + $0x60] sm:$0xff]
        %v2851 = vld [vmem:[%s2837 + $0x68] sm:$0xff]
        %v2852 = vld [vmem:[%s2837 + $0x70] sm:$0xff]
        %v2853 = vld [vmem:[%s2837 + $0x78] sm:$0xff]
        %v2854 = vld [vmem:[%s2837 + $0x80] sm:$0xff]
        %v2855 = vld [vmem:[%s2837 + $0x88] sm:$0xff]
        %v2856 = vld [vmem:[%s2837 + $0x90] sm:$0xff]
        %v2857 = vld [vmem:[%s2837 + $0x98] sm:$0xff]
        %v2858 = vld [vmem:[%s2837 + $0xa0] sm:$0xff]
        %v2859 = vld [vmem:[%s2837 + $0xa8] sm:$0xff]
        %v2860 = vld [vmem:[%s2837 + $0xb0] sm:$0xff]
        %v2861 = vld [vmem:[%s2837 + $0xb8] sm:$0xff]
        %v2862 = vld [vmem:[%s2837 + $0xc0] sm:$0xff]
        %v2863 = vld [vmem:[%s2837 + $0xc8] sm:$0xff]
        %v2864 = vld [vmem:[%s2837 + $0xd0] sm:$0xff]
        %v2865 = vld [vmem:[%s2837 + $0xd8] sm:$0xff]
        %v2866 = vld [vmem:[%s2837 + $0xe0] sm:$0xff]
        %v2867 = vld [vmem:[%s2837 + $0xe8] sm:$0xff]
        %v2868 = vld [vmem:[%s2837 + $0xf0] sm:$0xff]
        %v2869 = vld [vmem:[%s2837 + $0xf8] sm:$0xff]
        %v2870 = vld [vmem:[#allocation5] sm:$0x3]
        %v2871 = vlaneseq
        %v2872 = vshrl.u32 %v2871, 7
        %v2873 = vsub.s32 0, %v2872
        %v2874 = vrot.slane %v2870, %v2873
        %v2875 = vsub.f32 %v2838, %v2874
        %v2876 = vsub.f32 %v2839, %v2874
        %v2877 = vsub.f32 %v2840, %v2874
        %v2878 = vsub.f32 %v2841, %v2874
        %v2879 = vsub.f32 %v2842, %v2874
        %v2880 = vsub.f32 %v2843, %v2874
        %v2881 = vsub.f32 %v2844, %v2874
        %v2882 = vsub.f32 %v2845, %v2874
        %v2883 = vsub.f32 %v2846, %v2874
        %v2884 = vsub.f32 %v2847, %v2874
        %v2885 = vsub.f32 %v2848, %v2874
        %v2886 = vsub.f32 %v2849, %v2874
        %v2887 = vsub.f32 %v2850, %v2874
        %v2888 = vsub.f32 %v2851, %v2874
        %v2889 = vsub.f32 %v2852, %v2874
        %v2890 = vsub.f32 %v2853, %v2874
        %v2891 = vsub.f32 %v2854, %v2874
        %v2892 = vsub.f32 %v2855, %v2874
        %v2893 = vsub.f32 %v2856, %v2874
        %v2894 = vsub.f32 %v2857, %v2874
        %v2895 = vsub.f32 %v2858, %v2874
        %v2896 = vsub.f32 %v2859, %v2874
        %v2897 = vsub.f32 %v2860, %v2874
        %v2898 = vsub.f32 %v2861, %v2874
        %v2899 = vsub.f32 %v2862, %v2874
        %v2900 = vsub.f32 %v2863, %v2874
        %v2901 = vsub.f32 %v2864, %v2874
        %v2902 = vsub.f32 %v2865, %v2874
        %v2903 = vsub.f32 %v2866, %v2874
        %v2904 = vsub.f32 %v2867, %v2874
        %v2905 = vsub.f32 %v2868, %v2874
        %v2906 = vsub.f32 %v2869, %v2874
        %v2907 = vlaneseq
        %v2908 = vshrl.u32 %v2907, 7
        %v2909 = vsub.s32 1, %v2908
        %v2910 = vrot.slane %v2870, %v2909
        %v2911 = vmul.f32 %v2875, %v2910
        %v2912 = vmul.f32 %v2876, %v2910
        %v2913 = vmul.f32 %v2877, %v2910
        %v2914 = vmul.f32 %v2878, %v2910
        %v2915 = vmul.f32 %v2879, %v2910
        %v2916 = vmul.f32 %v2880, %v2910
        %v2917 = vmul.f32 %v2881, %v2910
        %v2918 = vmul.f32 %v2882, %v2910
        %v2919 = vmul.f32 %v2883, %v2910
        %v2920 = vmul.f32 %v2884, %v2910
        %v2921 = vmul.f32 %v2885, %v2910
        %v2922 = vmul.f32 %v2886, %v2910
        %v2923 = vmul.f32 %v2887, %v2910
        %v2924 = vmul.f32 %v2888, %v2910
        %v2925 = vmul.f32 %v2889, %v2910
        %v2926 = vmul.f32 %v2890, %v2910
        %v2927 = vmul.f32 %v2891, %v2910
        %v2928 = vmul.f32 %v2892, %v2910
        %v2929 = vmul.f32 %v2893, %v2910
        %v2930 = vmul.f32 %v2894, %v2910
        %v2931 = vmul.f32 %v2895, %v2910
        %v2932 = vmul.f32 %v2896, %v2910
        %v2933 = vmul.f32 %v2897, %v2910
        %v2934 = vmul.f32 %v2898, %v2910
        %v2935 = vmul.f32 %v2899, %v2910
        %v2936 = vmul.f32 %v2900, %v2910
        %v2937 = vmul.f32 %v2901, %v2910
        %v2938 = vmul.f32 %v2902, %v2910
        %v2939 = vmul.f32 %v2903, %v2910
        %v2940 = vmul.f32 %v2904, %v2910
        %v2941 = vmul.f32 %v2905, %v2910
        %v2942 = vmul.f32 %v2906, %v2910
        %v2943 = vlaneseq
        %v2944 = vshrl.u32 %v2943, 7
        %v2945 = vsub.s32 3, %v2944
        %v2946 = vrot.slane %v229, %v2945
        %v2947 = vmul.f32 %v2911, %v2946
        %v2948 = vmul.f32 %v2912, %v2946
        %v2949 = vmul.f32 %v2913, %v2946
        %v2950 = vmul.f32 %v2914, %v2946
        %v2951 = vmul.f32 %v2915, %v2946
        %v2952 = vmul.f32 %v2916, %v2946
        %v2953 = vmul.f32 %v2917, %v2946
        %v2954 = vmul.f32 %v2918, %v2946
        %v2955 = vmul.f32 %v2919, %v2946
        %v2956 = vmul.f32 %v2920, %v2946
        %v2957 = vmul.f32 %v2921, %v2946
        %v2958 = vmul.f32 %v2922, %v2946
        %v2959 = vmul.f32 %v2923, %v2946
        %v2960 = vmul.f32 %v2924, %v2946
        %v2961 = vmul.f32 %v2925, %v2946
        %v2962 = vmul.f32 %v2926, %v2946
        %v2963 = vmul.f32 %v2927, %v2946
        %v2964 = vmul.f32 %v2928, %v2946
        %v2965 = vmul.f32 %v2929, %v2946
        %v2966 = vmul.f32 %v2930, %v2946
        %v2967 = vmul.f32 %v2931, %v2946
        %v2968 = vmul.f32 %v2932, %v2946
        %v2969 = vmul.f32 %v2933, %v2946
        %v2970 = vmul.f32 %v2934, %v2946
        %v2971 = vmul.f32 %v2935, %v2946
        %v2972 = vmul.f32 %v2936, %v2946
        %v2973 = vmul.f32 %v2937, %v2946
        %v2974 = vmul.f32 %v2938, %v2946
        %v2975 = vmul.f32 %v2939, %v2946
        %v2976 = vmul.f32 %v2940, %v2946
        %v2977 = vmul.f32 %v2941, %v2946
        %v2978 = vmul.f32 %v2942, %v2946
        %v2979 = vlaneseq
        %v2980 = vshrl.u32 %v2979, 7
        %v2981 = vsub.s32 4, %v2980
        %v2982 = vrot.slane %v229, %v2981
        %v2983 = vadd.f32 %v2947, %v2982
        %v2984 = vadd.f32 %v2948, %v2982
        %v2985 = vadd.f32 %v2949, %v2982
        %v2986 = vadd.f32 %v2950, %v2982
        %v2987 = vadd.f32 %v2951, %v2982
        %v2988 = vadd.f32 %v2952, %v2982
        %v2989 = vadd.f32 %v2953, %v2982
        %v2990 = vadd.f32 %v2954, %v2982
        %v2991 = vadd.f32 %v2955, %v2982
        %v2992 = vadd.f32 %v2956, %v2982
        %v2993 = vadd.f32 %v2957, %v2982
        %v2994 = vadd.f32 %v2958, %v2982
        %v2995 = vadd.f32 %v2959, %v2982
        %v2996 = vadd.f32 %v2960, %v2982
        %v2997 = vadd.f32 %v2961, %v2982
        %v2998 = vadd.f32 %v2962, %v2982
        %v2999 = vadd.f32 %v2963, %v2982
        %v3000 = vadd.f32 %v2964, %v2982
        %v3001 = vadd.f32 %v2965, %v2982
        %v3002 = vadd.f32 %v2966, %v2982
        %v3003 = vadd.f32 %v2967, %v2982
        %v3004 = vadd.f32 %v2968, %v2982
        %v3005 = vadd.f32 %v2969, %v2982
        %v3006 = vadd.f32 %v2970, %v2982
        %v3007 = vadd.f32 %v2971, %v2982
        %v3008 = vadd.f32 %v2972, %v2982
        %v3009 = vadd.f32 %v2973, %v2982
        %v3010 = vadd.f32 %v2974, %v2982
        %v3011 = vadd.f32 %v2975, %v2982
        %v3012 = vadd.f32 %v2976, %v2982
        %v3013 = vadd.f32 %v2977, %v2982
        %v3014 = vadd.f32 %v2978, %v2982
        %v3015 = vmax.f32 %v2983, 0.0
        %v3016 = vmax.f32 %v2984, 0.0
        %v3017 = vmax.f32 %v2985, 0.0
        %v3018 = vmax.f32 %v2986, 0.0
        %v3019 = vmax.f32 %v2987, 0.0
        %v3020 = vmax.f32 %v2988, 0.0
        %v3021 = vmax.f32 %v2989, 0.0
        %v3022 = vmax.f32 %v2990, 0.0
        %v3023 = vmax.f32 %v2991, 0.0
        %v3024 = vmax.f32 %v2992, 0.0
        %v3025 = vmax.f32 %v2993, 0.0
        %v3026 = vmax.f32 %v2994, 0.0
        %v3027 = vmax.f32 %v2995, 0.0
        %v3028 = vmax.f32 %v2996, 0.0
        %v3029 = vmax.f32 %v2997, 0.0
        %v3030 = vmax.f32 %v2998, 0.0
        %v3031 = vmax.f32 %v2999, 0.0
        %v3032 = vmax.f32 %v3000, 0.0
        %v3033 = vmax.f32 %v3001, 0.0
        %v3034 = vmax.f32 %v3002, 0.0
        %v3035 = vmax.f32 %v3003, 0.0
        %v3036 = vmax.f32 %v3004, 0.0
        %v3037 = vmax.f32 %v3005, 0.0
        %v3038 = vmax.f32 %v3006, 0.0
        %v3039 = vmax.f32 %v3007, 0.0
        %v3040 = vmax.f32 %v3008, 0.0
        %v3041 = vmax.f32 %v3009, 0.0
        %v3042 = vmax.f32 %v3010, 0.0
        %v3043 = vmax.f32 %v3011, 0.0
        %v3044 = vmax.f32 %v3012, 0.0
        %v3045 = vmax.f32 %v3013, 0.0
        %v3046 = vmax.f32 %v3014, 0.0
        %v3047 = vpack.c.bf16 %v3016, %v3015
        %v3048 = vpack.c.bf16 %v3018, %v3017
        %v3049 = vpack.c.bf16 %v3020, %v3019
        %v3050 = vpack.c.bf16 %v3022, %v3021
        %v3051 = vpack.c.bf16 %v3024, %v3023
        %v3052 = vpack.c.bf16 %v3026, %v3025
        %v3053 = vpack.c.bf16 %v3028, %v3027
        %v3054 = vpack.c.bf16 %v3030, %v3029
        %v3055 = vpack.c.bf16 %v3032, %v3031
        %v3056 = vpack.c.bf16 %v3034, %v3033
        %v3057 = vpack.c.bf16 %v3036, %v3035
        %v3058 = vpack.c.bf16 %v3038, %v3037
        %v3059 = vpack.c.bf16 %v3040, %v3039
        %v3060 = vpack.c.bf16 %v3042, %v3041
        %v3061 = vpack.c.bf16 %v3044, %v3043
        %v3062 = vpack.c.bf16 %v3046, %v3045
        %s3063 = scalar_lea.vmem %s1, 320
        %v3064 = vld [vmem:[%s3063] sm:$0xf]
        %v3065 = vld [vmem:[%s3063 + $0x4] sm:$0xf]
        %v3066 = vld [vmem:[%s3063 + $0x8] sm:$0xf]
        %v3067 = vld [vmem:[%s3063 + $0xc] sm:$0xf]
        %v3068 = vld [vmem:[%s3063 + $0x10] sm:$0xf]
        %v3069 = vld [vmem:[%s3063 + $0x14] sm:$0xf]
        %v3070 = vld [vmem:[%s3063 + $0x18] sm:$0xf]
        %v3071 = vld [vmem:[%s3063 + $0x1c] sm:$0xf]
        %v3072 = vld [vmem:[%s3063 + $0x20] sm:$0xf]
        %v3073 = vld [vmem:[%s3063 + $0x24] sm:$0xf]
        %v3074 = vld [vmem:[%s3063 + $0x28] sm:$0xf]
        %v3075 = vld [vmem:[%s3063 + $0x2c] sm:$0xf]
        %v3076 = vld [vmem:[%s3063 + $0x30] sm:$0xf]
        %v3077 = vld [vmem:[%s3063 + $0x34] sm:$0xf]
        %v3078 = vld [vmem:[%s3063 + $0x38] sm:$0xf]
        %v3079 = vld [vmem:[%s3063 + $0x3c] sm:$0xf]
        %v3080 = vlaneseq
        %v3081 = vshrl.u32 %v3080, 7
        %v3082 = vsub.s32 5, %v3081
        %v3083 = vrot.slane %v229, %v3082
        %v3100 = vunpack.c.l.b16 %v3064
        %v3101 = vunpack.c.l.b16 %v3065
        %v3102 = vunpack.c.l.b16 %v3066
        %v3103 = vunpack.c.l.b16 %v3067
        %v3104 = vunpack.c.l.b16 %v3068
        %v3105 = vunpack.c.l.b16 %v3069
        %v3106 = vunpack.c.l.b16 %v3070
        %v3107 = vunpack.c.l.b16 %v3071
        %v3108 = vunpack.c.l.b16 %v3072
        %v3109 = vunpack.c.l.b16 %v3073
        %v3110 = vunpack.c.l.b16 %v3074
        %v3111 = vunpack.c.l.b16 %v3075
        %v3112 = vunpack.c.l.b16 %v3076
        %v3113 = vunpack.c.l.b16 %v3077
        %v3114 = vunpack.c.l.b16 %v3078
        %v3115 = vunpack.c.l.b16 %v3079
        %v3116 = vpack.c.b16 %v3101, %v3100
        %v3117 = vpack.c.b16 %v3103, %v3102
        %v3118 = vpack.c.b16 %v3105, %v3104
        %v3119 = vpack.c.b16 %v3107, %v3106
        %v3120 = vpack.c.b16 %v3109, %v3108
        %v3121 = vpack.c.b16 %v3111, %v3110
        %v3122 = vpack.c.b16 %v3113, %v3112
        %v3123 = vpack.c.b16 %v3115, %v3114
        %3132 = vmatprep.subr.bf16.mxu0 0
        %3133 = vmatpush1.bf16.msra.mxu0 %v3123
        %3134 = vmatprep.subr.bf16.mxu0 0
        %3135 = vmatpush1.bf16.msra.mxu0 %v3122
        %3136 = vmatprep.subr.bf16.mxu0 0
        %3137 = vmatpush1.bf16.msra.mxu0 %v3121
        %3138 = vmatprep.subr.bf16.mxu0 0
        %3139 = vmatpush1.bf16.msra.mxu0 %v3120
        %3140 = vmatprep.subr.bf16.mxu0 0
        %3141 = vmatpush1.bf16.msra.mxu0 %v3119
        %3142 = vmatprep.subr.bf16.mxu0 0
        %3143 = vmatpush1.bf16.msra.mxu0 %v3118
        %3144 = vmatprep.subr.bf16.mxu0 0
        %3145 = vmatpush1.bf16.msra.mxu0 %v3117
        %3146 = vmatprep.subr.bf16.mxu0 0
        %3147 = vmatpush1.bf16.msra.mxu0 %v3116
        %3148 = vmatprep.subr.bf16.mxu0 0
        %3149 = vmatpush2.bf16.msra.mxu0 0
        %3150 = vmatprep.subr.bf16.mxu0 0
        %3151 = vmatpush2.bf16.msra.mxu0 0
        %3152 = vmatprep.subr.bf16.mxu0 0
        %3153 = vmatpush2.bf16.msra.mxu0 0
        %3154 = vmatprep.subr.bf16.mxu0 0
        %3155 = vmatpush2.bf16.msra.mxu0 0
        %3156 = vmatprep.subr.bf16.mxu0 0
        %3157 = vmatpush2.bf16.msra.mxu0 0
        %3158 = vmatprep.subr.bf16.mxu0 0
        %3159 = vmatpush2.bf16.msra.mxu0 0
        %3160 = vmatprep.subr.bf16.mxu0 0
        %3161 = vmatpush2.bf16.msra.mxu0 0
        %3162 = vmatprep.subr.bf16.mxu0 0
        %3163 = vmatpush2.bf16.msra.mxu0 0
        %3164 = vmatprep.mubr.bf16.mxu0 0
        %3165 = vmatmul.mubr.bf16.gmra.mxu0 %v3047
        %v3166 = vpop.f32.mrf.mxu0
        %v3167 = vadd.f32 %v3083, %v3166
        %v3168 = vpop.f32.mrf.mxu0
        %v3169 = vpop.f32.mrf.mxu0
        %v3170 = vadd.f32 %v3083, %v3169
        %v3171 = vpop.f32.mrf.mxu0
        %3172 = vmatprep.mubr.bf16.mxu0 0
        %3173 = vmatmul.mubr.bf16.gmra.mxu0 %v3048
        %v3174 = vpop.f32.mrf.mxu0
        %v3175 = vadd.f32 %v3083, %v3174
        %v3176 = vpop.f32.mrf.mxu0
        %v3177 = vpop.f32.mrf.mxu0
        %v3178 = vadd.f32 %v3083, %v3177
        %v3179 = vpop.f32.mrf.mxu0
        %3180 = vmatprep.mubr.bf16.mxu0 0
        %3181 = vmatmul.mubr.bf16.gmra.mxu0 %v3049
        %v3182 = vpop.f32.mrf.mxu0
        %v3183 = vadd.f32 %v3083, %v3182
        %v3184 = vpop.f32.mrf.mxu0
        %v3185 = vpop.f32.mrf.mxu0
        %v3186 = vadd.f32 %v3083, %v3185
        %v3187 = vpop.f32.mrf.mxu0
        %3188 = vmatprep.mubr.bf16.mxu0 0
        %3189 = vmatmul.mubr.bf16.gmra.mxu0 %v3050
        %v3190 = vpop.f32.mrf.mxu0
        %v3191 = vadd.f32 %v3083, %v3190
        %v3192 = vpop.f32.mrf.mxu0
        %v3193 = vpop.f32.mrf.mxu0
        %v3194 = vadd.f32 %v3083, %v3193
        %v3195 = vpop.f32.mrf.mxu0
        %3196 = vmatprep.mubr.bf16.mxu0 0
        %3197 = vmatmul.mubr.bf16.gmra.mxu0 %v3051
        %v3198 = vpop.f32.mrf.mxu0
        %v3199 = vadd.f32 %v3083, %v3198
        %v3200 = vpop.f32.mrf.mxu0
        %v3201 = vpop.f32.mrf.mxu0
        %v3202 = vadd.f32 %v3083, %v3201
        %v3203 = vpop.f32.mrf.mxu0
        %3204 = vmatprep.mubr.bf16.mxu0 0
        %3205 = vmatmul.mubr.bf16.gmra.mxu0 %v3052
        %v3206 = vpop.f32.mrf.mxu0
        %v3207 = vadd.f32 %v3083, %v3206
        %v3208 = vpop.f32.mrf.mxu0
        %v3209 = vpop.f32.mrf.mxu0
        %v3210 = vadd.f32 %v3083, %v3209
        %v3211 = vpop.f32.mrf.mxu0
        %3212 = vmatprep.mubr.bf16.mxu0 0
        %3213 = vmatmul.mubr.bf16.gmra.mxu0 %v3053
        %v3214 = vpop.f32.mrf.mxu0
        %v3215 = vadd.f32 %v3083, %v3214
        %v3216 = vpop.f32.mrf.mxu0
        %v3217 = vpop.f32.mrf.mxu0
        %v3218 = vadd.f32 %v3083, %v3217
        %v3219 = vpop.f32.mrf.mxu0
        %3220 = vmatprep.mubr.bf16.mxu0 0
        %3221 = vmatmul.mubr.bf16.gmra.mxu0 %v3054
        %v3222 = vpop.f32.mrf.mxu0
        %v3223 = vadd.f32 %v3083, %v3222
        %v3224 = vpop.f32.mrf.mxu0
        %v3225 = vpop.f32.mrf.mxu0
        %v3226 = vadd.f32 %v3083, %v3225
        %v3227 = vpop.f32.mrf.mxu0
        %3228 = vmatprep.mubr.bf16.mxu0 0
        %3229 = vmatmul.mubr.bf16.gmra.mxu0 %v3055
        %v3230 = vpop.f32.mrf.mxu0
        %v3231 = vadd.f32 %v3083, %v3230
        %v3232 = vpop.f32.mrf.mxu0
        %v3233 = vpop.f32.mrf.mxu0
        %v3234 = vadd.f32 %v3083, %v3233
        %v3235 = vpop.f32.mrf.mxu0
        %3236 = vmatprep.mubr.bf16.mxu0 0
        %3237 = vmatmul.mubr.bf16.gmra.mxu0 %v3056
        %v3238 = vpop.f32.mrf.mxu0
        %v3239 = vadd.f32 %v3083, %v3238
        %v3240 = vpop.f32.mrf.mxu0
        %v3241 = vpop.f32.mrf.mxu0
        %v3242 = vadd.f32 %v3083, %v3241
        %v3243 = vpop.f32.mrf.mxu0
        %3244 = vmatprep.mubr.bf16.mxu0 0
        %3245 = vmatmul.mubr.bf16.gmra.mxu0 %v3057
        %v3246 = vpop.f32.mrf.mxu0
        %v3247 = vadd.f32 %v3083, %v3246
        %v3248 = vpop.f32.mrf.mxu0
        %v3249 = vpop.f32.mrf.mxu0
        %v3250 = vadd.f32 %v3083, %v3249
        %v3251 = vpop.f32.mrf.mxu0
        %3252 = vmatprep.mubr.bf16.mxu0 0
        %3253 = vmatmul.mubr.bf16.gmra.mxu0 %v3058
        %v3254 = vpop.f32.mrf.mxu0
        %v3255 = vadd.f32 %v3083, %v3254
        %v3256 = vpop.f32.mrf.mxu0
        %v3257 = vpop.f32.mrf.mxu0
        %v3258 = vadd.f32 %v3083, %v3257
        %v3259 = vpop.f32.mrf.mxu0
        %3260 = vmatprep.mubr.bf16.mxu0 0
        %3261 = vmatmul.mubr.bf16.gmra.mxu0 %v3059
        %v3262 = vpop.f32.mrf.mxu0
        %v3263 = vadd.f32 %v3083, %v3262
        %v3264 = vpop.f32.mrf.mxu0
        %v3265 = vpop.f32.mrf.mxu0
        %v3266 = vadd.f32 %v3083, %v3265
        %v3267 = vpop.f32.mrf.mxu0
        %3268 = vmatprep.mubr.bf16.mxu0 0
        %3269 = vmatmul.mubr.bf16.gmra.mxu0 %v3060
        %v3270 = vpop.f32.mrf.mxu0
        %v3271 = vadd.f32 %v3083, %v3270
        %v3272 = vpop.f32.mrf.mxu0
        %v3273 = vpop.f32.mrf.mxu0
        %v3274 = vadd.f32 %v3083, %v3273
        %v3275 = vpop.f32.mrf.mxu0
        %3276 = vmatprep.mubr.bf16.mxu0 0
        %3277 = vmatmul.mubr.bf16.gmra.mxu0 %v3061
        %v3278 = vpop.f32.mrf.mxu0
        %v3279 = vadd.f32 %v3083, %v3278
        %v3280 = vpop.f32.mrf.mxu0
        %v3281 = vpop.f32.mrf.mxu0
        %v3282 = vadd.f32 %v3083, %v3281
        %v3283 = vpop.f32.mrf.mxu0
        %3284 = vmatprep.mubr.bf16.mxu0 0
        %3285 = vmatmul.mubr.bf16.gmra.mxu0 %v3062
        %v3286 = vpop.f32.mrf.mxu0
        %v3287 = vadd.f32 %v3083, %v3286
        %v3288 = vpop.f32.mrf.mxu0
        %v3289 = vpop.f32.mrf.mxu0
        %v3290 = vadd.f32 %v3083, %v3289
        %v3291 = vpop.f32.mrf.mxu0
        %3292 = vdwg.mxu0
        %3293 = vst [vmem:[%s2837] sm:$0xff] %v3167
        %3294 = vst [vmem:[%s2837 + $0x8] sm:$0xff] %v3170
        %3295 = vst [vmem:[%s2837 + $0x10] sm:$0xff] %v3175
        %3296 = vst [vmem:[%s2837 + $0x18] sm:$0xff] %v3178
        %3297 = vst [vmem:[%s2837 + $0x20] sm:$0xff] %v3183
        %3298 = vst [vmem:[%s2837 + $0x28] sm:$0xff] %v3186
        %3299 = vst [vmem:[%s2837 + $0x30] sm:$0xff] %v3191
        %3300 = vst [vmem:[%s2837 + $0x38] sm:$0xff] %v3194
        %3301 = vst [vmem:[%s2837 + $0x40] sm:$0xff] %v3199
        %3302 = vst [vmem:[%s2837 + $0x48] sm:$0xff] %v3202
        %3303 = vst [vmem:[%s2837 + $0x50] sm:$0xff] %v3207
        %3304 = vst [vmem:[%s2837 + $0x58] sm:$0xff] %v3210
        %3305 = vst [vmem:[%s2837 + $0x60] sm:$0xff] %v3215
        %3306 = vst [vmem:[%s2837 + $0x68] sm:$0xff] %v3218
        %3307 = vst [vmem:[%s2837 + $0x70] sm:$0xff] %v3223
        %3308 = vst [vmem:[%s2837 + $0x78] sm:$0xff] %v3226
        %3309 = vst [vmem:[%s2837 + $0x80] sm:$0xff] %v3231
        %3310 = vst [vmem:[%s2837 + $0x88] sm:$0xff] %v3234
        %3311 = vst [vmem:[%s2837 + $0x90] sm:$0xff] %v3239
        %3312 = vst [vmem:[%s2837 + $0x98] sm:$0xff] %v3242
        %3313 = vst [vmem:[%s2837 + $0xa0] sm:$0xff] %v3247
        %3314 = vst [vmem:[%s2837 + $0xa8] sm:$0xff] %v3250
        %3315 = vst [vmem:[%s2837 + $0xb0] sm:$0xff] %v3255
        %3316 = vst [vmem:[%s2837 + $0xb8] sm:$0xff] %v3258
        %3317 = vst [vmem:[%s2837 + $0xc0] sm:$0xff] %v3263
        %3318 = vst [vmem:[%s2837 + $0xc8] sm:$0xff] %v3266
        %3319 = vst [vmem:[%s2837 + $0xd0] sm:$0xff] %v3271
        %3320 = vst [vmem:[%s2837 + $0xd8] sm:$0xff] %v3274
        %3321 = vst [vmem:[%s2837 + $0xe0] sm:$0xff] %v3279
        %3322 = vst [vmem:[%s2837 + $0xe8] sm:$0xff] %v3282
        %3323 = vst [vmem:[%s2837 + $0xf0] sm:$0xff] %v3287
        %3324 = vst [vmem:[%s2837 + $0xf8] sm:$0xff] %v3290
        %v3325 = vadd.f32 %v3167, %v3170
        %v3326 = vadd.f32 %v3325, %v3175
        %v3327 = vadd.f32 %v3326, %v3178
        %v3328 = vadd.f32 %v3327, %v3183
        %v3329 = vadd.f32 %v3328, %v3186
        %v3330 = vadd.f32 %v3329, %v3191
        %v3331 = vadd.f32 %v3330, %v3194
        %v3332 = vadd.f32 %v3331, %v3199
        %v3333 = vadd.f32 %v3332, %v3202
        %v3334 = vadd.f32 %v3333, %v3207
        %v3335 = vadd.f32 %v3334, %v3210
        %v3336 = vadd.f32 %v3335, %v3215
        %v3337 = vadd.f32 %v3336, %v3218
        %v3338 = vadd.f32 %v3337, %v3223
        %v3339 = vadd.f32 %v3338, %v3226
        %v3340 = vadd.f32 %v3339, %v3231
        %v3341 = vadd.f32 %v3340, %v3234
        %v3342 = vadd.f32 %v3341, %v3239
        %v3343 = vadd.f32 %v3342, %v3242
        %v3344 = vadd.f32 %v3343, %v3247
        %v3345 = vadd.f32 %v3344, %v3250
        %v3346 = vadd.f32 %v3345, %v3255
        %v3347 = vadd.f32 %v3346, %v3258
        %v3348 = vadd.f32 %v3347, %v3263
        %v3349 = vadd.f32 %v3348, %v3266
        %v3350 = vadd.f32 %v3349, %v3271
        %v3351 = vadd.f32 %v3350, %v3274
        %v3352 = vadd.f32 %v3351, %v3279
        %v3353 = vadd.f32 %v3352, %v3282
        %v3354 = vadd.f32 %v3353, %v3287
        %v3355 = vadd.f32 %v3354, %v3290
        %v3356 = vrot.slane %v3355, 4
        %v3357 = vadd.f32 %v3355, %v3356
        %v3358 = vrot.slane %v3357, 2
        %v3359 = vadd.f32 %v3357, %v3358
        %v3360 = vrot.slane %v3359, 1
        %v3361 = vadd.f32 %v3359, %v3360
        %v3362 = vmul.f32 %v3167, %v3167
        %v3363 = vmul.f32 %v3170, %v3170
        %v3364 = vmul.f32 %v3175, %v3175
        %v3365 = vmul.f32 %v3178, %v3178
        %v3366 = vmul.f32 %v3183, %v3183
        %v3367 = vmul.f32 %v3186, %v3186
        %v3368 = vmul.f32 %v3191, %v3191
        %v3369 = vmul.f32 %v3194, %v3194
        %v3370 = vmul.f32 %v3199, %v3199
        %v3371 = vmul.f32 %v3202, %v3202
        %v3372 = vmul.f32 %v3207, %v3207
        %v3373 = vmul.f32 %v3210, %v3210
        %v3374 = vmul.f32 %v3215, %v3215
        %v3375 = vmul.f32 %v3218, %v3218
        %v3376 = vmul.f32 %v3223, %v3223
        %v3377 = vmul.f32 %v3226, %v3226
        %v3378 = vmul.f32 %v3231, %v3231
        %v3379 = vmul.f32 %v3234, %v3234
        %v3380 = vmul.f32 %v3239, %v3239
        %v3381 = vmul.f32 %v3242, %v3242
        %v3382 = vmul.f32 %v3247, %v3247
        %v3383 = vmul.f32 %v3250, %v3250
        %v3384 = vmul.f32 %v3255, %v3255
        %v3385 = vmul.f32 %v3258, %v3258
        %v3386 = vmul.f32 %v3263, %v3263
        %v3387 = vmul.f32 %v3266, %v3266
        %v3388 = vmul.f32 %v3271, %v3271
        %v3389 = vmul.f32 %v3274, %v3274
        %v3390 = vmul.f32 %v3279, %v3279
        %v3391 = vmul.f32 %v3282, %v3282
        %v3392 = vmul.f32 %v3287, %v3287
        %v3393 = vmul.f32 %v3290, %v3290
        %v3394 = vadd.f32 %v3362, %v3363
        %v3395 = vadd.f32 %v3394, %v3364
        %v3396 = vadd.f32 %v3395, %v3365
        %v3397 = vadd.f32 %v3396, %v3366
        %v3398 = vadd.f32 %v3397, %v3367
        %v3399 = vadd.f32 %v3398, %v3368
        %v3400 = vadd.f32 %v3399, %v3369
        %v3401 = vadd.f32 %v3400, %v3370
        %v3402 = vadd.f32 %v3401, %v3371
        %v3403 = vadd.f32 %v3402, %v3372
        %v3404 = vadd.f32 %v3403, %v3373
        %v3405 = vadd.f32 %v3404, %v3374
        %v3406 = vadd.f32 %v3405, %v3375
        %v3407 = vadd.f32 %v3406, %v3376
        %v3408 = vadd.f32 %v3407, %v3377
        %v3409 = vadd.f32 %v3408, %v3378
        %v3410 = vadd.f32 %v3409, %v3379
        %v3411 = vadd.f32 %v3410, %v3380
        %v3412 = vadd.f32 %v3411, %v3381
        %v3413 = vadd.f32 %v3412, %v3382
        %v3414 = vadd.f32 %v3413, %v3383
        %v3415 = vadd.f32 %v3414, %v3384
        %v3416 = vadd.f32 %v3415, %v3385
        %v3417 = vadd.f32 %v3416, %v3386
        %v3418 = vadd.f32 %v3417, %v3387
        %v3419 = vadd.f32 %v3418, %v3388
        %v3420 = vadd.f32 %v3419, %v3389
        %v3421 = vadd.f32 %v3420, %v3390
        %v3422 = vadd.f32 %v3421, %v3391
        %v3423 = vadd.f32 %v3422, %v3392
        %v3424 = vadd.f32 %v3423, %v3393
        %v3425 = vrot.slane %v3424, 4
        %v3426 = vadd.f32 %v3424, %v3425
        %v3427 = vrot.slane %v3426, 2
        %v3428 = vadd.f32 %v3426, %v3427
        %v3429 = vrot.slane %v3428, 1
        %v3430 = vadd.f32 %v3428, %v3429
        %v3431 = vld [vmem:[#allocation4] sm:$0x3]
        %vm3432 = vcmask 1040384
        %v3433 = vsel %vm3432, %v3361, %v3430
        %v3434 = vadd.f32 %v3431, %v3433
        %3435 = vst [vmem:[#allocation4] sm:$0x3] %v3434
      $region60: #{vae_forward.1} parent=31 // pred_fallthru
        _
      %p3436 = scmp.eq.s32.totalorder %s20, 5
      // Predicated region
      $region61: #{vae_forward.1} parent=31 // pred_check
        %p3437 = pneg %p3436
      $region62: #{vae_forward.1} parent=31 // pred_check_branch
        %3439 = sbr.rel (%p3437) target = $region64
      $region63: #{vae_forward.1} parent=31 // pred_region
        %s3440 = smul.u32 %s21, 256
        %s3441 = scalar_lea.vmem [#allocation2], %s3440
        %v3442 = vld [vmem:[%s3441] sm:$0xff]
        %v3443 = vld [vmem:[%s3441 + $0x8] sm:$0xff]
        %v3444 = vld [vmem:[%s3441 + $0x10] sm:$0xff]
        %v3445 = vld [vmem:[%s3441 + $0x18] sm:$0xff]
        %v3446 = vld [vmem:[%s3441 + $0x20] sm:$0xff]
        %v3447 = vld [vmem:[%s3441 + $0x28] sm:$0xff]
        %v3448 = vld [vmem:[%s3441 + $0x30] sm:$0xff]
        %v3449 = vld [vmem:[%s3441 + $0x38] sm:$0xff]
        %v3450 = vld [vmem:[%s3441 + $0x40] sm:$0xff]
        %v3451 = vld [vmem:[%s3441 + $0x48] sm:$0xff]
        %v3452 = vld [vmem:[%s3441 + $0x50] sm:$0xff]
        %v3453 = vld [vmem:[%s3441 + $0x58] sm:$0xff]
        %v3454 = vld [vmem:[%s3441 + $0x60] sm:$0xff]
        %v3455 = vld [vmem:[%s3441 + $0x68] sm:$0xff]
        %v3456 = vld [vmem:[%s3441 + $0x70] sm:$0xff]
        %v3457 = vld [vmem:[%s3441 + $0x78] sm:$0xff]
        %v3458 = vld [vmem:[%s3441 + $0x80] sm:$0xff]
        %v3459 = vld [vmem:[%s3441 + $0x88] sm:$0xff]
        %v3460 = vld [vmem:[%s3441 + $0x90] sm:$0xff]
        %v3461 = vld [vmem:[%s3441 + $0x98] sm:$0xff]
        %v3462 = vld [vmem:[%s3441 + $0xa0] sm:$0xff]
        %v3463 = vld [vmem:[%s3441 + $0xa8] sm:$0xff]
        %v3464 = vld [vmem:[%s3441 + $0xb0] sm:$0xff]
        %v3465 = vld [vmem:[%s3441 + $0xb8] sm:$0xff]
        %v3466 = vld [vmem:[%s3441 + $0xc0] sm:$0xff]
        %v3467 = vld [vmem:[%s3441 + $0xc8] sm:$0xff]
        %v3468 = vld [vmem:[%s3441 + $0xd0] sm:$0xff]
        %v3469 = vld [vmem:[%s3441 + $0xd8] sm:$0xff]
        %v3470 = vld [vmem:[%s3441 + $0xe0] sm:$0xff]
        %v3471 = vld [vmem:[%s3441 + $0xe8] sm:$0xff]
        %v3472 = vld [vmem:[%s3441 + $0xf0] sm:$0xff]
        %v3473 = vld [vmem:[%s3441 + $0xf8] sm:$0xff]
        %v3474 = vld [vmem:[#allocation5] sm:$0x3]
        %v3475 = vlaneseq
        %v3476 = vshrl.u32 %v3475, 7
        %v3477 = vsub.s32 0, %v3476
        %v3478 = vrot.slane %v3474, %v3477
        %v3479 = vsub.f32 %v3442, %v3478
        %v3480 = vsub.f32 %v3443, %v3478
        %v3481 = vsub.f32 %v3444, %v3478
        %v3482 = vsub.f32 %v3445, %v3478
        %v3483 = vsub.f32 %v3446, %v3478
        %v3484 = vsub.f32 %v3447, %v3478
        %v3485 = vsub.f32 %v3448, %v3478
        %v3486 = vsub.f32 %v3449, %v3478
        %v3487 = vsub.f32 %v3450, %v3478
        %v3488 = vsub.f32 %v3451, %v3478
        %v3489 = vsub.f32 %v3452, %v3478
        %v3490 = vsub.f32 %v3453, %v3478
        %v3491 = vsub.f32 %v3454, %v3478
        %v3492 = vsub.f32 %v3455, %v3478
        %v3493 = vsub.f32 %v3456, %v3478
        %v3494 = vsub.f32 %v3457, %v3478
        %v3495 = vsub.f32 %v3458, %v3478
        %v3496 = vsub.f32 %v3459, %v3478
        %v3497 = vsub.f32 %v3460, %v3478
        %v3498 = vsub.f32 %v3461, %v3478
        %v3499 = vsub.f32 %v3462, %v3478
        %v3500 = vsub.f32 %v3463, %v3478
        %v3501 = vsub.f32 %v3464, %v3478
        %v3502 = vsub.f32 %v3465, %v3478
        %v3503 = vsub.f32 %v3466, %v3478
        %v3504 = vsub.f32 %v3467, %v3478
        %v3505 = vsub.f32 %v3468, %v3478
        %v3506 = vsub.f32 %v3469, %v3478
        %v3507 = vsub.f32 %v3470, %v3478
        %v3508 = vsub.f32 %v3471, %v3478
        %v3509 = vsub.f32 %v3472, %v3478
        %v3510 = vsub.f32 %v3473, %v3478
        %v3511 = vlaneseq
        %v3512 = vshrl.u32 %v3511, 7
        %v3513 = vsub.s32 1, %v3512
        %v3514 = vrot.slane %v3474, %v3513
        %v3515 = vmul.f32 %v3479, %v3514
        %v3516 = vmul.f32 %v3480, %v3514
        %v3517 = vmul.f32 %v3481, %v3514
        %v3518 = vmul.f32 %v3482, %v3514
        %v3519 = vmul.f32 %v3483, %v3514
        %v3520 = vmul.f32 %v3484, %v3514
        %v3521 = vmul.f32 %v3485, %v3514
        %v3522 = vmul.f32 %v3486, %v3514
        %v3523 = vmul.f32 %v3487, %v3514
        %v3524 = vmul.f32 %v3488, %v3514
        %v3525 = vmul.f32 %v3489, %v3514
        %v3526 = vmul.f32 %v3490, %v3514
        %v3527 = vmul.f32 %v3491, %v3514
        %v3528 = vmul.f32 %v3492, %v3514
        %v3529 = vmul.f32 %v3493, %v3514
        %v3530 = vmul.f32 %v3494, %v3514
        %v3531 = vmul.f32 %v3495, %v3514
        %v3532 = vmul.f32 %v3496, %v3514
        %v3533 = vmul.f32 %v3497, %v3514
        %v3534 = vmul.f32 %v3498, %v3514
        %v3535 = vmul.f32 %v3499, %v3514
        %v3536 = vmul.f32 %v3500, %v3514
        %v3537 = vmul.f32 %v3501, %v3514
        %v3538 = vmul.f32 %v3502, %v3514
        %v3539 = vmul.f32 %v3503, %v3514
        %v3540 = vmul.f32 %v3504, %v3514
        %v3541 = vmul.f32 %v3505, %v3514
        %v3542 = vmul.f32 %v3506, %v3514
        %v3543 = vmul.f32 %v3507, %v3514
        %v3544 = vmul.f32 %v3508, %v3514
        %v3545 = vmul.f32 %v3509, %v3514
        %v3546 = vmul.f32 %v3510, %v3514
        %v3547 = vlaneseq
        %v3548 = vshrl.u32 %v3547, 7
        %v3549 = vsub.s32 6, %v3548
        %v3550 = vrot.slane %v229, %v3549
        %v3551 = vmul.f32 %v3515, %v3550
        %v3552 = vmul.f32 %v3516, %v3550
        %v3553 = vmul.f32 %v3517, %v3550
        %v3554 = vmul.f32 %v3518, %v3550
        %v3555 = vmul.f32 %v3519, %v3550
        %v3556 = vmul.f32 %v3520, %v3550
        %v3557 = vmul.f32 %v3521, %v3550
        %v3558 = vmul.f32 %v3522, %v3550
        %v3559 = vmul.f32 %v3523, %v3550
        %v3560 = vmul.f32 %v3524, %v3550
        %v3561 = vmul.f32 %v3525, %v3550
        %v3562 = vmul.f32 %v3526, %v3550
        %v3563 = vmul.f32 %v3527, %v3550
        %v3564 = vmul.f32 %v3528, %v3550
        %v3565 = vmul.f32 %v3529, %v3550
        %v3566 = vmul.f32 %v3530, %v3550
        %v3567 = vmul.f32 %v3531, %v3550
        %v3568 = vmul.f32 %v3532, %v3550
        %v3569 = vmul.f32 %v3533, %v3550
        %v3570 = vmul.f32 %v3534, %v3550
        %v3571 = vmul.f32 %v3535, %v3550
        %v3572 = vmul.f32 %v3536, %v3550
        %v3573 = vmul.f32 %v3537, %v3550
        %v3574 = vmul.f32 %v3538, %v3550
        %v3575 = vmul.f32 %v3539, %v3550
        %v3576 = vmul.f32 %v3540, %v3550
        %v3577 = vmul.f32 %v3541, %v3550
        %v3578 = vmul.f32 %v3542, %v3550
        %v3579 = vmul.f32 %v3543, %v3550
        %v3580 = vmul.f32 %v3544, %v3550
        %v3581 = vmul.f32 %v3545, %v3550
        %v3582 = vmul.f32 %v3546, %v3550
        %v3583 = vlaneseq
        %v3584 = vshrl.u32 %v3583, 7
        %v3585 = vsub.s32 7, %v3584
        %v3586 = vrot.slane %v229, %v3585
        %v3587 = vadd.f32 %v3551, %v3586
        %v3588 = vadd.f32 %v3552, %v3586
        %v3589 = vadd.f32 %v3553, %v3586
        %v3590 = vadd.f32 %v3554, %v3586
        %v3591 = vadd.f32 %v3555, %v3586
        %v3592 = vadd.f32 %v3556, %v3586
        %v3593 = vadd.f32 %v3557, %v3586
        %v3594 = vadd.f32 %v3558, %v3586
        %v3595 = vadd.f32 %v3559, %v3586
        %v3596 = vadd.f32 %v3560, %v3586
        %v3597 = vadd.f32 %v3561, %v3586
        %v3598 = vadd.f32 %v3562, %v3586
        %v3599 = vadd.f32 %v3563, %v3586
        %v3600 = vadd.f32 %v3564, %v3586
        %v3601 = vadd.f32 %v3565, %v3586
        %v3602 = vadd.f32 %v3566, %v3586
        %v3603 = vadd.f32 %v3567, %v3586
        %v3604 = vadd.f32 %v3568, %v3586
        %v3605 = vadd.f32 %v3569, %v3586
        %v3606 = vadd.f32 %v3570, %v3586
        %v3607 = vadd.f32 %v3571, %v3586
        %v3608 = vadd.f32 %v3572, %v3586
        %v3609 = vadd.f32 %v3573, %v3586
        %v3610 = vadd.f32 %v3574, %v3586
        %v3611 = vadd.f32 %v3575, %v3586
        %v3612 = vadd.f32 %v3576, %v3586
        %v3613 = vadd.f32 %v3577, %v3586
        %v3614 = vadd.f32 %v3578, %v3586
        %v3615 = vadd.f32 %v3579, %v3586
        %v3616 = vadd.f32 %v3580, %v3586
        %v3617 = vadd.f32 %v3581, %v3586
        %v3618 = vadd.f32 %v3582, %v3586
        %v3619 = vxor.u32 %v3587, 2147483648
        %v3620 = vxor.u32 %v3588, 2147483648
        %v3621 = vxor.u32 %v3589, 2147483648
        %v3622 = vxor.u32 %v3590, 2147483648
        %v3623 = vxor.u32 %v3591, 2147483648
        %v3624 = vxor.u32 %v3592, 2147483648
        %v3625 = vxor.u32 %v3593, 2147483648
        %v3626 = vxor.u32 %v3594, 2147483648
        %v3627 = vxor.u32 %v3595, 2147483648
        %v3628 = vxor.u32 %v3596, 2147483648
        %v3629 = vxor.u32 %v3597, 2147483648
        %v3630 = vxor.u32 %v3598, 2147483648
        %v3631 = vxor.u32 %v3599, 2147483648
        %v3632 = vxor.u32 %v3600, 2147483648
        %v3633 = vxor.u32 %v3601, 2147483648
        %v3634 = vxor.u32 %v3602, 2147483648
        %v3635 = vxor.u32 %v3603, 2147483648
        %v3636 = vxor.u32 %v3604, 2147483648
        %v3637 = vxor.u32 %v3605, 2147483648
        %v3638 = vxor.u32 %v3606, 2147483648
        %v3639 = vxor.u32 %v3607, 2147483648
        %v3640 = vxor.u32 %v3608, 2147483648
        %v3641 = vxor.u32 %v3609, 2147483648
        %v3642 = vxor.u32 %v3610, 2147483648
        %v3643 = vxor.u32 %v3611, 2147483648
        %v3644 = vxor.u32 %v3612, 2147483648
        %v3645 = vxor.u32 %v3613, 2147483648
        %v3646 = vxor.u32 %v3614, 2147483648
        %v3647 = vxor.u32 %v3615, 2147483648
        %v3648 = vxor.u32 %v3616, 2147483648
        %v3649 = vxor.u32 %v3617, 2147483648
        %v3650 = vxor.u32 %v3618, 2147483648
        %v3651 = vmul.f32 %v3619, 1.442695
        %v3652 = vpow.pop %v3651
        %v3653 = vmul.f32 %v3620, 1.442695
        %v3654 = vpow.pop %v3653
        %v3655 = vmul.f32 %v3621, 1.442695
        %v3656 = vpow.pop %v3655
        %v3657 = vmul.f32 %v3622, 1.442695
        %v3658 = vpow.pop %v3657
        %v3659 = vmul.f32 %v3623, 1.442695
        %v3660 = vpow.pop %v3659
        %v3661 = vmul.f32 %v3624, 1.442695
        %v3662 = vpow.pop %v3661
        %v3663 = vmul.f32 %v3625, 1.442695
        %v3664 = vpow.pop %v3663
        %v3665 = vmul.f32 %v3626, 1.442695
        %v3666 = vpow.pop %v3665
        %v3667 = vmul.f32 %v3627, 1.442695
        %v3668 = vpow.pop %v3667
        %v3669 = vmul.f32 %v3628, 1.442695
        %v3670 = vpow.pop %v3669
        %v3671 = vmul.f32 %v3629, 1.442695
        %v3672 = vpow.pop %v3671
        %v3673 = vmul.f32 %v3630, 1.442695
        %v3674 = vpow.pop %v3673
        %v3675 = vmul.f32 %v3631, 1.442695
        %v3676 = vpow.pop %v3675
        %v3677 = vmul.f32 %v3632, 1.442695
        %v3678 = vpow.pop %v3677
        %v3679 = vmul.f32 %v3633, 1.442695
        %v3680 = vpow.pop %v3679
        %v3681 = vmul.f32 %v3634, 1.442695
        %v3682 = vpow.pop %v3681
        %v3683 = vmul.f32 %v3635, 1.442695
        %v3684 = vpow.pop %v3683
        %v3685 = vmul.f32 %v3636, 1.442695
        %v3686 = vpow.pop %v3685
        %v3687 = vmul.f32 %v3637, 1.442695
        %v3688 = vpow.pop %v3687
        %v3689 = vmul.f32 %v3638, 1.442695
        %v3690 = vpow.pop %v3689
        %v3691 = vmul.f32 %v3639, 1.442695
        %v3692 = vpow.pop %v3691
        %v3693 = vmul.f32 %v3640, 1.442695
        %v3694 = vpow.pop %v3693
        %v3695 = vmul.f32 %v3641, 1.442695
        %v3696 = vpow.pop %v3695
        %v3697 = vmul.f32 %v3642, 1.442695
        %v3698 = vpow.pop %v3697
        %v3699 = vmul.f32 %v3643, 1.442695
        %v3700 = vpow.pop %v3699
        %v3701 = vmul.f32 %v3644, 1.442695
        %v3702 = vpow.pop %v3701
        %v3703 = vmul.f32 %v3645, 1.442695
        %v3704 = vpow.pop %v3703
        %v3705 = vmul.f32 %v3646, 1.442695
        %v3706 = vpow.pop %v3705
        %v3707 = vmul.f32 %v3647, 1.442695
        %v3708 = vpow.pop %v3707
        %v3709 = vmul.f32 %v3648, 1.442695
        %v3710 = vpow.pop %v3709
        %v3711 = vmul.f32 %v3649, 1.442695
        %v3712 = vpow.pop %v3711
        %v3713 = vmul.f32 %v3650, 1.442695
        %v3714 = vpow.pop %v3713
        %v3715 = vadd.f32 %v3652, 1.0
        %v3716 = vadd.f32 %v3654, 1.0
        %v3717 = vadd.f32 %v3656, 1.0
        %v3718 = vadd.f32 %v3658, 1.0
        %v3719 = vadd.f32 %v3660, 1.0
        %v3720 = vadd.f32 %v3662, 1.0
        %v3721 = vadd.f32 %v3664, 1.0
        %v3722 = vadd.f32 %v3666, 1.0
        %v3723 = vadd.f32 %v3668, 1.0
        %v3724 = vadd.f32 %v3670, 1.0
        %v3725 = vadd.f32 %v3672, 1.0
        %v3726 = vadd.f32 %v3674, 1.0
        %v3727 = vadd.f32 %v3676, 1.0
        %v3728 = vadd.f32 %v3678, 1.0
        %v3729 = vadd.f32 %v3680, 1.0
        %v3730 = vadd.f32 %v3682, 1.0
        %v3731 = vadd.f32 %v3684, 1.0
        %v3732 = vadd.f32 %v3686, 1.0
        %v3733 = vadd.f32 %v3688, 1.0
        %v3734 = vadd.f32 %v3690, 1.0
        %v3735 = vadd.f32 %v3692, 1.0
        %v3736 = vadd.f32 %v3694, 1.0
        %v3737 = vadd.f32 %v3696, 1.0
        %v3738 = vadd.f32 %v3698, 1.0
        %v3739 = vadd.f32 %v3700, 1.0
        %v3740 = vadd.f32 %v3702, 1.0
        %v3741 = vadd.f32 %v3704, 1.0
        %v3742 = vadd.f32 %v3706, 1.0
        %v3743 = vadd.f32 %v3708, 1.0
        %v3744 = vadd.f32 %v3710, 1.0
        %v3745 = vadd.f32 %v3712, 1.0
        %v3746 = vadd.f32 %v3714, 1.0
        %v3747 = vrcp.pop %v3715
        %v3748 = vmul.f32 1.0, %v3747
        %v3749 = vrcp.pop %v3716
        %v3750 = vmul.f32 1.0, %v3749
        %v3751 = vrcp.pop %v3717
        %v3752 = vmul.f32 1.0, %v3751
        %v3753 = vrcp.pop %v3718
        %v3754 = vmul.f32 1.0, %v3753
        %v3755 = vrcp.pop %v3719
        %v3756 = vmul.f32 1.0, %v3755
        %v3757 = vrcp.pop %v3720
        %v3758 = vmul.f32 1.0, %v3757
        %v3759 = vrcp.pop %v3721
        %v3760 = vmul.f32 1.0, %v3759
        %v3761 = vrcp.pop %v3722
        %v3762 = vmul.f32 1.0, %v3761
        %v3763 = vrcp.pop %v3723
        %v3764 = vmul.f32 1.0, %v3763
        %v3765 = vrcp.pop %v3724
        %v3766 = vmul.f32 1.0, %v3765
        %v3767 = vrcp.pop %v3725
        %v3768 = vmul.f32 1.0, %v3767
        %v3769 = vrcp.pop %v3726
        %v3770 = vmul.f32 1.0, %v3769
        %v3771 = vrcp.pop %v3727
        %v3772 = vmul.f32 1.0, %v3771
        %v3773 = vrcp.pop %v3728
        %v3774 = vmul.f32 1.0, %v3773
        %v3775 = vrcp.pop %v3729
        %v3776 = vmul.f32 1.0, %v3775
        %v3777 = vrcp.pop %v3730
        %v3778 = vmul.f32 1.0, %v3777
        %v3779 = vrcp.pop %v3731
        %v3780 = vmul.f32 1.0, %v3779
        %v3781 = vrcp.pop %v3732
        %v3782 = vmul.f32 1.0, %v3781
        %v3783 = vrcp.pop %v3733
        %v3784 = vmul.f32 1.0, %v3783
        %v3785 = vrcp.pop %v3734
        %v3786 = vmul.f32 1.0, %v3785
        %v3787 = vrcp.pop %v3735
        %v3788 = vmul.f32 1.0, %v3787
        %v3789 = vrcp.pop %v3736
        %v3790 = vmul.f32 1.0, %v3789
        %v3791 = vrcp.pop %v3737
        %v3792 = vmul.f32 1.0, %v3791
        %v3793 = vrcp.pop %v3738
        %v3794 = vmul.f32 1.0, %v3793
        %v3795 = vrcp.pop %v3739
        %v3796 = vmul.f32 1.0, %v3795
        %v3797 = vrcp.pop %v3740
        %v3798 = vmul.f32 1.0, %v3797
        %v3799 = vrcp.pop %v3741
        %v3800 = vmul.f32 1.0, %v3799
        %v3801 = vrcp.pop %v3742
        %v3802 = vmul.f32 1.0, %v3801
        %v3803 = vrcp.pop %v3743
        %v3804 = vmul.f32 1.0, %v3803
        %v3805 = vrcp.pop %v3744
        %v3806 = vmul.f32 1.0, %v3805
        %v3807 = vrcp.pop %v3745
        %v3808 = vmul.f32 1.0, %v3807
        %v3809 = vrcp.pop %v3746
        %v3810 = vmul.f32 1.0, %v3809
        %3811 = vst [vmem:[%s219] sm:$0xff] %v3748
        %3812 = vst [vmem:[%s219 + $0x8] sm:$0xff] %v3750
        %3813 = vst [vmem:[%s219 + $0x10] sm:$0xff] %v3752
        %3814 = vst [vmem:[%s219 + $0x18] sm:$0xff] %v3754
        %3815 = vst [vmem:[%s219 + $0x20] sm:$0xff] %v3756
        %3816 = vst [vmem:[%s219 + $0x28] sm:$0xff] %v3758
        %3817 = vst [vmem:[%s219 + $0x30] sm:$0xff] %v3760
        %3818 = vst [vmem:[%s219 + $0x38] sm:$0xff] %v3762
        %3819 = vst [vmem:[%s219 + $0x40] sm:$0xff] %v3764
        %3820 = vst [vmem:[%s219 + $0x48] sm:$0xff] %v3766
        %3821 = vst [vmem:[%s219 + $0x50] sm:$0xff] %v3768
        %3822 = vst [vmem:[%s219 + $0x58] sm:$0xff] %v3770
        %3823 = vst [vmem:[%s219 + $0x60] sm:$0xff] %v3772
        %3824 = vst [vmem:[%s219 + $0x68] sm:$0xff] %v3774
        %3825 = vst [vmem:[%s219 + $0x70] sm:$0xff] %v3776
        %3826 = vst [vmem:[%s219 + $0x78] sm:$0xff] %v3778
        %3827 = vst [vmem:[%s219 + $0x80] sm:$0xff] %v3780
        %3828 = vst [vmem:[%s219 + $0x88] sm:$0xff] %v3782
        %3829 = vst [vmem:[%s219 + $0x90] sm:$0xff] %v3784
        %3830 = vst [vmem:[%s219 + $0x98] sm:$0xff] %v3786
        %3831 = vst [vmem:[%s219 + $0xa0] sm:$0xff] %v3788
        %3832 = vst [vmem:[%s219 + $0xa8] sm:$0xff] %v3790
        %3833 = vst [vmem:[%s219 + $0xb0] sm:$0xff] %v3792
        %3834 = vst [vmem:[%s219 + $0xb8] sm:$0xff] %v3794
        %3835 = vst [vmem:[%s219 + $0xc0] sm:$0xff] %v3796
        %3836 = vst [vmem:[%s219 + $0xc8] sm:$0xff] %v3798
        %3837 = vst [vmem:[%s219 + $0xd0] sm:$0xff] %v3800
        %3838 = vst [vmem:[%s219 + $0xd8] sm:$0xff] %v3802
        %3839 = vst [vmem:[%s219 + $0xe0] sm:$0xff] %v3804
        %3840 = vst [vmem:[%s219 + $0xe8] sm:$0xff] %v3806
        %3841 = vst [vmem:[%s219 + $0xf0] sm:$0xff] %v3808
        %3842 = vst [vmem:[%s219 + $0xf8] sm:$0xff] %v3810
        %s3843 = scalar_lea.vmem [#allocation3], %s3440
        %v3844 = vld [vmem:[%s3843] sm:$0xff]
        %v3845 = vld [vmem:[%s3843 + $0x8] sm:$0xff]
        %v3846 = vld [vmem:[%s3843 + $0x10] sm:$0xff]
        %v3847 = vld [vmem:[%s3843 + $0x18] sm:$0xff]
        %v3848 = vld [vmem:[%s3843 + $0x20] sm:$0xff]
        %v3849 = vld [vmem:[%s3843 + $0x28] sm:$0xff]
        %v3850 = vld [vmem:[%s3843 + $0x30] sm:$0xff]
        %v3851 = vld [vmem:[%s3843 + $0x38] sm:$0xff]
        %v3852 = vld [vmem:[%s3843 + $0x40] sm:$0xff]
        %v3853 = vld [vmem:[%s3843 + $0x48] sm:$0xff]
        %v3854 = vld [vmem:[%s3843 + $0x50] sm:$0xff]
        %v3855 = vld [vmem:[%s3843 + $0x58] sm:$0xff]
        %v3856 = vld [vmem:[%s3843 + $0x60] sm:$0xff]
        %v3857 = vld [vmem:[%s3843 + $0x68] sm:$0xff]
        %v3858 = vld [vmem:[%s3843 + $0x70] sm:$0xff]
        %v3859 = vld [vmem:[%s3843 + $0x78] sm:$0xff]
        %v3860 = vld [vmem:[%s3843 + $0x80] sm:$0xff]
        %v3861 = vld [vmem:[%s3843 + $0x88] sm:$0xff]
        %v3862 = vld [vmem:[%s3843 + $0x90] sm:$0xff]
        %v3863 = vld [vmem:[%s3843 + $0x98] sm:$0xff]
        %v3864 = vld [vmem:[%s3843 + $0xa0] sm:$0xff]
        %v3865 = vld [vmem:[%s3843 + $0xa8] sm:$0xff]
        %v3866 = vld [vmem:[%s3843 + $0xb0] sm:$0xff]
        %v3867 = vld [vmem:[%s3843 + $0xb8] sm:$0xff]
        %v3868 = vld [vmem:[%s3843 + $0xc0] sm:$0xff]
        %v3869 = vld [vmem:[%s3843 + $0xc8] sm:$0xff]
        %v3870 = vld [vmem:[%s3843 + $0xd0] sm:$0xff]
        %v3871 = vld [vmem:[%s3843 + $0xd8] sm:$0xff]
        %v3872 = vld [vmem:[%s3843 + $0xe0] sm:$0xff]
        %v3873 = vld [vmem:[%s3843 + $0xe8] sm:$0xff]
        %v3874 = vld [vmem:[%s3843 + $0xf0] sm:$0xff]
        %v3875 = vld [vmem:[%s3843 + $0xf8] sm:$0xff]
        %3876 = vst [vmem:[%s225] sm:$0xff] %v3844
        %3877 = vst [vmem:[%s225 + $0x8] sm:$0xff] %v3845
        %3878 = vst [vmem:[%s225 + $0x10] sm:$0xff] %v3846
        %3879 = vst [vmem:[%s225 + $0x18] sm:$0xff] %v3847
        %3880 = vst [vmem:[%s225 + $0x20] sm:$0xff] %v3848
        %3881 = vst [vmem:[%s225 + $0x28] sm:$0xff] %v3849
        %3882 = vst [vmem:[%s225 + $0x30] sm:$0xff] %v3850
        %3883 = vst [vmem:[%s225 + $0x38] sm:$0xff] %v3851
        %3884 = vst [vmem:[%s225 + $0x40] sm:$0xff] %v3852
        %3885 = vst [vmem:[%s225 + $0x48] sm:$0xff] %v3853
        %3886 = vst [vmem:[%s225 + $0x50] sm:$0xff] %v3854
        %3887 = vst [vmem:[%s225 + $0x58] sm:$0xff] %v3855
        %3888 = vst [vmem:[%s225 + $0x60] sm:$0xff] %v3856
        %3889 = vst [vmem:[%s225 + $0x68] sm:$0xff] %v3857
        %3890 = vst [vmem:[%s225 + $0x70] sm:$0xff] %v3858
        %3891 = vst [vmem:[%s225 + $0x78] sm:$0xff] %v3859
        %3892 = vst [vmem:[%s225 + $0x80] sm:$0xff] %v3860
        %3893 = vst [vmem:[%s225 + $0x88] sm:$0xff] %v3861
        %3894 = vst [vmem:[%s225 + $0x90] sm:$0xff] %v3862
        %3895 = vst [vmem:[%s225 + $0x98] sm:$0xff] %v3863
        %3896 = vst [vmem:[%s225 + $0xa0] sm:$0xff] %v3864
        %3897 = vst [vmem:[%s225 + $0xa8] sm:$0xff] %v3865
        %3898 = vst [vmem:[%s225 + $0xb0] sm:$0xff] %v3866
        %3899 = vst [vmem:[%s225 + $0xb8] sm:$0xff] %v3867
        %3900 = vst [vmem:[%s225 + $0xc0] sm:$0xff] %v3868
        %3901 = vst [vmem:[%s225 + $0xc8] sm:$0xff] %v3869
        %3902 = vst [vmem:[%s225 + $0xd0] sm:$0xff] %v3870
        %3903 = vst [vmem:[%s225 + $0xd8] sm:$0xff] %v3871
        %3904 = vst [vmem:[%s225 + $0xe0] sm:$0xff] %v3872
        %3905 = vst [vmem:[%s225 + $0xe8] sm:$0xff] %v3873
        %3906 = vst [vmem:[%s225 + $0xf0] sm:$0xff] %v3874
        %3907 = vst [vmem:[%s225 + $0xf8] sm:$0xff] %v3875
      $region64: #{vae_forward.1} parent=31 // pred_fallthru
        _
      %s3908 = smul.u32 32, %s21
      %p3909 = scmp.lt.s32.totalorder %s3908, 63
      %s3910 = scalar_select %p3909, %s3908, 63
      %s3911 = smul.addr %s3910, 8
      %s3912 = scalar_lea.vmem %s3, %s3911
      %s3913 = smul.u32 32, %s21
      %p3914 = scmp.lt.s32.totalorder %s3913, 63
      %s3915 = scalar_select %p3914, %s3913, 63
      %s3916 = smul.addr %s3915, 8
      %s3917 = scalar_lea.vmem %s4, %s3916
      // Predicated region
      $region65: #{vae_forward.1} parent=31 // pred_check
        %p3918 = pneg %p114
      $region66: #{vae_forward.1} parent=31 // pred_check_branch
        %3920 = sbr.rel (%p3918) target = $region68
      $region67: #{vae_forward.1} parent=31 // pred_region
        %s3921 = smul.u32 32, %s21
      $region68: #{vae_forward.1} parent=31 // pred_fallthru
        _
      // Predicated region
      $region69: #{vae_forward.1} parent=31 // pred_check
        %p3922 = pneg %p140
      $region70: #{vae_forward.1} parent=31 // pred_check_branch
        %3924 = sbr.rel (%p3922) target = $region72
      $region71: #{vae_forward.1} parent=31 // pred_region
        %s3925 = smul.u32 32, %s21
      $region72: #{vae_forward.1} parent=31 // pred_fallthru
        _
    $region32: #{vae_forward.1} parent=5 // pred_fallthru
      _
    %p3926 = scmp.le.s32.totalorder 2, %s11
    // Predicated region
    $region73: #{vae_forward.1} parent=5 // pred_check
      %p3927 = pneg %p3926
    $region74: #{vae_forward.1} parent=5 // pred_check_branch
      %3929 = sbr.rel (%p3927) target = $region76
    $region75: #{vae_forward.1} parent=5 // pred_region
      %s3930 = ssub.s32 %s11, 2
      // Predicated region
      $region77: #{vae_forward.1} parent=75 // pred_check
        %p3931 = pneg %p120
      $region78: #{vae_forward.1} parent=75 // pred_check_branch
        %3933 = sbr.rel (%p3931) target = $region80
      $region79: #{vae_forward.1} parent=75 // pred_region
        %s3934 = smul.u32 32, %s23
        %p3935 = scmp.lt.s32.totalorder %s3934, 63
        %s3936 = scalar_select %p3935, %s3934, 63
        %s3937 = smul.addr %s3936, 8
        %s3938 = scalar_lea.vmem %s3, %s3937
      $region80: #{vae_forward.1} parent=75 // pred_fallthru
        _
      // Predicated region
      $region81: #{vae_forward.1} parent=75 // pred_check
        %p3939 = pneg %p146
      $region82: #{vae_forward.1} parent=75 // pred_check_branch
        %3941 = sbr.rel (%p3939) target = $region84
      $region83: #{vae_forward.1} parent=75 // pred_region
        %s3942 = smul.u32 32, %s23
        %p3943 = scmp.lt.s32.totalorder %s3942, 63
        %s3944 = scalar_select %p3943, %s3942, 63
        %s3945 = smul.addr %s3944, 8
        %s3946 = scalar_lea.vmem %s4, %s3945
      $region84: #{vae_forward.1} parent=75 // pred_fallthru
        _
    $region76: #{vae_forward.1} parent=5 // pred_fallthru
      _
  $region6: #{vae_forward.1} parent=0 // loop_footer
    %s15 = sadd.s32 1, %s11
  $region7: #{vae_forward.1} parent=0 // loop_footer_branch
    %10 = sbr.rel target = $region3
  $region8: #{vae_forward.1} parent=0 // loop_exit
    _

</llo_original>
